<compile_context>
chip_gen: v7x
topology: tpu7x:2x2x1
jax: 0.10.0
libtpu: 0.0.40
codegen_flags: <defaults>
</compile_context>

<pallas_src>
from functools import partial

import jax
import jax.numpy as jnp
from jax.experimental import pallas as pl
from jax.experimental.pallas import tpu as pltpu

BN_EPS = 1e-5
LRELU_SLOPE = 0.2
KSIZE = 4
STORE_OFF = 8          # activations live at scratch rows [8, 8 + M); row 7 and
                       # row 8 + M are the conv zero-padding rows.

_VMEM = pl.BlockSpec(memory_space=pltpu.MemorySpace.VMEM)


# ------------------------------ fused kernel ------------------------------

def _make_kernel(n, length, cpad, num_layers, l_fin):
    """Build the fused encoder kernel for static (N, L, CPAD) configuration."""

    def kernel(x_ref, w_ref, bn_ref, wh_ref, out_ref, *scratch):
        src = x_ref                      # layer input ref (offset-8 convention)
        l_in = length
        for i in range(num_layers):
            l_out = l_in // 2
            m_out = n * l_out

            # Per-sample output position (for masking cross-sample tap rows).
            pos = None
            if n > 1:
                pos = (jax.lax.broadcasted_iota(jnp.int32, (m_out, cpad), 0)
                       % l_out)

            # Conv1d(k=4, s=2, p=1): 4 sublane-strided tap reads, each matmul
            # accumulating into the same (m_out, cpad) f32 tile on the MXU.
            y = None
            for t in range(KSIZE):
                tap = src[pl.ds(STORE_OFF - 1 + t, m_out, stride=2), :]
                if pos is not None and t == 0:
                    tap = jnp.where(pos == 0, 0.0, tap)            # left pad
                if pos is not None and t == KSIZE - 1:
                    tap = jnp.where(pos == l_out - 1, 0.0, tap)    # right pad
                wblk = w_ref[(i * KSIZE + t) * cpad:(i * KSIZE + t + 1) * cpad, :]
                part = jnp.dot(tap, wblk, preferred_element_type=jnp.float32)
                y = part if y is None else y + part

            # BatchNorm1d, training mode: biased batch statistics over all
            # N * l_out positions per channel (exact -- whole batch in-kernel).
            inv_cnt = 1.0 / float(m_out)
            mean = jnp.sum(y, axis=0, keepdims=True) * inv_cnt
            var = jnp.sum(jnp.square(y - mean), axis=0, keepdims=True) * inv_cnt
            g = bn_ref[i:i + 1, :]
            b = bn_ref[num_layers + i:num_layers + i + 1, :]
            scale = g * jax.lax.rsqrt(var + BN_EPS)
            shift = b - mean * scale
            z = y * scale + shift
            z = jnp.where(z >= 0, z, LRELU_SLOPE * z)              # LeakyReLU

            # Store to the next layer's scratch at row offset 8; rows 7 and
            # 8 + m_out are the zero-padding rows read by the next conv.
            dst = scratch[i]
            dst[STORE_OFF - 1:STORE_OFF, :] = jnp.zeros((1, cpad), jnp.float32)
            dst[STORE_OFF:STORE_OFF + m_out, :] = z
            dst[STORE_OFF + m_out:STORE_OFF + m_out + 1, :] = (
                jnp.zeros((1, cpad), jnp.float32))
            src = dst
            l_in = l_out

        # Fused mu/logvar heads: accumulated per-position matmuls (no
        # flatten / lane concat).  Output is lane-dense (n, 128-padded).
        acc = None
        for l in range(l_fin):
            h_l = src[pl.ds(STORE_OFF + l, n, stride=l_fin), :]     # (n, cpad)
            whb = wh_ref[l * cpad:(l + 1) * cpad, :]                # (cpad, out)
            part = jnp.dot(h_l, whb, preferred_element_type=jnp.float32)
            acc = part if acc is None else acc + part
        out_ref[...] = acc

    return kernel


# ------------------------------- wrappers ---------------------------------

@partial(jax.jit, static_argnames=("nz",))
def encoder_forward(packed, x_ncw, *, nz):
    """x_ncw: (N, C, L) float32, same layout as the PyTorch module's input."""
    n, c_in, length = x_ncw.shape
    cpad = packed["conv_w"].shape[1]
    num_layers = packed["conv_w"].shape[0] // (KSIZE * cpad)
    l_fin = length // (2 ** num_layers)
    out_pad = packed["w_heads"].shape[1]

    # Stack the batch along sublanes (channels-last) and add the offset-8 zero
    # padding rows + zero lane padding up to CPAD (cheap XLA ops, once per call).
    x_nlc = jnp.transpose(x_ncw, (0, 2, 1)).reshape(n * length, c_in)
    x_pad = jnp.pad(x_nlc, ((STORE_OFF, STORE_OFF), (0, cpad - c_in)))

    scratch_shapes = [
        pltpu.VMEM((n * (length // (2 ** (i + 1))) + 2 * STORE_OFF, cpad),
                   jnp.float32)
        for i in range(num_layers)
    ]

    kernel = _make_kernel(n=n, length=length, cpad=cpad,
                          num_layers=num_layers, l_fin=l_fin)

    out = pl.pallas_call(
        kernel,
        out_shape=jax.ShapeDtypeStruct((n, out_pad), jnp.float32),
        in_specs=[_VMEM] * 4,
        out_specs=_VMEM,
        scratch_shapes=scratch_shapes,
        compiler_params=pltpu.CompilerParams(vmem_limit_bytes=32 * 1024 * 1024),
    )(x_pad, packed["conv_w"], packed["bn"], packed["w_heads"])

    return out[:, :nz], out[:, nz:2 * nz]


# ------------------------ parameters (torch layouts) -----------------------

def init_params(key, nc, nz, ndf):
    """Parameters in PyTorch layouts (Conv1d: (Cout, Cin, K); Linear: (nz, feat))."""
    chans = [nc, ndf, ndf * 2, ndf * 4, ndf * 8, ndf * 16]
    params = {"conv": [], "gamma": [], "beta": []}
    for i in range(5):
        key, k = jax.random.split(key)
        cin, cout = chans[i], chans[i + 1]
        params["conv"].append(0.02 * jax.random.normal(k, (cout, cin, KSIZE),
                                                       jnp.float32))
        params["gamma"].append(jnp.ones((cout,), jnp.float32))   # BN weight
        params["beta"].append(jnp.zeros((cout,), jnp.float32))   # BN bias
    key, k1, k2 = jax.random.split(key, 3)
    feat = ndf * 16 * 4
    params["w_mu"] = 0.02 * jax.random.normal(k1, (nz, feat), jnp.float32)
    params["w_logvar"] = 0.02 * jax.random.normal(k2, (nz, feat), jnp.float32)
    return params


def pack_params(params):
    """One-time repack into the kernel's layouts (done at init, not per call)."""
    convs = params["conv"]
    num_layers = len(convs)
    max_c = max(max(w.shape[0], w.shape[1]) for w in convs)
    cpad = ((max_c + 127) // 128) * 128        # uniform lane-dense channel pad

    # Conv weights: (Cout, Cin, K) -> per-tap (CPAD, CPAD) blocks, all layers
    # concatenated into one (num_layers*K*CPAD, CPAD) buffer.
    wblocks = []
    for w in convs:
        cout, cin, k = w.shape
        wt = jnp.transpose(w, (2, 1, 0))                       # (K, Cin, Cout)
        wt = jnp.pad(wt, ((0, 0), (0, cpad - cin), (0, cpad - cout)))
        wblocks.append(wt.reshape(k * cpad, cpad))
    conv_w = jnp.concatenate(wblocks, axis=0)

    # BN gamma/beta: one (2*num_layers, CPAD) buffer (zero padding makes the
    # padded channels stay exactly zero through BN + LeakyReLU).
    g_rows = [jnp.pad(g, (0, cpad - g.shape[0]))[None, :] for g in params["gamma"]]
    b_rows = [jnp.pad(b, (0, cpad - b.shape[0]))[None, :] for b in params["beta"]]
    bn = jnp.concatenate(g_rows + b_rows, axis=0)

    # Heads: torch flattens (N, C, L) channel-major (f = c*L_fin + l).  Pack
    # the fused (mu|logvar) weight l-blocked: row l*CPAD + c of block l holds
    # the weights of channel c at position l; pad out columns to 128.
    c_fin = convs[-1].shape[0]
    nz = params["w_mu"].shape[0]
    feat = params["w_mu"].shape[1]
    l_fin = feat // c_fin
    out_pad = ((2 * nz + 127) // 128) * 128

    def to_lco(wt):                      # (nz, feat) -> (l_fin, c_fin, nz)
        return jnp.transpose(wt.reshape(nz, c_fin, l_fin), (2, 1, 0))

    heads = jnp.concatenate([to_lco(params["w_mu"]),
                             to_lco(params["w_logvar"])], axis=-1)
    heads = jnp.pad(heads, ((0, 0), (0, cpad - c_fin), (0, out_pad - 2 * nz)))
    w_heads = heads.reshape(l_fin * cpad, out_pad)

    return {"conv_w": conv_w, "bn": bn, "w_heads": w_heads}


# ------------------------- pure-XLA reference ------------------------------

def encoder_reference(params, x_ncw):
    """Independent reference using torch-layout params (training-mode BN)."""
    h = x_ncw
    for w, g, b in zip(params["conv"], params["gamma"], params["beta"]):
        h = jax.lax.conv_general_dilated(
            h, w, window_strides=(2,), padding=((1, 1),),
            dimension_numbers=("NCH", "OIH", "NCH"))
        mean = jnp.mean(h, axis=(0, 2), keepdims=True)
        var = jnp.mean(jnp.square(h - mean), axis=(0, 2), keepdims=True)
        h = ((h - mean) * jax.lax.rsqrt(var + BN_EPS) * g.reshape(1, -1, 1)
             + b.reshape(1, -1, 1))
        h = jnp.where(h >= 0, h, LRELU_SLOPE * h)
    hf = h.reshape(h.shape[0], -1)
    return hf @ params["w_mu"].T, hf @ params["w_logvar"].T


# ---------------------------------- main -----------------------------------

if __name__ == "__main__":
    # L must be 128 so that five stride-2 convs leave length 4, matching the
    # ndf*16*4 flatten hard-coded in the PyTorch module.
    nc, nz, ndf = 4, 32, 8
    batch, length = 2, 128

    key = jax.random.PRNGKey(0)
    kparams, kx = jax.random.split(key)
    params = init_params(kparams, nc, nz, ndf)
    packed = pack_params(params)
    x = jax.random.normal(kx, (batch, nc, length), jnp.float32)

    mu, logvar = encoder_forward(packed, x, nz=nz)
    jax.block_until_ready((mu, logvar))

    assert mu.shape == (batch, nz) and logvar.shape == (batch, nz)
    assert mu.dtype == jnp.float32 and logvar.dtype == jnp.float32

    # Correctness check against a pure-XLA reference built directly from the
    # torch-layout parameters.
    mu_ref, lv_ref = encoder_reference(params, x)
    assert jnp.allclose(mu, mu_ref, atol=5e-2, rtol=5e-2), \
        float(jnp.max(jnp.abs(mu - mu_ref)))
    assert jnp.allclose(logvar, lv_ref, atol=5e-2, rtol=5e-2), \
        float(jnp.max(jnp.abs(logvar - lv_ref)))

    print("KERNEL_OK")
</pallas_src>

<mosaic_0001>
module attributes {stable_mosaic.version = 11 : i64} {
  func.func @kernel(%arg0: memref<272x128xf32, #tpu.memory_space<vmem>>, %arg1: memref<2560x128xf32, #tpu.memory_space<vmem>>, %arg2: memref<10x128xf32, #tpu.memory_space<vmem>>, %arg3: memref<512x128xf32, #tpu.memory_space<vmem>>, %arg4: memref<2x128xf32, #tpu.memory_space<vmem>>, %arg5: memref<144x128xf32, #tpu.memory_space<vmem>>, %arg6: memref<80x128xf32, #tpu.memory_space<vmem>>, %arg7: memref<48x128xf32, #tpu.memory_space<vmem>>, %arg8: memref<32x128xf32, #tpu.memory_space<vmem>>, %arg9: memref<24x128xf32, #tpu.memory_space<vmem>>) attributes {dimension_semantics = [], scalar_prefetch = 0 : i64, scratch_operands = 5 : i64, tpu.core_type = #tpu.core_type<tc>} {
    %0 = tpu.iota {dimensions = array<i32: 0>} : vector<128x128xi32>
    %c64_i32 = arith.constant 64 : i32
    %c0_i32 = arith.constant 0 : i32
    %1 = arith.cmpi eq, %c64_i32, %c0_i32 : i32
    %c1_i32 = arith.constant 1 : i32
    %2 = arith.select %1, %c1_i32, %c64_i32 : i32
    %3 = vector.broadcast %2 : i32 to vector<128x128xi32>
    %4 = arith.remsi %0, %3 : vector<128x128xi32>
    %c0_i32_0 = arith.constant 0 : i32
    %5 = vector.broadcast %c0_i32_0 : i32 to vector<128x128xi32>
    %6 = arith.cmpi ne, %4, %5 : vector<128x128xi32>
    %c0_i32_1 = arith.constant 0 : i32
    %7 = vector.broadcast %c0_i32_1 : i32 to vector<128x128xi32>
    %8 = arith.cmpi slt, %4, %7 : vector<128x128xi32>
    %c0_i32_2 = arith.constant 0 : i32
    %9 = arith.cmpi slt, %2, %c0_i32_2 : i32
    %10 = vector.broadcast %9 : i1 to vector<128x128xi1>
    %11 = vector.broadcast %10 : vector<128x128xi1> to vector<128x128xi1>
    %12 = arith.xori %8, %11 : vector<128x128xi1>
    %13 = arith.andi %12, %6 : vector<128x128xi1>
    %14 = vector.broadcast %2 : i32 to vector<128x128xi32>
    %15 = arith.addi %4, %14 : vector<128x128xi32>
    %16 = arith.select %13, %15, %4 : vector<128x128xi1>, vector<128x128xi32>
    %c7 = arith.constant 7 : index
    %c0 = arith.constant 0 : index
    %17 = tpu.strided_load %arg0[%c7, %c0] {strides = array<i32: 2, 1>} : memref<272x128xf32, #tpu.memory_space<vmem>>, vector<128x128xf32>
    %c0_i32_3 = arith.constant 0 : i32
    %18 = vector.broadcast %c0_i32_3 : i32 to vector<128x128xi32>
    %19 = arith.cmpi eq, %16, %18 : vector<128x128xi32>
    %cst = arith.constant 0.000000e+00 : f32
    %20 = vector.broadcast %cst : f32 to vector<128x128xf32>
    %21 = arith.select %19, %20, %17 : vector<128x128xi1>, vector<128x128xf32>
    %c0_4 = arith.constant 0 : index
    %c0_5 = arith.constant 0 : index
    %22 = vector.load %arg1[%c0_4, %c0_5] : memref<2560x128xf32, #tpu.memory_space<vmem>>, vector<128x128xf32>
    %cst_6 = arith.constant dense<0.000000e+00> : vector<128x128xf32>
    %23 = tpu.matmul %21, %22, %cst_6 {dimension_numbers = #tpu.dot_dimension_numbers<[1], [0], [0], [1], [0, 0, 1, 1], [], []>} : vector<128x128xf32>, vector<128x128xf32>, vector<128x128xf32> -> vector<128x128xf32>
    %c8 = arith.constant 8 : index
    %c0_7 = arith.constant 0 : index
    %24 = tpu.strided_load %arg0[%c8, %c0_7] {strides = array<i32: 2, 1>} : memref<272x128xf32, #tpu.memory_space<vmem>>, vector<128x128xf32>
    %c128 = arith.constant 128 : index
    %c0_8 = arith.constant 0 : index
    %25 = vector.load %arg1[%c128, %c0_8] : memref<2560x128xf32, #tpu.memory_space<vmem>>, vector<128x128xf32>
    %cst_9 = arith.constant dense<0.000000e+00> : vector<128x128xf32>
    %26 = tpu.matmul %24, %25, %cst_9 {dimension_numbers = #tpu.dot_dimension_numbers<[1], [0], [0], [1], [0, 0, 1, 1], [], []>} : vector<128x128xf32>, vector<128x128xf32>, vector<128x128xf32> -> vector<128x128xf32>
    %27 = arith.addf %23, %26 : vector<128x128xf32>
    %c9 = arith.constant 9 : index
    %c0_10 = arith.constant 0 : index
    %28 = tpu.strided_load %arg0[%c9, %c0_10] {strides = array<i32: 2, 1>} : memref<272x128xf32, #tpu.memory_space<vmem>>, vector<128x128xf32>
    %c256 = arith.constant 256 : index
    %c0_11 = arith.constant 0 : index
    %29 = vector.load %arg1[%c256, %c0_11] : memref<2560x128xf32, #tpu.memory_space<vmem>>, vector<128x128xf32>
    %cst_12 = arith.constant dense<0.000000e+00> : vector<128x128xf32>
    %30 = tpu.matmul %28, %29, %cst_12 {dimension_numbers = #tpu.dot_dimension_numbers<[1], [0], [0], [1], [0, 0, 1, 1], [], []>} : vector<128x128xf32>, vector<128x128xf32>, vector<128x128xf32> -> vector<128x128xf32>
    %31 = arith.addf %27, %30 : vector<128x128xf32>
    %c10 = arith.constant 10 : index
    %c0_13 = arith.constant 0 : index
    %32 = tpu.strided_load %arg0[%c10, %c0_13] {strides = array<i32: 2, 1>} : memref<272x128xf32, #tpu.memory_space<vmem>>, vector<128x128xf32>
    %c63_i32 = arith.constant 63 : i32
    %33 = vector.broadcast %c63_i32 : i32 to vector<128x128xi32>
    %34 = arith.cmpi eq, %16, %33 : vector<128x128xi32>
    %cst_14 = arith.constant 0.000000e+00 : f32
    %35 = vector.broadcast %cst_14 : f32 to vector<128x128xf32>
    %36 = arith.select %34, %35, %32 : vector<128x128xi1>, vector<128x128xf32>
    %c384 = arith.constant 384 : index
    %c0_15 = arith.constant 0 : index
    %37 = vector.load %arg1[%c384, %c0_15] : memref<2560x128xf32, #tpu.memory_space<vmem>>, vector<128x128xf32>
    %cst_16 = arith.constant dense<0.000000e+00> : vector<128x128xf32>
    %38 = tpu.matmul %36, %37, %cst_16 {dimension_numbers = #tpu.dot_dimension_numbers<[1], [0], [0], [1], [0, 0, 1, 1], [], []>} : vector<128x128xf32>, vector<128x128xf32>, vector<128x128xf32> -> vector<128x128xf32>
    %39 = arith.addf %31, %38 : vector<128x128xf32>
    %cst_17 = arith.constant dense<0.000000e+00> : vector<128xf32>
    %40 = vector.multi_reduction <add>, %39, %cst_17 [0] : vector<128x128xf32> to vector<128xf32>
    %41 = vector.shape_cast %40 : vector<128xf32> to vector<1x128xf32>
    %cst_18 = arith.constant 7.812500e-03 : f32
    %42 = vector.broadcast %cst_18 : f32 to vector<1x128xf32>
    %43 = arith.mulf %41, %42 : vector<1x128xf32>
    %44 = vector.broadcast %43 : vector<1x128xf32> to vector<128x128xf32>
    %45 = arith.subf %39, %44 : vector<128x128xf32>
    %46 = arith.mulf %45, %45 : vector<128x128xf32>
    %cst_19 = arith.constant dense<0.000000e+00> : vector<128xf32>
    %47 = vector.multi_reduction <add>, %46, %cst_19 [0] : vector<128x128xf32> to vector<128xf32>
    %48 = vector.shape_cast %47 : vector<128xf32> to vector<1x128xf32>
    %cst_20 = arith.constant 7.812500e-03 : f32
    %49 = vector.broadcast %cst_20 : f32 to vector<1x128xf32>
    %50 = arith.mulf %48, %49 : vector<1x128xf32>
    %c0_21 = arith.constant 0 : index
    %c0_22 = arith.constant 0 : index
    %51 = vector.load %arg2[%c0_21, %c0_22] : memref<10x128xf32, #tpu.memory_space<vmem>>, vector<1x128xf32>
    %c5 = arith.constant 5 : index
    %c0_23 = arith.constant 0 : index
    %52 = vector.load %arg2[%c5, %c0_23] : memref<10x128xf32, #tpu.memory_space<vmem>>, vector<1x128xf32>
    %cst_24 = arith.constant 9.99999974E-6 : f32
    %53 = vector.broadcast %cst_24 : f32 to vector<1x128xf32>
    %54 = arith.addf %50, %53 : vector<1x128xf32>
    %55 = math.rsqrt %54 : vector<1x128xf32>
    %56 = arith.mulf %51, %55 : vector<1x128xf32>
    %57 = arith.mulf %43, %56 : vector<1x128xf32>
    %58 = arith.subf %52, %57 : vector<1x128xf32>
    %59 = vector.broadcast %56 : vector<1x128xf32> to vector<128x128xf32>
    %60 = arith.mulf %39, %59 : vector<128x128xf32>
    %61 = vector.broadcast %58 : vector<1x128xf32> to vector<128x128xf32>
    %62 = arith.addf %60, %61 : vector<128x128xf32>
    %cst_25 = arith.constant 0.000000e+00 : f32
    %63 = vector.broadcast %cst_25 : f32 to vector<128x128xf32>
    %64 = arith.cmpf oge, %62, %63 : vector<128x128xf32>
    %cst_26 = arith.constant 2.000000e-01 : f32
    %65 = vector.broadcast %cst_26 : f32 to vector<128x128xf32>
    %66 = arith.mulf %65, %62 : vector<128x128xf32>
    %67 = arith.select %64, %62, %66 : vector<128x128xi1>, vector<128x128xf32>
    %cst_27 = arith.constant 0.000000e+00 : f32
    %68 = vector.broadcast %cst_27 : f32 to vector<1x128xf32>
    %c7_28 = arith.constant 7 : index
    %c0_29 = arith.constant 0 : index
    %69 = vector.load %arg5[%c7_28, %c0_29] : memref<144x128xf32, #tpu.memory_space<vmem>>, vector<1x128xf32>
    tpu.vector_store %arg5[%c7_28, %c0_29], %68 {strides = array<i32>} : memref<144x128xf32, #tpu.memory_space<vmem>>, vector<1x128xf32>,
    %c8_30 = arith.constant 8 : index
    %c0_31 = arith.constant 0 : index
    %70 = vector.load %arg5[%c8_30, %c0_31] : memref<144x128xf32, #tpu.memory_space<vmem>>, vector<128x128xf32>
    tpu.vector_store %arg5[%c8_30, %c0_31], %67 {strides = array<i32>} : memref<144x128xf32, #tpu.memory_space<vmem>>, vector<128x128xf32>,
    %cst_32 = arith.constant 0.000000e+00 : f32
    %71 = vector.broadcast %cst_32 : f32 to vector<1x128xf32>
    %c136 = arith.constant 136 : index
    %c0_33 = arith.constant 0 : index
    %72 = vector.load %arg5[%c136, %c0_33] : memref<144x128xf32, #tpu.memory_space<vmem>>, vector<1x128xf32>
    tpu.vector_store %arg5[%c136, %c0_33], %71 {strides = array<i32>} : memref<144x128xf32, #tpu.memory_space<vmem>>, vector<1x128xf32>,
    %73 = tpu.iota {dimensions = array<i32: 0>} : vector<64x128xi32>
    %c32_i32 = arith.constant 32 : i32
    %c0_i32_34 = arith.constant 0 : i32
    %74 = arith.cmpi eq, %c32_i32, %c0_i32_34 : i32
    %c1_i32_35 = arith.constant 1 : i32
    %75 = arith.select %74, %c1_i32_35, %c32_i32 : i32
    %76 = vector.broadcast %75 : i32 to vector<64x128xi32>
    %77 = arith.remsi %73, %76 : vector<64x128xi32>
    %c0_i32_36 = arith.constant 0 : i32
    %78 = vector.broadcast %c0_i32_36 : i32 to vector<64x128xi32>
    %79 = arith.cmpi ne, %77, %78 : vector<64x128xi32>
    %c0_i32_37 = arith.constant 0 : i32
    %80 = vector.broadcast %c0_i32_37 : i32 to vector<64x128xi32>
    %81 = arith.cmpi slt, %77, %80 : vector<64x128xi32>
    %c0_i32_38 = arith.constant 0 : i32
    %82 = arith.cmpi slt, %75, %c0_i32_38 : i32
    %83 = vector.broadcast %82 : i1 to vector<64x128xi1>
    %84 = vector.broadcast %83 : vector<64x128xi1> to vector<64x128xi1>
    %85 = arith.xori %81, %84 : vector<64x128xi1>
    %86 = arith.andi %85, %79 : vector<64x128xi1>
    %87 = vector.broadcast %75 : i32 to vector<64x128xi32>
    %88 = arith.addi %77, %87 : vector<64x128xi32>
    %89 = arith.select %86, %88, %77 : vector<64x128xi1>, vector<64x128xi32>
    %c7_39 = arith.constant 7 : index
    %c0_40 = arith.constant 0 : index
    %90 = tpu.strided_load %arg5[%c7_39, %c0_40] {strides = array<i32: 2, 1>} : memref<144x128xf32, #tpu.memory_space<vmem>>, vector<64x128xf32>
    %c0_i32_41 = arith.constant 0 : i32
    %91 = vector.broadcast %c0_i32_41 : i32 to vector<64x128xi32>
    %92 = arith.cmpi eq, %89, %91 : vector<64x128xi32>
    %cst_42 = arith.constant 0.000000e+00 : f32
    %93 = vector.broadcast %cst_42 : f32 to vector<64x128xf32>
    %94 = arith.select %92, %93, %90 : vector<64x128xi1>, vector<64x128xf32>
    %c512 = arith.constant 512 : index
    %c0_43 = arith.constant 0 : index
    %95 = vector.load %arg1[%c512, %c0_43] : memref<2560x128xf32, #tpu.memory_space<vmem>>, vector<128x128xf32>
    %cst_44 = arith.constant dense<0.000000e+00> : vector<64x128xf32>
    %96 = tpu.matmul %94, %95, %cst_44 {dimension_numbers = #tpu.dot_dimension_numbers<[1], [0], [0], [1], [0, 0, 1, 1], [], []>} : vector<64x128xf32>, vector<128x128xf32>, vector<64x128xf32> -> vector<64x128xf32>
    %c8_45 = arith.constant 8 : index
    %c0_46 = arith.constant 0 : index
    %97 = tpu.strided_load %arg5[%c8_45, %c0_46] {strides = array<i32: 2, 1>} : memref<144x128xf32, #tpu.memory_space<vmem>>, vector<64x128xf32>
    %c640 = arith.constant 640 : index
    %c0_47 = arith.constant 0 : index
    %98 = vector.load %arg1[%c640, %c0_47] : memref<2560x128xf32, #tpu.memory_space<vmem>>, vector<128x128xf32>
    %cst_48 = arith.constant dense<0.000000e+00> : vector<64x128xf32>
    %99 = tpu.matmul %97, %98, %cst_48 {dimension_numbers = #tpu.dot_dimension_numbers<[1], [0], [0], [1], [0, 0, 1, 1], [], []>} : vector<64x128xf32>, vector<128x128xf32>, vector<64x128xf32> -> vector<64x128xf32>
    %100 = arith.addf %96, %99 : vector<64x128xf32>
    %c9_49 = arith.constant 9 : index
    %c0_50 = arith.constant 0 : index
    %101 = tpu.strided_load %arg5[%c9_49, %c0_50] {strides = array<i32: 2, 1>} : memref<144x128xf32, #tpu.memory_space<vmem>>, vector<64x128xf32>
    %c768 = arith.constant 768 : index
    %c0_51 = arith.constant 0 : index
    %102 = vector.load %arg1[%c768, %c0_51] : memref<2560x128xf32, #tpu.memory_space<vmem>>, vector<128x128xf32>
    %cst_52 = arith.constant dense<0.000000e+00> : vector<64x128xf32>
    %103 = tpu.matmul %101, %102, %cst_52 {dimension_numbers = #tpu.dot_dimension_numbers<[1], [0], [0], [1], [0, 0, 1, 1], [], []>} : vector<64x128xf32>, vector<128x128xf32>, vector<64x128xf32> -> vector<64x128xf32>
    %104 = arith.addf %100, %103 : vector<64x128xf32>
    %c10_53 = arith.constant 10 : index
    %c0_54 = arith.constant 0 : index
    %105 = tpu.strided_load %arg5[%c10_53, %c0_54] {strides = array<i32: 2, 1>} : memref<144x128xf32, #tpu.memory_space<vmem>>, vector<64x128xf32>
    %c31_i32 = arith.constant 31 : i32
    %106 = vector.broadcast %c31_i32 : i32 to vector<64x128xi32>
    %107 = arith.cmpi eq, %89, %106 : vector<64x128xi32>
    %cst_55 = arith.constant 0.000000e+00 : f32
    %108 = vector.broadcast %cst_55 : f32 to vector<64x128xf32>
    %109 = arith.select %107, %108, %105 : vector<64x128xi1>, vector<64x128xf32>
    %c896 = arith.constant 896 : index
    %c0_56 = arith.constant 0 : index
    %110 = vector.load %arg1[%c896, %c0_56] : memref<2560x128xf32, #tpu.memory_space<vmem>>, vector<128x128xf32>
    %cst_57 = arith.constant dense<0.000000e+00> : vector<64x128xf32>
    %111 = tpu.matmul %109, %110, %cst_57 {dimension_numbers = #tpu.dot_dimension_numbers<[1], [0], [0], [1], [0, 0, 1, 1], [], []>} : vector<64x128xf32>, vector<128x128xf32>, vector<64x128xf32> -> vector<64x128xf32>
    %112 = arith.addf %104, %111 : vector<64x128xf32>
    %cst_58 = arith.constant dense<0.000000e+00> : vector<128xf32>
    %113 = vector.multi_reduction <add>, %112, %cst_58 [0] : vector<64x128xf32> to vector<128xf32>
    %114 = vector.shape_cast %113 : vector<128xf32> to vector<1x128xf32>
    %cst_59 = arith.constant 1.562500e-02 : f32
    %115 = vector.broadcast %cst_59 : f32 to vector<1x128xf32>
    %116 = arith.mulf %114, %115 : vector<1x128xf32>
    %117 = vector.broadcast %116 : vector<1x128xf32> to vector<64x128xf32>
    %118 = arith.subf %112, %117 : vector<64x128xf32>
    %119 = arith.mulf %118, %118 : vector<64x128xf32>
    %cst_60 = arith.constant dense<0.000000e+00> : vector<128xf32>
    %120 = vector.multi_reduction <add>, %119, %cst_60 [0] : vector<64x128xf32> to vector<128xf32>
    %121 = vector.shape_cast %120 : vector<128xf32> to vector<1x128xf32>
    %cst_61 = arith.constant 1.562500e-02 : f32
    %122 = vector.broadcast %cst_61 : f32 to vector<1x128xf32>
    %123 = arith.mulf %121, %122 : vector<1x128xf32>
    %c1 = arith.constant 1 : index
    %c0_62 = arith.constant 0 : index
    %124 = vector.load %arg2[%c1, %c0_62] : memref<10x128xf32, #tpu.memory_space<vmem>>, vector<1x128xf32>
    %c6 = arith.constant 6 : index
    %c0_63 = arith.constant 0 : index
    %125 = vector.load %arg2[%c6, %c0_63] : memref<10x128xf32, #tpu.memory_space<vmem>>, vector<1x128xf32>
    %cst_64 = arith.constant 9.99999974E-6 : f32
    %126 = vector.broadcast %cst_64 : f32 to vector<1x128xf32>
    %127 = arith.addf %123, %126 : vector<1x128xf32>
    %128 = math.rsqrt %127 : vector<1x128xf32>
    %129 = arith.mulf %124, %128 : vector<1x128xf32>
    %130 = arith.mulf %116, %129 : vector<1x128xf32>
    %131 = arith.subf %125, %130 : vector<1x128xf32>
    %132 = vector.broadcast %129 : vector<1x128xf32> to vector<64x128xf32>
    %133 = arith.mulf %112, %132 : vector<64x128xf32>
    %134 = vector.broadcast %131 : vector<1x128xf32> to vector<64x128xf32>
    %135 = arith.addf %133, %134 : vector<64x128xf32>
    %cst_65 = arith.constant 0.000000e+00 : f32
    %136 = vector.broadcast %cst_65 : f32 to vector<64x128xf32>
    %137 = arith.cmpf oge, %135, %136 : vector<64x128xf32>
    %cst_66 = arith.constant 2.000000e-01 : f32
    %138 = vector.broadcast %cst_66 : f32 to vector<64x128xf32>
    %139 = arith.mulf %138, %135 : vector<64x128xf32>
    %140 = arith.select %137, %135, %139 : vector<64x128xi1>, vector<64x128xf32>
    %cst_67 = arith.constant 0.000000e+00 : f32
    %141 = vector.broadcast %cst_67 : f32 to vector<1x128xf32>
    %c7_68 = arith.constant 7 : index
    %c0_69 = arith.constant 0 : index
    %142 = vector.load %arg6[%c7_68, %c0_69] : memref<80x128xf32, #tpu.memory_space<vmem>>, vector<1x128xf32>
    tpu.vector_store %arg6[%c7_68, %c0_69], %141 {strides = array<i32>} : memref<80x128xf32, #tpu.memory_space<vmem>>, vector<1x128xf32>,
    %c8_70 = arith.constant 8 : index
    %c0_71 = arith.constant 0 : index
    %143 = vector.load %arg6[%c8_70, %c0_71] : memref<80x128xf32, #tpu.memory_space<vmem>>, vector<64x128xf32>
    tpu.vector_store %arg6[%c8_70, %c0_71], %140 {strides = array<i32>} : memref<80x128xf32, #tpu.memory_space<vmem>>, vector<64x128xf32>,
    %cst_72 = arith.constant 0.000000e+00 : f32
    %144 = vector.broadcast %cst_72 : f32 to vector<1x128xf32>
    %c72 = arith.constant 72 : index
    %c0_73 = arith.constant 0 : index
    %145 = vector.load %arg6[%c72, %c0_73] : memref<80x128xf32, #tpu.memory_space<vmem>>, vector<1x128xf32>
    tpu.vector_store %arg6[%c72, %c0_73], %144 {strides = array<i32>} : memref<80x128xf32, #tpu.memory_space<vmem>>, vector<1x128xf32>,
    %146 = tpu.iota {dimensions = array<i32: 0>} : vector<32x128xi32>
    %c16_i32 = arith.constant 16 : i32
    %c0_i32_74 = arith.constant 0 : i32
    %147 = arith.cmpi eq, %c16_i32, %c0_i32_74 : i32
    %c1_i32_75 = arith.constant 1 : i32
    %148 = arith.select %147, %c1_i32_75, %c16_i32 : i32
    %149 = vector.broadcast %148 : i32 to vector<32x128xi32>
    %150 = arith.remsi %146, %149 : vector<32x128xi32>
    %c0_i32_76 = arith.constant 0 : i32
    %151 = vector.broadcast %c0_i32_76 : i32 to vector<32x128xi32>
    %152 = arith.cmpi ne, %150, %151 : vector<32x128xi32>
    %c0_i32_77 = arith.constant 0 : i32
    %153 = vector.broadcast %c0_i32_77 : i32 to vector<32x128xi32>
    %154 = arith.cmpi slt, %150, %153 : vector<32x128xi32>
    %c0_i32_78 = arith.constant 0 : i32
    %155 = arith.cmpi slt, %148, %c0_i32_78 : i32
    %156 = vector.broadcast %155 : i1 to vector<32x128xi1>
    %157 = vector.broadcast %156 : vector<32x128xi1> to vector<32x128xi1>
    %158 = arith.xori %154, %157 : vector<32x128xi1>
    %159 = arith.andi %158, %152 : vector<32x128xi1>
    %160 = vector.broadcast %148 : i32 to vector<32x128xi32>
    %161 = arith.addi %150, %160 : vector<32x128xi32>
    %162 = arith.select %159, %161, %150 : vector<32x128xi1>, vector<32x128xi32>
    %c7_79 = arith.constant 7 : index
    %c0_80 = arith.constant 0 : index
    %163 = tpu.strided_load %arg6[%c7_79, %c0_80] {strides = array<i32: 2, 1>} : memref<80x128xf32, #tpu.memory_space<vmem>>, vector<32x128xf32>
    %c0_i32_81 = arith.constant 0 : i32
    %164 = vector.broadcast %c0_i32_81 : i32 to vector<32x128xi32>
    %165 = arith.cmpi eq, %162, %164 : vector<32x128xi32>
    %cst_82 = arith.constant 0.000000e+00 : f32
    %166 = vector.broadcast %cst_82 : f32 to vector<32x128xf32>
    %167 = arith.select %165, %166, %163 : vector<32x128xi1>, vector<32x128xf32>
    %c1024 = arith.constant 1024 : index
    %c0_83 = arith.constant 0 : index
    %168 = vector.load %arg1[%c1024, %c0_83] : memref<2560x128xf32, #tpu.memory_space<vmem>>, vector<128x128xf32>
    %cst_84 = arith.constant dense<0.000000e+00> : vector<32x128xf32>
    %169 = tpu.matmul %167, %168, %cst_84 {dimension_numbers = #tpu.dot_dimension_numbers<[1], [0], [0], [1], [0, 0, 1, 1], [], []>} : vector<32x128xf32>, vector<128x128xf32>, vector<32x128xf32> -> vector<32x128xf32>
    %c8_85 = arith.constant 8 : index
    %c0_86 = arith.constant 0 : index
    %170 = tpu.strided_load %arg6[%c8_85, %c0_86] {strides = array<i32: 2, 1>} : memref<80x128xf32, #tpu.memory_space<vmem>>, vector<32x128xf32>
    %c1152 = arith.constant 1152 : index
    %c0_87 = arith.constant 0 : index
    %171 = vector.load %arg1[%c1152, %c0_87] : memref<2560x128xf32, #tpu.memory_space<vmem>>, vector<128x128xf32>
    %cst_88 = arith.constant dense<0.000000e+00> : vector<32x128xf32>
    %172 = tpu.matmul %170, %171, %cst_88 {dimension_numbers = #tpu.dot_dimension_numbers<[1], [0], [0], [1], [0, 0, 1, 1], [], []>} : vector<32x128xf32>, vector<128x128xf32>, vector<32x128xf32> -> vector<32x128xf32>
    %173 = arith.addf %169, %172 : vector<32x128xf32>
    %c9_89 = arith.constant 9 : index
    %c0_90 = arith.constant 0 : index
    %174 = tpu.strided_load %arg6[%c9_89, %c0_90] {strides = array<i32: 2, 1>} : memref<80x128xf32, #tpu.memory_space<vmem>>, vector<32x128xf32>
    %c1280 = arith.constant 1280 : index
    %c0_91 = arith.constant 0 : index
    %175 = vector.load %arg1[%c1280, %c0_91] : memref<2560x128xf32, #tpu.memory_space<vmem>>, vector<128x128xf32>
    %cst_92 = arith.constant dense<0.000000e+00> : vector<32x128xf32>
    %176 = tpu.matmul %174, %175, %cst_92 {dimension_numbers = #tpu.dot_dimension_numbers<[1], [0], [0], [1], [0, 0, 1, 1], [], []>} : vector<32x128xf32>, vector<128x128xf32>, vector<32x128xf32> -> vector<32x128xf32>
    %177 = arith.addf %173, %176 : vector<32x128xf32>
    %c10_93 = arith.constant 10 : index
    %c0_94 = arith.constant 0 : index
    %178 = tpu.strided_load %arg6[%c10_93, %c0_94] {strides = array<i32: 2, 1>} : memref<80x128xf32, #tpu.memory_space<vmem>>, vector<32x128xf32>
    %c15_i32 = arith.constant 15 : i32
    %179 = vector.broadcast %c15_i32 : i32 to vector<32x128xi32>
    %180 = arith.cmpi eq, %162, %179 : vector<32x128xi32>
    %cst_95 = arith.constant 0.000000e+00 : f32
    %181 = vector.broadcast %cst_95 : f32 to vector<32x128xf32>
    %182 = arith.select %180, %181, %178 : vector<32x128xi1>, vector<32x128xf32>
    %c1408 = arith.constant 1408 : index
    %c0_96 = arith.constant 0 : index
    %183 = vector.load %arg1[%c1408, %c0_96] : memref<2560x128xf32, #tpu.memory_space<vmem>>, vector<128x128xf32>
    %cst_97 = arith.constant dense<0.000000e+00> : vector<32x128xf32>
    %184 = tpu.matmul %182, %183, %cst_97 {dimension_numbers = #tpu.dot_dimension_numbers<[1], [0], [0], [1], [0, 0, 1, 1], [], []>} : vector<32x128xf32>, vector<128x128xf32>, vector<32x128xf32> -> vector<32x128xf32>
    %185 = arith.addf %177, %184 : vector<32x128xf32>
    %cst_98 = arith.constant dense<0.000000e+00> : vector<128xf32>
    %186 = vector.multi_reduction <add>, %185, %cst_98 [0] : vector<32x128xf32> to vector<128xf32>
    %187 = vector.shape_cast %186 : vector<128xf32> to vector<1x128xf32>
    %cst_99 = arith.constant 3.125000e-02 : f32
    %188 = vector.broadcast %cst_99 : f32 to vector<1x128xf32>
    %189 = arith.mulf %187, %188 : vector<1x128xf32>
    %190 = vector.broadcast %189 : vector<1x128xf32> to vector<32x128xf32>
    %191 = arith.subf %185, %190 : vector<32x128xf32>
    %192 = arith.mulf %191, %191 : vector<32x128xf32>
    %cst_100 = arith.constant dense<0.000000e+00> : vector<128xf32>
    %193 = vector.multi_reduction <add>, %192, %cst_100 [0] : vector<32x128xf32> to vector<128xf32>
    %194 = vector.shape_cast %193 : vector<128xf32> to vector<1x128xf32>
    %cst_101 = arith.constant 3.125000e-02 : f32
    %195 = vector.broadcast %cst_101 : f32 to vector<1x128xf32>
    %196 = arith.mulf %194, %195 : vector<1x128xf32>
    %c2 = arith.constant 2 : index
    %c0_102 = arith.constant 0 : index
    %197 = vector.load %arg2[%c2, %c0_102] : memref<10x128xf32, #tpu.memory_space<vmem>>, vector<1x128xf32>
    %c7_103 = arith.constant 7 : index
    %c0_104 = arith.constant 0 : index
    %198 = vector.load %arg2[%c7_103, %c0_104] : memref<10x128xf32, #tpu.memory_space<vmem>>, vector<1x128xf32>
    %cst_105 = arith.constant 9.99999974E-6 : f32
    %199 = vector.broadcast %cst_105 : f32 to vector<1x128xf32>
    %200 = arith.addf %196, %199 : vector<1x128xf32>
    %201 = math.rsqrt %200 : vector<1x128xf32>
    %202 = arith.mulf %197, %201 : vector<1x128xf32>
    %203 = arith.mulf %189, %202 : vector<1x128xf32>
    %204 = arith.subf %198, %203 : vector<1x128xf32>
    %205 = vector.broadcast %202 : vector<1x128xf32> to vector<32x128xf32>
    %206 = arith.mulf %185, %205 : vector<32x128xf32>
    %207 = vector.broadcast %204 : vector<1x128xf32> to vector<32x128xf32>
    %208 = arith.addf %206, %207 : vector<32x128xf32>
    %cst_106 = arith.constant 0.000000e+00 : f32
    %209 = vector.broadcast %cst_106 : f32 to vector<32x128xf32>
    %210 = arith.cmpf oge, %208, %209 : vector<32x128xf32>
    %cst_107 = arith.constant 2.000000e-01 : f32
    %211 = vector.broadcast %cst_107 : f32 to vector<32x128xf32>
    %212 = arith.mulf %211, %208 : vector<32x128xf32>
    %213 = arith.select %210, %208, %212 : vector<32x128xi1>, vector<32x128xf32>
    %cst_108 = arith.constant 0.000000e+00 : f32
    %214 = vector.broadcast %cst_108 : f32 to vector<1x128xf32>
    %c7_109 = arith.constant 7 : index
    %c0_110 = arith.constant 0 : index
    %215 = vector.load %arg7[%c7_109, %c0_110] : memref<48x128xf32, #tpu.memory_space<vmem>>, vector<1x128xf32>
    tpu.vector_store %arg7[%c7_109, %c0_110], %214 {strides = array<i32>} : memref<48x128xf32, #tpu.memory_space<vmem>>, vector<1x128xf32>,
    %c8_111 = arith.constant 8 : index
    %c0_112 = arith.constant 0 : index
    %216 = vector.load %arg7[%c8_111, %c0_112] : memref<48x128xf32, #tpu.memory_space<vmem>>, vector<32x128xf32>
    tpu.vector_store %arg7[%c8_111, %c0_112], %213 {strides = array<i32>} : memref<48x128xf32, #tpu.memory_space<vmem>>, vector<32x128xf32>,
    %cst_113 = arith.constant 0.000000e+00 : f32
    %217 = vector.broadcast %cst_113 : f32 to vector<1x128xf32>
    %c40 = arith.constant 40 : index
    %c0_114 = arith.constant 0 : index
    %218 = vector.load %arg7[%c40, %c0_114] : memref<48x128xf32, #tpu.memory_space<vmem>>, vector<1x128xf32>
    tpu.vector_store %arg7[%c40, %c0_114], %217 {strides = array<i32>} : memref<48x128xf32, #tpu.memory_space<vmem>>, vector<1x128xf32>,
    %219 = tpu.iota {dimensions = array<i32: 0>} : vector<16x128xi32>
    %c8_i32 = arith.constant 8 : i32
    %c0_i32_115 = arith.constant 0 : i32
    %220 = arith.cmpi eq, %c8_i32, %c0_i32_115 : i32
    %c1_i32_116 = arith.constant 1 : i32
    %221 = arith.select %220, %c1_i32_116, %c8_i32 : i32
    %222 = vector.broadcast %221 : i32 to vector<16x128xi32>
    %223 = arith.remsi %219, %222 : vector<16x128xi32>
    %c0_i32_117 = arith.constant 0 : i32
    %224 = vector.broadcast %c0_i32_117 : i32 to vector<16x128xi32>
    %225 = arith.cmpi ne, %223, %224 : vector<16x128xi32>
    %c0_i32_118 = arith.constant 0 : i32
    %226 = vector.broadcast %c0_i32_118 : i32 to vector<16x128xi32>
    %227 = arith.cmpi slt, %223, %226 : vector<16x128xi32>
    %c0_i32_119 = arith.constant 0 : i32
    %228 = arith.cmpi slt, %221, %c0_i32_119 : i32
    %229 = vector.broadcast %228 : i1 to vector<16x128xi1>
    %230 = vector.broadcast %229 : vector<16x128xi1> to vector<16x128xi1>
    %231 = arith.xori %227, %230 : vector<16x128xi1>
    %232 = arith.andi %231, %225 : vector<16x128xi1>
    %233 = vector.broadcast %221 : i32 to vector<16x128xi32>
    %234 = arith.addi %223, %233 : vector<16x128xi32>
    %235 = arith.select %232, %234, %223 : vector<16x128xi1>, vector<16x128xi32>
    %c7_120 = arith.constant 7 : index
    %c0_121 = arith.constant 0 : index
    %236 = tpu.strided_load %arg7[%c7_120, %c0_121] {strides = array<i32: 2, 1>} : memref<48x128xf32, #tpu.memory_space<vmem>>, vector<16x128xf32>
    %c0_i32_122 = arith.constant 0 : i32
    %237 = vector.broadcast %c0_i32_122 : i32 to vector<16x128xi32>
    %238 = arith.cmpi eq, %235, %237 : vector<16x128xi32>
    %cst_123 = arith.constant 0.000000e+00 : f32
    %239 = vector.broadcast %cst_123 : f32 to vector<16x128xf32>
    %240 = arith.select %238, %239, %236 : vector<16x128xi1>, vector<16x128xf32>
    %c1536 = arith.constant 1536 : index
    %c0_124 = arith.constant 0 : index
    %241 = vector.load %arg1[%c1536, %c0_124] : memref<2560x128xf32, #tpu.memory_space<vmem>>, vector<128x128xf32>
    %cst_125 = arith.constant dense<0.000000e+00> : vector<16x128xf32>
    %242 = tpu.matmul %240, %241, %cst_125 {dimension_numbers = #tpu.dot_dimension_numbers<[1], [0], [0], [1], [0, 0, 1, 1], [], []>} : vector<16x128xf32>, vector<128x128xf32>, vector<16x128xf32> -> vector<16x128xf32>
    %c8_126 = arith.constant 8 : index
    %c0_127 = arith.constant 0 : index
    %243 = tpu.strided_load %arg7[%c8_126, %c0_127] {strides = array<i32: 2, 1>} : memref<48x128xf32, #tpu.memory_space<vmem>>, vector<16x128xf32>
    %c1664 = arith.constant 1664 : index
    %c0_128 = arith.constant 0 : index
    %244 = vector.load %arg1[%c1664, %c0_128] : memref<2560x128xf32, #tpu.memory_space<vmem>>, vector<128x128xf32>
    %cst_129 = arith.constant dense<0.000000e+00> : vector<16x128xf32>
    %245 = tpu.matmul %243, %244, %cst_129 {dimension_numbers = #tpu.dot_dimension_numbers<[1], [0], [0], [1], [0, 0, 1, 1], [], []>} : vector<16x128xf32>, vector<128x128xf32>, vector<16x128xf32> -> vector<16x128xf32>
    %246 = arith.addf %242, %245 : vector<16x128xf32>
    %c9_130 = arith.constant 9 : index
    %c0_131 = arith.constant 0 : index
    %247 = tpu.strided_load %arg7[%c9_130, %c0_131] {strides = array<i32: 2, 1>} : memref<48x128xf32, #tpu.memory_space<vmem>>, vector<16x128xf32>
    %c1792 = arith.constant 1792 : index
    %c0_132 = arith.constant 0 : index
    %248 = vector.load %arg1[%c1792, %c0_132] : memref<2560x128xf32, #tpu.memory_space<vmem>>, vector<128x128xf32>
    %cst_133 = arith.constant dense<0.000000e+00> : vector<16x128xf32>
    %249 = tpu.matmul %247, %248, %cst_133 {dimension_numbers = #tpu.dot_dimension_numbers<[1], [0], [0], [1], [0, 0, 1, 1], [], []>} : vector<16x128xf32>, vector<128x128xf32>, vector<16x128xf32> -> vector<16x128xf32>
    %250 = arith.addf %246, %249 : vector<16x128xf32>
    %c10_134 = arith.constant 10 : index
    %c0_135 = arith.constant 0 : index
    %251 = tpu.strided_load %arg7[%c10_134, %c0_135] {strides = array<i32: 2, 1>} : memref<48x128xf32, #tpu.memory_space<vmem>>, vector<16x128xf32>
    %c7_i32 = arith.constant 7 : i32
    %252 = vector.broadcast %c7_i32 : i32 to vector<16x128xi32>
    %253 = arith.cmpi eq, %235, %252 : vector<16x128xi32>
    %cst_136 = arith.constant 0.000000e+00 : f32
    %254 = vector.broadcast %cst_136 : f32 to vector<16x128xf32>
    %255 = arith.select %253, %254, %251 : vector<16x128xi1>, vector<16x128xf32>
    %c1920 = arith.constant 1920 : index
    %c0_137 = arith.constant 0 : index
    %256 = vector.load %arg1[%c1920, %c0_137] : memref<2560x128xf32, #tpu.memory_space<vmem>>, vector<128x128xf32>
    %cst_138 = arith.constant dense<0.000000e+00> : vector<16x128xf32>
    %257 = tpu.matmul %255, %256, %cst_138 {dimension_numbers = #tpu.dot_dimension_numbers<[1], [0], [0], [1], [0, 0, 1, 1], [], []>} : vector<16x128xf32>, vector<128x128xf32>, vector<16x128xf32> -> vector<16x128xf32>
    %258 = arith.addf %250, %257 : vector<16x128xf32>
    %cst_139 = arith.constant dense<0.000000e+00> : vector<128xf32>
    %259 = vector.multi_reduction <add>, %258, %cst_139 [0] : vector<16x128xf32> to vector<128xf32>
    %260 = vector.shape_cast %259 : vector<128xf32> to vector<1x128xf32>
    %cst_140 = arith.constant 6.250000e-02 : f32
    %261 = vector.broadcast %cst_140 : f32 to vector<1x128xf32>
    %262 = arith.mulf %260, %261 : vector<1x128xf32>
    %263 = vector.broadcast %262 : vector<1x128xf32> to vector<16x128xf32>
    %264 = arith.subf %258, %263 : vector<16x128xf32>
    %265 = arith.mulf %264, %264 : vector<16x128xf32>
    %cst_141 = arith.constant dense<0.000000e+00> : vector<128xf32>
    %266 = vector.multi_reduction <add>, %265, %cst_141 [0] : vector<16x128xf32> to vector<128xf32>
    %267 = vector.shape_cast %266 : vector<128xf32> to vector<1x128xf32>
    %cst_142 = arith.constant 6.250000e-02 : f32
    %268 = vector.broadcast %cst_142 : f32 to vector<1x128xf32>
    %269 = arith.mulf %267, %268 : vector<1x128xf32>
    %c3 = arith.constant 3 : index
    %c0_143 = arith.constant 0 : index
    %270 = vector.load %arg2[%c3, %c0_143] : memref<10x128xf32, #tpu.memory_space<vmem>>, vector<1x128xf32>
    %c8_144 = arith.constant 8 : index
    %c0_145 = arith.constant 0 : index
    %271 = vector.load %arg2[%c8_144, %c0_145] : memref<10x128xf32, #tpu.memory_space<vmem>>, vector<1x128xf32>
    %cst_146 = arith.constant 9.99999974E-6 : f32
    %272 = vector.broadcast %cst_146 : f32 to vector<1x128xf32>
    %273 = arith.addf %269, %272 : vector<1x128xf32>
    %274 = math.rsqrt %273 : vector<1x128xf32>
    %275 = arith.mulf %270, %274 : vector<1x128xf32>
    %276 = arith.mulf %262, %275 : vector<1x128xf32>
    %277 = arith.subf %271, %276 : vector<1x128xf32>
    %278 = vector.broadcast %275 : vector<1x128xf32> to vector<16x128xf32>
    %279 = arith.mulf %258, %278 : vector<16x128xf32>
    %280 = vector.broadcast %277 : vector<1x128xf32> to vector<16x128xf32>
    %281 = arith.addf %279, %280 : vector<16x128xf32>
    %cst_147 = arith.constant 0.000000e+00 : f32
    %282 = vector.broadcast %cst_147 : f32 to vector<16x128xf32>
    %283 = arith.cmpf oge, %281, %282 : vector<16x128xf32>
    %cst_148 = arith.constant 2.000000e-01 : f32
    %284 = vector.broadcast %cst_148 : f32 to vector<16x128xf32>
    %285 = arith.mulf %284, %281 : vector<16x128xf32>
    %286 = arith.select %283, %281, %285 : vector<16x128xi1>, vector<16x128xf32>
    %cst_149 = arith.constant 0.000000e+00 : f32
    %287 = vector.broadcast %cst_149 : f32 to vector<1x128xf32>
    %c7_150 = arith.constant 7 : index
    %c0_151 = arith.constant 0 : index
    %288 = vector.load %arg8[%c7_150, %c0_151] : memref<32x128xf32, #tpu.memory_space<vmem>>, vector<1x128xf32>
    tpu.vector_store %arg8[%c7_150, %c0_151], %287 {strides = array<i32>} : memref<32x128xf32, #tpu.memory_space<vmem>>, vector<1x128xf32>,
    %c8_152 = arith.constant 8 : index
    %c0_153 = arith.constant 0 : index
    %289 = vector.load %arg8[%c8_152, %c0_153] : memref<32x128xf32, #tpu.memory_space<vmem>>, vector<16x128xf32>
    tpu.vector_store %arg8[%c8_152, %c0_153], %286 {strides = array<i32>} : memref<32x128xf32, #tpu.memory_space<vmem>>, vector<16x128xf32>,
    %cst_154 = arith.constant 0.000000e+00 : f32
    %290 = vector.broadcast %cst_154 : f32 to vector<1x128xf32>
    %c24 = arith.constant 24 : index
    %c0_155 = arith.constant 0 : index
    %291 = vector.load %arg8[%c24, %c0_155] : memref<32x128xf32, #tpu.memory_space<vmem>>, vector<1x128xf32>
    tpu.vector_store %arg8[%c24, %c0_155], %290 {strides = array<i32>} : memref<32x128xf32, #tpu.memory_space<vmem>>, vector<1x128xf32>,
    %292 = tpu.iota {dimensions = array<i32: 0>} : vector<8x128xi32>
    %c4_i32 = arith.constant 4 : i32
    %c0_i32_156 = arith.constant 0 : i32
    %293 = arith.cmpi eq, %c4_i32, %c0_i32_156 : i32
    %c1_i32_157 = arith.constant 1 : i32
    %294 = arith.select %293, %c1_i32_157, %c4_i32 : i32
    %295 = vector.broadcast %294 : i32 to vector<8x128xi32>
    %296 = arith.remsi %292, %295 : vector<8x128xi32>
    %c0_i32_158 = arith.constant 0 : i32
    %297 = vector.broadcast %c0_i32_158 : i32 to vector<8x128xi32>
    %298 = arith.cmpi ne, %296, %297 : vector<8x128xi32>
    %c0_i32_159 = arith.constant 0 : i32
    %299 = vector.broadcast %c0_i32_159 : i32 to vector<8x128xi32>
    %300 = arith.cmpi slt, %296, %299 : vector<8x128xi32>
    %c0_i32_160 = arith.constant 0 : i32
    %301 = arith.cmpi slt, %294, %c0_i32_160 : i32
    %302 = vector.broadcast %301 : i1 to vector<8x128xi1>
    %303 = vector.broadcast %302 : vector<8x128xi1> to vector<8x128xi1>
    %304 = arith.xori %300, %303 : vector<8x128xi1>
    %305 = arith.andi %304, %298 : vector<8x128xi1>
    %306 = vector.broadcast %294 : i32 to vector<8x128xi32>
    %307 = arith.addi %296, %306 : vector<8x128xi32>
    %308 = arith.select %305, %307, %296 : vector<8x128xi1>, vector<8x128xi32>
    %c7_161 = arith.constant 7 : index
    %c0_162 = arith.constant 0 : index
    %309 = tpu.strided_load %arg8[%c7_161, %c0_162] {strides = array<i32: 2, 1>} : memref<32x128xf32, #tpu.memory_space<vmem>>, vector<8x128xf32>
    %c0_i32_163 = arith.constant 0 : i32
    %310 = vector.broadcast %c0_i32_163 : i32 to vector<8x128xi32>
    %311 = arith.cmpi eq, %308, %310 : vector<8x128xi32>
    %cst_164 = arith.constant 0.000000e+00 : f32
    %312 = vector.broadcast %cst_164 : f32 to vector<8x128xf32>
    %313 = arith.select %311, %312, %309 : vector<8x128xi1>, vector<8x128xf32>
    %c2048 = arith.constant 2048 : index
    %c0_165 = arith.constant 0 : index
    %314 = vector.load %arg1[%c2048, %c0_165] : memref<2560x128xf32, #tpu.memory_space<vmem>>, vector<128x128xf32>
    %cst_166 = arith.constant dense<0.000000e+00> : vector<8x128xf32>
    %315 = tpu.matmul %313, %314, %cst_166 {dimension_numbers = #tpu.dot_dimension_numbers<[1], [0], [0], [1], [0, 0, 1, 1], [], []>} : vector<8x128xf32>, vector<128x128xf32>, vector<8x128xf32> -> vector<8x128xf32>
    %c8_167 = arith.constant 8 : index
    %c0_168 = arith.constant 0 : index
    %316 = tpu.strided_load %arg8[%c8_167, %c0_168] {strides = array<i32: 2, 1>} : memref<32x128xf32, #tpu.memory_space<vmem>>, vector<8x128xf32>
    %c2176 = arith.constant 2176 : index
    %c0_169 = arith.constant 0 : index
    %317 = vector.load %arg1[%c2176, %c0_169] : memref<2560x128xf32, #tpu.memory_space<vmem>>, vector<128x128xf32>
    %cst_170 = arith.constant dense<0.000000e+00> : vector<8x128xf32>
    %318 = tpu.matmul %316, %317, %cst_170 {dimension_numbers = #tpu.dot_dimension_numbers<[1], [0], [0], [1], [0, 0, 1, 1], [], []>} : vector<8x128xf32>, vector<128x128xf32>, vector<8x128xf32> -> vector<8x128xf32>
    %319 = arith.addf %315, %318 : vector<8x128xf32>
    %c9_171 = arith.constant 9 : index
    %c0_172 = arith.constant 0 : index
    %320 = tpu.strided_load %arg8[%c9_171, %c0_172] {strides = array<i32: 2, 1>} : memref<32x128xf32, #tpu.memory_space<vmem>>, vector<8x128xf32>
    %c2304 = arith.constant 2304 : index
    %c0_173 = arith.constant 0 : index
    %321 = vector.load %arg1[%c2304, %c0_173] : memref<2560x128xf32, #tpu.memory_space<vmem>>, vector<128x128xf32>
    %cst_174 = arith.constant dense<0.000000e+00> : vector<8x128xf32>
    %322 = tpu.matmul %320, %321, %cst_174 {dimension_numbers = #tpu.dot_dimension_numbers<[1], [0], [0], [1], [0, 0, 1, 1], [], []>} : vector<8x128xf32>, vector<128x128xf32>, vector<8x128xf32> -> vector<8x128xf32>
    %323 = arith.addf %319, %322 : vector<8x128xf32>
    %c10_175 = arith.constant 10 : index
    %c0_176 = arith.constant 0 : index
    %324 = tpu.strided_load %arg8[%c10_175, %c0_176] {strides = array<i32: 2, 1>} : memref<32x128xf32, #tpu.memory_space<vmem>>, vector<8x128xf32>
    %c3_i32 = arith.constant 3 : i32
    %325 = vector.broadcast %c3_i32 : i32 to vector<8x128xi32>
    %326 = arith.cmpi eq, %308, %325 : vector<8x128xi32>
    %cst_177 = arith.constant 0.000000e+00 : f32
    %327 = vector.broadcast %cst_177 : f32 to vector<8x128xf32>
    %328 = arith.select %326, %327, %324 : vector<8x128xi1>, vector<8x128xf32>
    %c2432 = arith.constant 2432 : index
    %c0_178 = arith.constant 0 : index
    %329 = vector.load %arg1[%c2432, %c0_178] : memref<2560x128xf32, #tpu.memory_space<vmem>>, vector<128x128xf32>
    %cst_179 = arith.constant dense<0.000000e+00> : vector<8x128xf32>
    %330 = tpu.matmul %328, %329, %cst_179 {dimension_numbers = #tpu.dot_dimension_numbers<[1], [0], [0], [1], [0, 0, 1, 1], [], []>} : vector<8x128xf32>, vector<128x128xf32>, vector<8x128xf32> -> vector<8x128xf32>
    %331 = arith.addf %323, %330 : vector<8x128xf32>
    %cst_180 = arith.constant dense<0.000000e+00> : vector<128xf32>
    %332 = vector.multi_reduction <add>, %331, %cst_180 [0] : vector<8x128xf32> to vector<128xf32>
    %333 = vector.shape_cast %332 : vector<128xf32> to vector<1x128xf32>
    %cst_181 = arith.constant 1.250000e-01 : f32
    %334 = vector.broadcast %cst_181 : f32 to vector<1x128xf32>
    %335 = arith.mulf %333, %334 : vector<1x128xf32>
    %336 = vector.broadcast %335 : vector<1x128xf32> to vector<8x128xf32>
    %337 = arith.subf %331, %336 : vector<8x128xf32>
    %338 = arith.mulf %337, %337 : vector<8x128xf32>
    %cst_182 = arith.constant dense<0.000000e+00> : vector<128xf32>
    %339 = vector.multi_reduction <add>, %338, %cst_182 [0] : vector<8x128xf32> to vector<128xf32>
    %340 = vector.shape_cast %339 : vector<128xf32> to vector<1x128xf32>
    %cst_183 = arith.constant 1.250000e-01 : f32
    %341 = vector.broadcast %cst_183 : f32 to vector<1x128xf32>
    %342 = arith.mulf %340, %341 : vector<1x128xf32>
    %c4 = arith.constant 4 : index
    %c0_184 = arith.constant 0 : index
    %343 = vector.load %arg2[%c4, %c0_184] : memref<10x128xf32, #tpu.memory_space<vmem>>, vector<1x128xf32>
    %c9_185 = arith.constant 9 : index
    %c0_186 = arith.constant 0 : index
    %344 = vector.load %arg2[%c9_185, %c0_186] : memref<10x128xf32, #tpu.memory_space<vmem>>, vector<1x128xf32>
    %cst_187 = arith.constant 9.99999974E-6 : f32
    %345 = vector.broadcast %cst_187 : f32 to vector<1x128xf32>
    %346 = arith.addf %342, %345 : vector<1x128xf32>
    %347 = math.rsqrt %346 : vector<1x128xf32>
    %348 = arith.mulf %343, %347 : vector<1x128xf32>
    %349 = arith.mulf %335, %348 : vector<1x128xf32>
    %350 = arith.subf %344, %349 : vector<1x128xf32>
    %351 = vector.broadcast %348 : vector<1x128xf32> to vector<8x128xf32>
    %352 = arith.mulf %331, %351 : vector<8x128xf32>
    %353 = vector.broadcast %350 : vector<1x128xf32> to vector<8x128xf32>
    %354 = arith.addf %352, %353 : vector<8x128xf32>
    %cst_188 = arith.constant 0.000000e+00 : f32
    %355 = vector.broadcast %cst_188 : f32 to vector<8x128xf32>
    %356 = arith.cmpf oge, %354, %355 : vector<8x128xf32>
    %cst_189 = arith.constant 2.000000e-01 : f32
    %357 = vector.broadcast %cst_189 : f32 to vector<8x128xf32>
    %358 = arith.mulf %357, %354 : vector<8x128xf32>
    %359 = arith.select %356, %354, %358 : vector<8x128xi1>, vector<8x128xf32>
    %cst_190 = arith.constant 0.000000e+00 : f32
    %360 = vector.broadcast %cst_190 : f32 to vector<1x128xf32>
    %c7_191 = arith.constant 7 : index
    %c0_192 = arith.constant 0 : index
    %361 = vector.load %arg9[%c7_191, %c0_192] : memref<24x128xf32, #tpu.memory_space<vmem>>, vector<1x128xf32>
    tpu.vector_store %arg9[%c7_191, %c0_192], %360 {strides = array<i32>} : memref<24x128xf32, #tpu.memory_space<vmem>>, vector<1x128xf32>,
    %c8_193 = arith.constant 8 : index
    %c0_194 = arith.constant 0 : index
    %362 = vector.load %arg9[%c8_193, %c0_194] : memref<24x128xf32, #tpu.memory_space<vmem>>, vector<8x128xf32>
    tpu.vector_store %arg9[%c8_193, %c0_194], %359 {strides = array<i32>} : memref<24x128xf32, #tpu.memory_space<vmem>>, vector<8x128xf32>,
    %cst_195 = arith.constant 0.000000e+00 : f32
    %363 = vector.broadcast %cst_195 : f32 to vector<1x128xf32>
    %c16 = arith.constant 16 : index
    %c0_196 = arith.constant 0 : index
    %364 = vector.load %arg9[%c16, %c0_196] : memref<24x128xf32, #tpu.memory_space<vmem>>, vector<1x128xf32>
    tpu.vector_store %arg9[%c16, %c0_196], %363 {strides = array<i32>} : memref<24x128xf32, #tpu.memory_space<vmem>>, vector<1x128xf32>,
    %c8_197 = arith.constant 8 : index
    %c0_198 = arith.constant 0 : index
    %365 = tpu.strided_load %arg9[%c8_197, %c0_198] {strides = array<i32: 4, 1>} : memref<24x128xf32, #tpu.memory_space<vmem>>, vector<2x128xf32>
    %c0_199 = arith.constant 0 : index
    %c0_200 = arith.constant 0 : index
    %366 = vector.load %arg3[%c0_199, %c0_200] : memref<512x128xf32, #tpu.memory_space<vmem>>, vector<128x128xf32>
    %cst_201 = arith.constant dense<0.000000e+00> : vector<2x128xf32>
    %367 = tpu.matmul %365, %366, %cst_201 {dimension_numbers = #tpu.dot_dimension_numbers<[1], [0], [0], [1], [0, 0, 1, 1], [], []>} : vector<2x128xf32>, vector<128x128xf32>, vector<2x128xf32> -> vector<2x128xf32>
    %c9_202 = arith.constant 9 : index
    %c0_203 = arith.constant 0 : index
    %368 = tpu.strided_load %arg9[%c9_202, %c0_203] {strides = array<i32: 4, 1>} : memref<24x128xf32, #tpu.memory_space<vmem>>, vector<2x128xf32>
    %c128_204 = arith.constant 128 : index
    %c0_205 = arith.constant 0 : index
    %369 = vector.load %arg3[%c128_204, %c0_205] : memref<512x128xf32, #tpu.memory_space<vmem>>, vector<128x128xf32>
    %cst_206 = arith.constant dense<0.000000e+00> : vector<2x128xf32>
    %370 = tpu.matmul %368, %369, %cst_206 {dimension_numbers = #tpu.dot_dimension_numbers<[1], [0], [0], [1], [0, 0, 1, 1], [], []>} : vector<2x128xf32>, vector<128x128xf32>, vector<2x128xf32> -> vector<2x128xf32>
    %371 = arith.addf %367, %370 : vector<2x128xf32>
    %c10_207 = arith.constant 10 : index
    %c0_208 = arith.constant 0 : index
    %372 = tpu.strided_load %arg9[%c10_207, %c0_208] {strides = array<i32: 4, 1>} : memref<24x128xf32, #tpu.memory_space<vmem>>, vector<2x128xf32>
    %c256_209 = arith.constant 256 : index
    %c0_210 = arith.constant 0 : index
    %373 = vector.load %arg3[%c256_209, %c0_210] : memref<512x128xf32, #tpu.memory_space<vmem>>, vector<128x128xf32>
    %cst_211 = arith.constant dense<0.000000e+00> : vector<2x128xf32>
    %374 = tpu.matmul %372, %373, %cst_211 {dimension_numbers = #tpu.dot_dimension_numbers<[1], [0], [0], [1], [0, 0, 1, 1], [], []>} : vector<2x128xf32>, vector<128x128xf32>, vector<2x128xf32> -> vector<2x128xf32>
    %375 = arith.addf %371, %374 : vector<2x128xf32>
    %c11 = arith.constant 11 : index
    %c0_212 = arith.constant 0 : index
    %376 = tpu.strided_load %arg9[%c11, %c0_212] {strides = array<i32: 4, 1>} : memref<24x128xf32, #tpu.memory_space<vmem>>, vector<2x128xf32>
    %c384_213 = arith.constant 384 : index
    %c0_214 = arith.constant 0 : index
    %377 = vector.load %arg3[%c384_213, %c0_214] : memref<512x128xf32, #tpu.memory_space<vmem>>, vector<128x128xf32>
    %cst_215 = arith.constant dense<0.000000e+00> : vector<2x128xf32>
    %378 = tpu.matmul %376, %377, %cst_215 {dimension_numbers = #tpu.dot_dimension_numbers<[1], [0], [0], [1], [0, 0, 1, 1], [], []>} : vector<2x128xf32>, vector<128x128xf32>, vector<2x128xf32> -> vector<2x128xf32>
    %379 = arith.addf %375, %378 : vector<2x128xf32>
    %c0_216 = arith.constant 0 : index
    %c0_217 = arith.constant 0 : index
    %380 = vector.load %arg4[%c0_216, %c0_217] : memref<2x128xf32, #tpu.memory_space<vmem>>, vector<2x128xf32>
    tpu.vector_store %arg4[%c0_216, %c0_217], %379 {strides = array<i32>} : memref<2x128xf32, #tpu.memory_space<vmem>>, vector<2x128xf32>,
    return
  }
}

</mosaic_0001>

<llo_original>
// kernel: encoder_forward.1
$region0: #{encoder_forward.1}
  #allocation0 [shape = 'u32[]', space=smem, size = 0x4, offset = 0x4, fixed_abs, tag = 'smem constant byte address 0x4 - core index']
  #allocation1 [shape = 'u32[144,128]{1,0:T(1,128)}', space=vmem, size = 0x12000, scoped, tag = 'internal scratch']
  #allocation2 [shape = 'f32[144,128]{1,0:T(8,128)}', space=vmem, size = 0x12000, scoped, tag = 'scratch operand']
  #allocation3 [shape = 'f32[80,128]{1,0:T(8,128)}', space=vmem, size = 0xa000, scoped, tag = 'scratch operand']
  #allocation4 [shape = 'f32[48,128]{1,0:T(8,128)}', space=vmem, size = 0x6000, scoped, tag = 'scratch operand']
  #allocation5 [shape = 'f32[32,128]{1,0:T(8,128)}', space=vmem, size = 0x4000, scoped, tag = 'scratch operand']
  #allocation6 [shape = 'f32[24,128]{1,0:T(8,128)}', space=vmem, size = 0x3000, scoped, tag = 'scratch operand']
  %s0 = inlined_call_operand.vmem [shape: f32[272,128], index: 0, kind: input, shape index: {}]
  %s1 = inlined_call_operand.hbm [shape: f32[2560,128], index: 1, kind: input, shape index: {}]
  %s2 = inlined_call_operand.hbm [shape: f32[10,128], index: 2, kind: input, shape index: {}]
  %s3 = inlined_call_operand.hbm [shape: f32[512,128], index: 3, kind: input, shape index: {}]
  %s4 = inlined_call_operand.vmem [shape: f32[2,128], index: 4, kind: output, shape index: {}]
  %s5 = sld [smem:[#allocation0]]
  $region38: #{encoder_forward.1} parent=0
    _
  %s7 = ssub.s32 1, %s5
  %s8 = scalar_select 0, %s7, %s5
  $region1: #{encoder_forward.1} parent=0
    #allocation7 [shape = 'u8[1310720]{0}', space=vmem, size = 0x140000, scoped, tag = 'input window, operand 1, single buffered']
    #allocation8 [shape = 's32[1]{0}', space=sflag, size = 0x4, scoped, tag = 'scoped memory for encoder_forward.1']
    #allocation9 [shape = 'u8[8192]{0}', space=vmem, size = 0x2000, scoped, tag = 'input window, operand 2, single buffered']
    #allocation10 [shape = 's32[1]{0}', space=sflag, size = 0x4, scoped, tag = 'scoped memory for encoder_forward.1']
    #allocation11 [shape = 'u8[262144]{0}', space=vmem, size = 0x40000, scoped, tag = 'input window, operand 3, single buffered']
    %9 = vsyncpa [#allocation8], 0
    %10 = vsyncpa [#allocation10], 0
    // Predicated region
    $region2: #{encoder_forward.1} parent=1 // pred_check
      _
    $region3: #{encoder_forward.1} parent=1 // pred_check_branch
      %12 = sbr.rel (0) target = $region5
    $region4: #{encoder_forward.1} parent=1 // pred_region
      _
    $region5: #{encoder_forward.1} parent=1 // pred_fallthru
      _
    // Predicated region
    $region6: #{encoder_forward.1} parent=1 // pred_check
      _
    $region7: #{encoder_forward.1} parent=1 // pred_check_branch
      %14 = sbr.rel (0) target = $region9
    $region8: #{encoder_forward.1} parent=1 // pred_region
      %s16 = ssub.s32 40960, 40960
      %17 = vsyncadd [#allocation8], %s16
      %s18 = sshll.u32 [#allocation7], 4
      %s19 = int_to_ptr.vmem [resolvable:$true] %s18
      %24 = dma.hbm_to_vmem [thread:$0]  %s1, 40960, %s19, [#allocation8], 128, 128, 8
    $region9: #{encoder_forward.1} parent=1 // pred_fallthru
      _
    // Predicated region
    $region10: #{encoder_forward.1} parent=1 // pred_check
      _
    $region11: #{encoder_forward.1} parent=1 // pred_check_branch
      %26 = sbr.rel (0) target = $region13
    $region12: #{encoder_forward.1} parent=1 // pred_region
      %s28 = ssub.s32 256, 256
      %29 = vsyncadd [#allocation10], %s28
      %s30 = sshll.u32 [#allocation9], 4
      %s31 = int_to_ptr.vmem [resolvable:$true] %s30
      %36 = dma.hbm_to_vmem [thread:$0]  %s2, 256, %s31, [#allocation10], 128, 128, 8
    $region13: #{encoder_forward.1} parent=1 // pred_fallthru
      _
    // Predicated region
    $region14: #{encoder_forward.1} parent=1 // pred_check
      _
    $region15: #{encoder_forward.1} parent=1 // pred_check_branch
      %38 = sbr.rel (0) target = $region17
    $region16: #{encoder_forward.1} parent=1 // pred_region
      %s40 = ssub.s32 8192, 8192
      %41 = vsyncadd [#allocation10], %s40
      %s42 = sshll.u32 [#allocation11], 4
      %s43 = int_to_ptr.vmem [resolvable:$true] %s42
      %48 = dma.hbm_to_vmem [thread:$0]  %s3, 8192, %s43, [#allocation10], 128, 128, 8
    $region17: #{encoder_forward.1} parent=1 // pred_fallthru
      _
    // Predicated region
    $region18: #{encoder_forward.1} parent=1 // pred_check
      _
    $region19: #{encoder_forward.1} parent=1 // pred_check_branch
      %50 = sbr.rel (0) target = $region21
    $region20: #{encoder_forward.1} parent=1 // pred_region
      %51 = dma.done [#allocation8], 40960
    $region21: #{encoder_forward.1} parent=1 // pred_fallthru
      _
    // Predicated region
    $region22: #{encoder_forward.1} parent=1 // pred_check
      _
    $region23: #{encoder_forward.1} parent=1 // pred_check_branch
      %53 = sbr.rel (0) target = $region25
    $region24: #{encoder_forward.1} parent=1 // pred_region
      %54 = dma.done [#allocation10], 256
    $region25: #{encoder_forward.1} parent=1 // pred_fallthru
      _
    // Predicated region
    $region26: #{encoder_forward.1} parent=1 // pred_check
      _
    $region27: #{encoder_forward.1} parent=1 // pred_check_branch
      %56 = sbr.rel (0) target = $region29
    $region28: #{encoder_forward.1} parent=1 // pred_region
      %57 = dma.done [#allocation10], 8192
    $region29: #{encoder_forward.1} parent=1 // pred_fallthru
      _
    %v58 = vlaneseq
    %v59 = vshrl.u32 %v58, 7
    %v60 = vadd.s32 %v59, 8
    %v61 = vadd.s32 %v59, 16
    %v62 = vadd.s32 %v59, 24
    %v63 = vadd.s32 %v59, 32
    %v64 = vadd.s32 %v59, 40
    %v65 = vadd.s32 %v59, 48
    %v66 = vadd.s32 %v59, 56
    %v67 = vadd.s32 %v59, 64
    %v68 = vadd.s32 %v59, 72
    %v69 = vadd.s32 %v59, 80
    %v70 = vadd.s32 %v59, 88
    %v71 = vadd.s32 %v59, 96
    %v72 = vadd.s32 %v59, 104
    %v73 = vadd.s32 %v59, 112
    %v74 = vadd.s32 %v59, 120
    %vm75 = vcmp.lt.s32.totalorder %v59, 0
    %v76 = vsub.s32 0, %v59
    %v77 = vsel %vm75, %v76, %v59
    %v78 = vshrl.u32 %v77, 6
    %v79 = vand.u32 %v77, 63
    %v80 = vsub.s32 0, %v79
    %v81 = vsel %vm75, %v80, %v79
    %vm82 = vcmp.lt.s32.totalorder %v60, 0
    %v83 = vsub.s32 0, %v60
    %v84 = vsel %vm82, %v83, %v60
    %v85 = vshrl.u32 %v84, 6
    %v86 = vand.u32 %v84, 63
    %v87 = vsub.s32 0, %v86
    %v88 = vsel %vm82, %v87, %v86
    %vm89 = vcmp.lt.s32.totalorder %v61, 0
    %v90 = vsub.s32 0, %v61
    %v91 = vsel %vm89, %v90, %v61
    %v92 = vshrl.u32 %v91, 6
    %v93 = vand.u32 %v91, 63
    %v94 = vsub.s32 0, %v93
    %v95 = vsel %vm89, %v94, %v93
    %vm96 = vcmp.lt.s32.totalorder %v62, 0
    %v97 = vsub.s32 0, %v62
    %v98 = vsel %vm96, %v97, %v62
    %v99 = vshrl.u32 %v98, 6
    %v100 = vand.u32 %v98, 63
    %v101 = vsub.s32 0, %v100
    %v102 = vsel %vm96, %v101, %v100
    %vm103 = vcmp.lt.s32.totalorder %v63, 0
    %v104 = vsub.s32 0, %v63
    %v105 = vsel %vm103, %v104, %v63
    %v106 = vshrl.u32 %v105, 6
    %v107 = vand.u32 %v105, 63
    %v108 = vsub.s32 0, %v107
    %v109 = vsel %vm103, %v108, %v107
    %vm110 = vcmp.lt.s32.totalorder %v64, 0
    %v111 = vsub.s32 0, %v64
    %v112 = vsel %vm110, %v111, %v64
    %v113 = vshrl.u32 %v112, 6
    %v114 = vand.u32 %v112, 63
    %v115 = vsub.s32 0, %v114
    %v116 = vsel %vm110, %v115, %v114
    %vm117 = vcmp.lt.s32.totalorder %v65, 0
    %v118 = vsub.s32 0, %v65
    %v119 = vsel %vm117, %v118, %v65
    %v120 = vshrl.u32 %v119, 6
    %v121 = vand.u32 %v119, 63
    %v122 = vsub.s32 0, %v121
    %v123 = vsel %vm117, %v122, %v121
    %vm124 = vcmp.lt.s32.totalorder %v66, 0
    %v125 = vsub.s32 0, %v66
    %v126 = vsel %vm124, %v125, %v66
    %v127 = vshrl.u32 %v126, 6
    %v128 = vand.u32 %v126, 63
    %v129 = vsub.s32 0, %v128
    %v130 = vsel %vm124, %v129, %v128
    %vm131 = vcmp.lt.s32.totalorder %v67, 0
    %v132 = vsub.s32 0, %v67
    %v133 = vsel %vm131, %v132, %v67
    %v134 = vshrl.u32 %v133, 6
    %v135 = vand.u32 %v133, 63
    %v136 = vsub.s32 0, %v135
    %v137 = vsel %vm131, %v136, %v135
    %vm138 = vcmp.lt.s32.totalorder %v68, 0
    %v139 = vsub.s32 0, %v68
    %v140 = vsel %vm138, %v139, %v68
    %v141 = vshrl.u32 %v140, 6
    %v142 = vand.u32 %v140, 63
    %v143 = vsub.s32 0, %v142
    %v144 = vsel %vm138, %v143, %v142
    %vm145 = vcmp.lt.s32.totalorder %v69, 0
    %v146 = vsub.s32 0, %v69
    %v147 = vsel %vm145, %v146, %v69
    %v148 = vshrl.u32 %v147, 6
    %v149 = vand.u32 %v147, 63
    %v150 = vsub.s32 0, %v149
    %v151 = vsel %vm145, %v150, %v149
    %vm152 = vcmp.lt.s32.totalorder %v70, 0
    %v153 = vsub.s32 0, %v70
    %v154 = vsel %vm152, %v153, %v70
    %v155 = vshrl.u32 %v154, 6
    %v156 = vand.u32 %v154, 63
    %v157 = vsub.s32 0, %v156
    %v158 = vsel %vm152, %v157, %v156
    %vm159 = vcmp.lt.s32.totalorder %v71, 0
    %v160 = vsub.s32 0, %v71
    %v161 = vsel %vm159, %v160, %v71
    %v162 = vshrl.u32 %v161, 6
    %v163 = vand.u32 %v161, 63
    %v164 = vsub.s32 0, %v163
    %v165 = vsel %vm159, %v164, %v163
    %vm166 = vcmp.lt.s32.totalorder %v72, 0
    %v167 = vsub.s32 0, %v72
    %v168 = vsel %vm166, %v167, %v72
    %v169 = vshrl.u32 %v168, 6
    %v170 = vand.u32 %v168, 63
    %v171 = vsub.s32 0, %v170
    %v172 = vsel %vm166, %v171, %v170
    %vm173 = vcmp.lt.s32.totalorder %v73, 0
    %v174 = vsub.s32 0, %v73
    %v175 = vsel %vm173, %v174, %v73
    %v176 = vshrl.u32 %v175, 6
    %v177 = vand.u32 %v175, 63
    %v178 = vsub.s32 0, %v177
    %v179 = vsel %vm173, %v178, %v177
    %vm180 = vcmp.lt.s32.totalorder %v74, 0
    %v181 = vsub.s32 0, %v74
    %v182 = vsel %vm180, %v181, %v74
    %v183 = vshrl.u32 %v182, 6
    %v184 = vand.u32 %v182, 63
    %v185 = vsub.s32 0, %v184
    %v186 = vsel %vm180, %v185, %v184
    %vm187 = vcmp.ne.s32.totalorder %v81, 0
    %vm188 = vcmp.ne.s32.totalorder %v88, 0
    %vm189 = vcmp.ne.s32.totalorder %v95, 0
    %vm190 = vcmp.ne.s32.totalorder %v102, 0
    %vm191 = vcmp.ne.s32.totalorder %v109, 0
    %vm192 = vcmp.ne.s32.totalorder %v116, 0
    %vm193 = vcmp.ne.s32.totalorder %v123, 0
    %vm194 = vcmp.ne.s32.totalorder %v130, 0
    %vm195 = vcmp.ne.s32.totalorder %v137, 0
    %vm196 = vcmp.ne.s32.totalorder %v144, 0
    %vm197 = vcmp.ne.s32.totalorder %v151, 0
    %vm198 = vcmp.ne.s32.totalorder %v158, 0
    %vm199 = vcmp.ne.s32.totalorder %v165, 0
    %vm200 = vcmp.ne.s32.totalorder %v172, 0
    %vm201 = vcmp.ne.s32.totalorder %v179, 0
    %vm202 = vcmp.ne.s32.totalorder %v186, 0
    %vm203 = vcmp.lt.s32.totalorder %v81, 0
    %vm204 = vcmp.lt.s32.totalorder %v88, 0
    %vm205 = vcmp.lt.s32.totalorder %v95, 0
    %vm206 = vcmp.lt.s32.totalorder %v102, 0
    %vm207 = vcmp.lt.s32.totalorder %v109, 0
    %vm208 = vcmp.lt.s32.totalorder %v116, 0
    %vm209 = vcmp.lt.s32.totalorder %v123, 0
    %vm210 = vcmp.lt.s32.totalorder %v130, 0
    %vm211 = vcmp.lt.s32.totalorder %v137, 0
    %vm212 = vcmp.lt.s32.totalorder %v144, 0
    %vm213 = vcmp.lt.s32.totalorder %v151, 0
    %vm214 = vcmp.lt.s32.totalorder %v158, 0
    %vm215 = vcmp.lt.s32.totalorder %v165, 0
    %vm216 = vcmp.lt.s32.totalorder %v172, 0
    %vm217 = vcmp.lt.s32.totalorder %v179, 0
    %vm218 = vcmp.lt.s32.totalorder %v186, 0
    %vm219 = vmand %vm203, %vm187
    %vm220 = vmand %vm204, %vm188
    %vm221 = vmand %vm205, %vm189
    %vm222 = vmand %vm206, %vm190
    %vm223 = vmand %vm207, %vm191
    %vm224 = vmand %vm208, %vm192
    %vm225 = vmand %vm209, %vm193
    %vm226 = vmand %vm210, %vm194
    %vm227 = vmand %vm211, %vm195
    %vm228 = vmand %vm212, %vm196
    %vm229 = vmand %vm213, %vm197
    %vm230 = vmand %vm214, %vm198
    %vm231 = vmand %vm215, %vm199
    %vm232 = vmand %vm216, %vm200
    %vm233 = vmand %vm217, %vm201
    %vm234 = vmand %vm218, %vm202
    %v235 = vadd.s32 %v81, 64
    %v236 = vadd.s32 %v88, 64
    %v237 = vadd.s32 %v95, 64
    %v238 = vadd.s32 %v102, 64
    %v239 = vadd.s32 %v109, 64
    %v240 = vadd.s32 %v116, 64
    %v241 = vadd.s32 %v123, 64
    %v242 = vadd.s32 %v130, 64
    %v243 = vadd.s32 %v137, 64
    %v244 = vadd.s32 %v144, 64
    %v245 = vadd.s32 %v151, 64
    %v246 = vadd.s32 %v158, 64
    %v247 = vadd.s32 %v165, 64
    %v248 = vadd.s32 %v172, 64
    %v249 = vadd.s32 %v179, 64
    %v250 = vadd.s32 %v186, 64
    %v251 = vsel %vm219, %v235, %v81
    %v252 = vsel %vm220, %v236, %v88
    %v253 = vsel %vm221, %v237, %v95
    %v254 = vsel %vm222, %v238, %v102
    %v255 = vsel %vm223, %v239, %v109
    %v256 = vsel %vm224, %v240, %v116
    %v257 = vsel %vm225, %v241, %v123
    %v258 = vsel %vm226, %v242, %v130
    %v259 = vsel %vm227, %v243, %v137
    %v260 = vsel %vm228, %v244, %v144
    %v261 = vsel %vm229, %v245, %v151
    %v262 = vsel %vm230, %v246, %v158
    %v263 = vsel %vm231, %v247, %v165
    %v264 = vsel %vm232, %v248, %v172
    %v265 = vsel %vm233, %v249, %v179
    %v266 = vsel %vm234, %v250, %v186
    %s267 = scalar_lea.vmem %s0, 7
    %v268 = vld [vmem:[%s267] ss:$2 sm:$0xff]
    %s269 = scalar_lea.vmem %s0, 23
    %v270 = vld [vmem:[%s269] ss:$2 sm:$0xff]
    %s271 = scalar_lea.vmem %s0, 39
    %v272 = vld [vmem:[%s271] ss:$2 sm:$0xff]
    %s273 = scalar_lea.vmem %s0, 55
    %v274 = vld [vmem:[%s273] ss:$2 sm:$0xff]
    %s275 = scalar_lea.vmem %s0, 71
    %v276 = vld [vmem:[%s275] ss:$2 sm:$0xff]
    %s277 = scalar_lea.vmem %s0, 87
    %v278 = vld [vmem:[%s277] ss:$2 sm:$0xff]
    %s279 = scalar_lea.vmem %s0, 103
    %v280 = vld [vmem:[%s279] ss:$2 sm:$0xff]
    %s281 = scalar_lea.vmem %s0, 119
    %v282 = vld [vmem:[%s281] ss:$2 sm:$0xff]
    %s283 = scalar_lea.vmem %s0, 135
    %v284 = vld [vmem:[%s283] ss:$2 sm:$0xff]
    %s285 = scalar_lea.vmem %s0, 151
    %v286 = vld [vmem:[%s285] ss:$2 sm:$0xff]
    %s287 = scalar_lea.vmem %s0, 167
    %v288 = vld [vmem:[%s287] ss:$2 sm:$0xff]
    %s289 = scalar_lea.vmem %s0, 183
    %v290 = vld [vmem:[%s289] ss:$2 sm:$0xff]
    %s291 = scalar_lea.vmem %s0, 199
    %v292 = vld [vmem:[%s291] ss:$2 sm:$0xff]
    %s293 = scalar_lea.vmem %s0, 215
    %v294 = vld [vmem:[%s293] ss:$2 sm:$0xff]
    %s295 = scalar_lea.vmem %s0, 231
    %v296 = vld [vmem:[%s295] ss:$2 sm:$0xff]
    %s297 = scalar_lea.vmem %s0, 247
    %v298 = vld [vmem:[%s297] ss:$2 sm:$0xff]
    %vm299 = vcmp.eq.s32.totalorder %v251, 0
    %vm300 = vcmp.eq.s32.totalorder %v252, 0
    %vm301 = vcmp.eq.s32.totalorder %v253, 0
    %vm302 = vcmp.eq.s32.totalorder %v254, 0
    %vm303 = vcmp.eq.s32.totalorder %v255, 0
    %vm304 = vcmp.eq.s32.totalorder %v256, 0
    %vm305 = vcmp.eq.s32.totalorder %v257, 0
    %vm306 = vcmp.eq.s32.totalorder %v258, 0
    %vm307 = vcmp.eq.s32.totalorder %v259, 0
    %vm308 = vcmp.eq.s32.totalorder %v260, 0
    %vm309 = vcmp.eq.s32.totalorder %v261, 0
    %vm310 = vcmp.eq.s32.totalorder %v262, 0
    %vm311 = vcmp.eq.s32.totalorder %v263, 0
    %vm312 = vcmp.eq.s32.totalorder %v264, 0
    %vm313 = vcmp.eq.s32.totalorder %v265, 0
    %vm314 = vcmp.eq.s32.totalorder %v266, 0
    %v315 = vsel %vm299, 0.0, %v268
    %v316 = vsel %vm300, 0.0, %v270
    %v317 = vsel %vm301, 0.0, %v272
    %v318 = vsel %vm302, 0.0, %v274
    %v319 = vsel %vm303, 0.0, %v276
    %v320 = vsel %vm304, 0.0, %v278
    %v321 = vsel %vm305, 0.0, %v280
    %v322 = vsel %vm306, 0.0, %v282
    %v323 = vsel %vm307, 0.0, %v284
    %v324 = vsel %vm308, 0.0, %v286
    %v325 = vsel %vm309, 0.0, %v288
    %v326 = vsel %vm310, 0.0, %v290
    %v327 = vsel %vm311, 0.0, %v292
    %v328 = vsel %vm312, 0.0, %v294
    %v329 = vsel %vm313, 0.0, %v296
    %v330 = vsel %vm314, 0.0, %v298
    %v331 = vld [vmem:[#allocation7] sm:$0xff]
    %v332 = vld [vmem:[#allocation7 + $0x8] sm:$0xff]
    %v333 = vld [vmem:[#allocation7 + $0x10] sm:$0xff]
    %v334 = vld [vmem:[#allocation7 + $0x18] sm:$0xff]
    %v335 = vld [vmem:[#allocation7 + $0x20] sm:$0xff]
    %v336 = vld [vmem:[#allocation7 + $0x28] sm:$0xff]
    %v337 = vld [vmem:[#allocation7 + $0x30] sm:$0xff]
    %v338 = vld [vmem:[#allocation7 + $0x38] sm:$0xff]
    %v339 = vld [vmem:[#allocation7 + $0x40] sm:$0xff]
    %v340 = vld [vmem:[#allocation7 + $0x48] sm:$0xff]
    %v341 = vld [vmem:[#allocation7 + $0x50] sm:$0xff]
    %v342 = vld [vmem:[#allocation7 + $0x58] sm:$0xff]
    %v343 = vld [vmem:[#allocation7 + $0x60] sm:$0xff]
    %v344 = vld [vmem:[#allocation7 + $0x68] sm:$0xff]
    %v345 = vld [vmem:[#allocation7 + $0x70] sm:$0xff]
    %v346 = vld [vmem:[#allocation7 + $0x78] sm:$0xff]
    %s347 = scalar_lea.vmem %s0, 8
    %v348 = vld [vmem:[%s347] ss:$2 sm:$0xff]
    %s349 = scalar_lea.vmem %s0, 24
    %v350 = vld [vmem:[%s349] ss:$2 sm:$0xff]
    %s351 = scalar_lea.vmem %s0, 40
    %v352 = vld [vmem:[%s351] ss:$2 sm:$0xff]
    %s353 = scalar_lea.vmem %s0, 56
    %v354 = vld [vmem:[%s353] ss:$2 sm:$0xff]
    %s355 = scalar_lea.vmem %s0, 72
    %v356 = vld [vmem:[%s355] ss:$2 sm:$0xff]
    %s357 = scalar_lea.vmem %s0, 88
    %v358 = vld [vmem:[%s357] ss:$2 sm:$0xff]
    %s359 = scalar_lea.vmem %s0, 104
    %v360 = vld [vmem:[%s359] ss:$2 sm:$0xff]
    %s361 = scalar_lea.vmem %s0, 120
    %v362 = vld [vmem:[%s361] ss:$2 sm:$0xff]
    %s363 = scalar_lea.vmem %s0, 136
    %v364 = vld [vmem:[%s363] ss:$2 sm:$0xff]
    %s365 = scalar_lea.vmem %s0, 152
    %v366 = vld [vmem:[%s365] ss:$2 sm:$0xff]
    %s367 = scalar_lea.vmem %s0, 168
    %v368 = vld [vmem:[%s367] ss:$2 sm:$0xff]
    %s369 = scalar_lea.vmem %s0, 184
    %v370 = vld [vmem:[%s369] ss:$2 sm:$0xff]
    %s371 = scalar_lea.vmem %s0, 200
    %v372 = vld [vmem:[%s371] ss:$2 sm:$0xff]
    %s373 = scalar_lea.vmem %s0, 216
    %v374 = vld [vmem:[%s373] ss:$2 sm:$0xff]
    %s375 = scalar_lea.vmem %s0, 232
    %v376 = vld [vmem:[%s375] ss:$2 sm:$0xff]
    %s377 = scalar_lea.vmem %s0, 248
    %v378 = vld [vmem:[%s377] ss:$2 sm:$0xff]
    %v379 = vld [vmem:[#allocation7 + $0x80] sm:$0xff]
    %v380 = vld [vmem:[#allocation7 + $0x88] sm:$0xff]
    %v381 = vld [vmem:[#allocation7 + $0x90] sm:$0xff]
    %v382 = vld [vmem:[#allocation7 + $0x98] sm:$0xff]
    %v383 = vld [vmem:[#allocation7 + $0xa0] sm:$0xff]
    %v384 = vld [vmem:[#allocation7 + $0xa8] sm:$0xff]
    %v385 = vld [vmem:[#allocation7 + $0xb0] sm:$0xff]
    %v386 = vld [vmem:[#allocation7 + $0xb8] sm:$0xff]
    %v387 = vld [vmem:[#allocation7 + $0xc0] sm:$0xff]
    %v388 = vld [vmem:[#allocation7 + $0xc8] sm:$0xff]
    %v389 = vld [vmem:[#allocation7 + $0xd0] sm:$0xff]
    %v390 = vld [vmem:[#allocation7 + $0xd8] sm:$0xff]
    %v391 = vld [vmem:[#allocation7 + $0xe0] sm:$0xff]
    %v392 = vld [vmem:[#allocation7 + $0xe8] sm:$0xff]
    %v393 = vld [vmem:[#allocation7 + $0xf0] sm:$0xff]
    %v394 = vld [vmem:[#allocation7 + $0xf8] sm:$0xff]
    %395 = vmatprep.subr.mxu0 0.0
    %396 = vmatpush1.msra.mxu0 %v379
    %397 = vmatprep.subr.mxu0 0.0
    %398 = vmatpush1.msra.mxu0 %v380
    %399 = vmatprep.subr.mxu0 0.0
    %400 = vmatpush1.msra.mxu0 %v381
    %401 = vmatprep.subr.mxu0 0.0
    %402 = vmatpush1.msra.mxu0 %v382
    %403 = vmatprep.subr.mxu0 0.0
    %404 = vmatpush1.msra.mxu0 %v383
    %405 = vmatprep.subr.mxu0 0.0
    %406 = vmatpush1.msra.mxu0 %v384
    %407 = vmatprep.subr.mxu0 0.0
    %408 = vmatpush1.msra.mxu0 %v385
    %409 = vmatprep.subr.mxu0 0.0
    %410 = vmatpush1.msra.mxu0 %v386
    %411 = vmatprep.subr.mxu0 0.0
    %412 = vmatpush1.msra.mxu0 %v387
    %413 = vmatprep.subr.mxu0 0.0
    %414 = vmatpush1.msra.mxu0 %v388
    %415 = vmatprep.subr.mxu0 0.0
    %416 = vmatpush1.msra.mxu0 %v389
    %417 = vmatprep.subr.mxu0 0.0
    %418 = vmatpush1.msra.mxu0 %v390
    %419 = vmatprep.subr.mxu0 0.0
    %420 = vmatpush1.msra.mxu0 %v391
    %421 = vmatprep.subr.mxu0 0.0
    %422 = vmatpush1.msra.mxu0 %v392
    %423 = vmatprep.subr.mxu0 0.0
    %424 = vmatpush1.msra.mxu0 %v393
    %425 = vmatprep.subr.mxu0 0.0
    %426 = vmatpush1.msra.mxu0 %v394
    %427 = vmatprep.subr.mxu0 0.0
    %428 = vmatpush1.msra.mxu0 0.0
    %429 = vmatprep.subr.mxu0 0.0
    %430 = vmatpush1.msra.mxu0 0.0
    %431 = vmatprep.subr.mxu0 0.0
    %432 = vmatpush1.msra.mxu0 0.0
    %433 = vmatprep.subr.mxu0 0.0
    %434 = vmatpush1.msra.mxu0 0.0
    %435 = vmatprep.subr.mxu0 0.0
    %436 = vmatpush1.msra.mxu0 0.0
    %437 = vmatprep.subr.mxu0 0.0
    %438 = vmatpush1.msra.mxu0 0.0
    %439 = vmatprep.subr.mxu0 0.0
    %440 = vmatpush1.msra.mxu0 0.0
    %441 = vmatprep.subr.mxu0 0.0
    %442 = vmatpush1.msra.mxu0 0.0
    %443 = vmatprep.subr.mxu0 0.0
    %444 = vmatpush1.msra.mxu0 0.0
    %445 = vmatprep.subr.mxu0 0.0
    %446 = vmatpush1.msra.mxu0 0.0
    %447 = vmatprep.subr.mxu0 0.0
    %448 = vmatpush1.msra.mxu0 0.0
    %449 = vmatprep.subr.mxu0 0.0
    %450 = vmatpush1.msra.mxu0 0.0
    %451 = vmatprep.subr.mxu0 0.0
    %452 = vmatpush1.msra.mxu0 0.0
    %453 = vmatprep.subr.mxu0 0.0
    %454 = vmatpush1.msra.mxu0 0.0
    %455 = vmatprep.subr.mxu0 0.0
    %456 = vmatpush1.msra.mxu0 0.0
    %457 = vmatprep.subr.mxu0 0.0
    %458 = vmatpush1.msra.mxu0 0.0
    %459 = vmatprep.mubr.f32.mxu0 0.0
    %460 = vmatmul.mubr.f32.gmra.mrb[0].mxu0 %v348
    %v461 = vpop.f32.mrb[0].mxu0
    %v462 = vadd.f32 0.0, %v461
    %v463 = vpop.f32.mrb[0].mxu0
    %464 = vmatprep.mubr.f32.mxu0 0.0
    %465 = vmatmul.mubr.f32.gmra.mrb[0].mxu0 %v350
    %v466 = vpop.f32.mrb[0].mxu0
    %v467 = vadd.f32 0.0, %v466
    %v468 = vpop.f32.mrb[0].mxu0
    %469 = vmatprep.mubr.f32.mxu0 0.0
    %470 = vmatmul.mubr.f32.gmra.mrb[0].mxu0 %v352
    %v471 = vpop.f32.mrb[0].mxu0
    %v472 = vadd.f32 0.0, %v471
    %v473 = vpop.f32.mrb[0].mxu0
    %474 = vmatprep.mubr.f32.mxu0 0.0
    %475 = vmatmul.mubr.f32.gmra.mrb[0].mxu0 %v354
    %v476 = vpop.f32.mrb[0].mxu0
    %v477 = vadd.f32 0.0, %v476
    %v478 = vpop.f32.mrb[0].mxu0
    %479 = vmatprep.mubr.f32.mxu0 0.0
    %480 = vmatmul.mubr.f32.gmra.mrb[0].mxu0 %v356
    %v481 = vpop.f32.mrb[0].mxu0
    %v482 = vadd.f32 0.0, %v481
    %v483 = vpop.f32.mrb[0].mxu0
    %484 = vmatprep.mubr.f32.mxu0 0.0
    %485 = vmatmul.mubr.f32.gmra.mrb[0].mxu0 %v358
    %v486 = vpop.f32.mrb[0].mxu0
    %v487 = vadd.f32 0.0, %v486
    %v488 = vpop.f32.mrb[0].mxu0
    %489 = vmatprep.mubr.f32.mxu0 0.0
    %490 = vmatmul.mubr.f32.gmra.mrb[0].mxu0 %v360
    %v491 = vpop.f32.mrb[0].mxu0
    %v492 = vadd.f32 0.0, %v491
    %v493 = vpop.f32.mrb[0].mxu0
    %494 = vmatprep.mubr.f32.mxu0 0.0
    %495 = vmatmul.mubr.f32.gmra.mrb[0].mxu0 %v362
    %v496 = vpop.f32.mrb[0].mxu0
    %v497 = vadd.f32 0.0, %v496
    %v498 = vpop.f32.mrb[0].mxu0
    %499 = vmatprep.mubr.f32.mxu0 0.0
    %500 = vmatmul.mubr.f32.gmra.mrb[0].mxu0 %v364
    %v501 = vpop.f32.mrb[0].mxu0
    %v502 = vadd.f32 0.0, %v501
    %v503 = vpop.f32.mrb[0].mxu0
    %504 = vmatprep.mubr.f32.mxu0 0.0
    %505 = vmatmul.mubr.f32.gmra.mrb[0].mxu0 %v366
    %v506 = vpop.f32.mrb[0].mxu0
    %v507 = vadd.f32 0.0, %v506
    %v508 = vpop.f32.mrb[0].mxu0
    %509 = vmatprep.mubr.f32.mxu0 0.0
    %510 = vmatmul.mubr.f32.gmra.mrb[0].mxu0 %v368
    %v511 = vpop.f32.mrb[0].mxu0
    %v512 = vadd.f32 0.0, %v511
    %v513 = vpop.f32.mrb[0].mxu0
    %514 = vmatprep.mubr.f32.mxu0 0.0
    %515 = vmatmul.mubr.f32.gmra.mrb[0].mxu0 %v370
    %v516 = vpop.f32.mrb[0].mxu0
    %v517 = vadd.f32 0.0, %v516
    %v518 = vpop.f32.mrb[0].mxu0
    %519 = vmatprep.mubr.f32.mxu0 0.0
    %520 = vmatmul.mubr.f32.gmra.mrb[0].mxu0 %v372
    %v521 = vpop.f32.mrb[0].mxu0
    %v522 = vadd.f32 0.0, %v521
    %v523 = vpop.f32.mrb[0].mxu0
    %524 = vmatprep.mubr.f32.mxu0 0.0
    %525 = vmatmul.mubr.f32.gmra.mrb[0].mxu0 %v374
    %v526 = vpop.f32.mrb[0].mxu0
    %v527 = vadd.f32 0.0, %v526
    %v528 = vpop.f32.mrb[0].mxu0
    %529 = vmatprep.mubr.f32.mxu0 0.0
    %530 = vmatmul.mubr.f32.gmra.mrb[0].mxu0 %v376
    %v531 = vpop.f32.mrb[0].mxu0
    %v532 = vadd.f32 0.0, %v531
    %v533 = vpop.f32.mrb[0].mxu0
    %534 = vmatprep.mubr.f32.mxu0 0.0
    %535 = vmatmul.mubr.f32.gmra.mrb[0].mxu0 %v378
    %v536 = vpop.f32.mrb[0].mxu0
    %v537 = vadd.f32 0.0, %v536
    %v538 = vpop.f32.mrb[0].mxu0
    %539 = vdwg.mxu0
    %540 = vmatprep.subr.mxu0 0.0
    %541 = vmatpush1.msra.mxu0 %v331
    %542 = vmatprep.subr.mxu0 0.0
    %543 = vmatpush1.msra.mxu0 %v332
    %544 = vmatprep.subr.mxu0 0.0
    %545 = vmatpush1.msra.mxu0 %v333
    %546 = vmatprep.subr.mxu0 0.0
    %547 = vmatpush1.msra.mxu0 %v334
    %548 = vmatprep.subr.mxu0 0.0
    %549 = vmatpush1.msra.mxu0 %v335
    %550 = vmatprep.subr.mxu0 0.0
    %551 = vmatpush1.msra.mxu0 %v336
    %552 = vmatprep.subr.mxu0 0.0
    %553 = vmatpush1.msra.mxu0 %v337
    %554 = vmatprep.subr.mxu0 0.0
    %555 = vmatpush1.msra.mxu0 %v338
    %556 = vmatprep.subr.mxu0 0.0
    %557 = vmatpush1.msra.mxu0 %v339
    %558 = vmatprep.subr.mxu0 0.0
    %559 = vmatpush1.msra.mxu0 %v340
    %560 = vmatprep.subr.mxu0 0.0
    %561 = vmatpush1.msra.mxu0 %v341
    %562 = vmatprep.subr.mxu0 0.0
    %563 = vmatpush1.msra.mxu0 %v342
    %564 = vmatprep.subr.mxu0 0.0
    %565 = vmatpush1.msra.mxu0 %v343
    %566 = vmatprep.subr.mxu0 0.0
    %567 = vmatpush1.msra.mxu0 %v344
    %568 = vmatprep.subr.mxu0 0.0
    %569 = vmatpush1.msra.mxu0 %v345
    %570 = vmatprep.subr.mxu0 0.0
    %571 = vmatpush1.msra.mxu0 %v346
    %572 = vmatprep.subr.mxu0 0.0
    %573 = vmatpush1.msra.mxu0 0.0
    %574 = vmatprep.subr.mxu0 0.0
    %575 = vmatpush1.msra.mxu0 0.0
    %576 = vmatprep.subr.mxu0 0.0
    %577 = vmatpush1.msra.mxu0 0.0
    %578 = vmatprep.subr.mxu0 0.0
    %579 = vmatpush1.msra.mxu0 0.0
    %580 = vmatprep.subr.mxu0 0.0
    %581 = vmatpush1.msra.mxu0 0.0
    %582 = vmatprep.subr.mxu0 0.0
    %583 = vmatpush1.msra.mxu0 0.0
    %584 = vmatprep.subr.mxu0 0.0
    %585 = vmatpush1.msra.mxu0 0.0
    %586 = vmatprep.subr.mxu0 0.0
    %587 = vmatpush1.msra.mxu0 0.0
    %588 = vmatprep.subr.mxu0 0.0
    %589 = vmatpush1.msra.mxu0 0.0
    %590 = vmatprep.subr.mxu0 0.0
    %591 = vmatpush1.msra.mxu0 0.0
    %592 = vmatprep.subr.mxu0 0.0
    %593 = vmatpush1.msra.mxu0 0.0
    %594 = vmatprep.subr.mxu0 0.0
    %595 = vmatpush1.msra.mxu0 0.0
    %596 = vmatprep.subr.mxu0 0.0
    %597 = vmatpush1.msra.mxu0 0.0
    %598 = vmatprep.subr.mxu0 0.0
    %599 = vmatpush1.msra.mxu0 0.0
    %600 = vmatprep.subr.mxu0 0.0
    %601 = vmatpush1.msra.mxu0 0.0
    %602 = vmatprep.subr.mxu0 0.0
    %603 = vmatpush1.msra.mxu0 0.0
    %604 = vmatprep.mubr.f32.mxu0 0.0
    %605 = vmatmul.mubr.f32.gmra.mrb[0].mxu0 %v315
    %v606 = vpop.f32.mrb[0].mxu0
    %v607 = vadd.f32 %v462, %v606
    %v608 = vpop.f32.mrb[0].mxu0
    %609 = vmatprep.mubr.f32.mxu0 0.0
    %610 = vmatmul.mubr.f32.gmra.mrb[0].mxu0 %v316
    %v611 = vpop.f32.mrb[0].mxu0
    %v612 = vadd.f32 %v467, %v611
    %v613 = vpop.f32.mrb[0].mxu0
    %614 = vmatprep.mubr.f32.mxu0 0.0
    %615 = vmatmul.mubr.f32.gmra.mrb[0].mxu0 %v317
    %v616 = vpop.f32.mrb[0].mxu0
    %v617 = vadd.f32 %v472, %v616
    %v618 = vpop.f32.mrb[0].mxu0
    %619 = vmatprep.mubr.f32.mxu0 0.0
    %620 = vmatmul.mubr.f32.gmra.mrb[0].mxu0 %v318
    %v621 = vpop.f32.mrb[0].mxu0
    %v622 = vadd.f32 %v477, %v621
    %v623 = vpop.f32.mrb[0].mxu0
    %624 = vmatprep.mubr.f32.mxu0 0.0
    %625 = vmatmul.mubr.f32.gmra.mrb[0].mxu0 %v319
    %v626 = vpop.f32.mrb[0].mxu0
    %v627 = vadd.f32 %v482, %v626
    %v628 = vpop.f32.mrb[0].mxu0
    %629 = vmatprep.mubr.f32.mxu0 0.0
    %630 = vmatmul.mubr.f32.gmra.mrb[0].mxu0 %v320
    %v631 = vpop.f32.mrb[0].mxu0
    %v632 = vadd.f32 %v487, %v631
    %v633 = vpop.f32.mrb[0].mxu0
    %634 = vmatprep.mubr.f32.mxu0 0.0
    %635 = vmatmul.mubr.f32.gmra.mrb[0].mxu0 %v321
    %v636 = vpop.f32.mrb[0].mxu0
    %v637 = vadd.f32 %v492, %v636
    %v638 = vpop.f32.mrb[0].mxu0
    %639 = vmatprep.mubr.f32.mxu0 0.0
    %640 = vmatmul.mubr.f32.gmra.mrb[0].mxu0 %v322
    %v641 = vpop.f32.mrb[0].mxu0
    %v642 = vadd.f32 %v497, %v641
    %v643 = vpop.f32.mrb[0].mxu0
    %644 = vmatprep.mubr.f32.mxu0 0.0
    %645 = vmatmul.mubr.f32.gmra.mrb[0].mxu0 %v323
    %v646 = vpop.f32.mrb[0].mxu0
    %v647 = vadd.f32 %v502, %v646
    %v648 = vpop.f32.mrb[0].mxu0
    %649 = vmatprep.mubr.f32.mxu0 0.0
    %650 = vmatmul.mubr.f32.gmra.mrb[0].mxu0 %v324
    %v651 = vpop.f32.mrb[0].mxu0
    %v652 = vadd.f32 %v507, %v651
    %v653 = vpop.f32.mrb[0].mxu0
    %654 = vmatprep.mubr.f32.mxu0 0.0
    %655 = vmatmul.mubr.f32.gmra.mrb[0].mxu0 %v325
    %v656 = vpop.f32.mrb[0].mxu0
    %v657 = vadd.f32 %v512, %v656
    %v658 = vpop.f32.mrb[0].mxu0
    %659 = vmatprep.mubr.f32.mxu0 0.0
    %660 = vmatmul.mubr.f32.gmra.mrb[0].mxu0 %v326
    %v661 = vpop.f32.mrb[0].mxu0
    %v662 = vadd.f32 %v517, %v661
    %v663 = vpop.f32.mrb[0].mxu0
    %664 = vmatprep.mubr.f32.mxu0 0.0
    %665 = vmatmul.mubr.f32.gmra.mrb[0].mxu0 %v327
    %v666 = vpop.f32.mrb[0].mxu0
    %v667 = vadd.f32 %v522, %v666
    %v668 = vpop.f32.mrb[0].mxu0
    %669 = vmatprep.mubr.f32.mxu0 0.0
    %670 = vmatmul.mubr.f32.gmra.mrb[0].mxu0 %v328
    %v671 = vpop.f32.mrb[0].mxu0
    %v672 = vadd.f32 %v527, %v671
    %v673 = vpop.f32.mrb[0].mxu0
    %674 = vmatprep.mubr.f32.mxu0 0.0
    %675 = vmatmul.mubr.f32.gmra.mrb[0].mxu0 %v329
    %v676 = vpop.f32.mrb[0].mxu0
    %v677 = vadd.f32 %v532, %v676
    %v678 = vpop.f32.mrb[0].mxu0
    %679 = vmatprep.mubr.f32.mxu0 0.0
    %680 = vmatmul.mubr.f32.gmra.mrb[0].mxu0 %v330
    %v681 = vpop.f32.mrb[0].mxu0
    %v682 = vadd.f32 %v537, %v681
    %v683 = vpop.f32.mrb[0].mxu0
    %684 = vdwg.mxu0
    %s685 = scalar_lea.vmem %s0, 9
    %v686 = vld [vmem:[%s685] ss:$2 sm:$0xff]
    %s687 = scalar_lea.vmem %s0, 25
    %v688 = vld [vmem:[%s687] ss:$2 sm:$0xff]
    %s689 = scalar_lea.vmem %s0, 41
    %v690 = vld [vmem:[%s689] ss:$2 sm:$0xff]
    %s691 = scalar_lea.vmem %s0, 57
    %v692 = vld [vmem:[%s691] ss:$2 sm:$0xff]
    %s693 = scalar_lea.vmem %s0, 73
    %v694 = vld [vmem:[%s693] ss:$2 sm:$0xff]
    %s695 = scalar_lea.vmem %s0, 89
    %v696 = vld [vmem:[%s695] ss:$2 sm:$0xff]
    %s697 = scalar_lea.vmem %s0, 105
    %v698 = vld [vmem:[%s697] ss:$2 sm:$0xff]
    %s699 = scalar_lea.vmem %s0, 121
    %v700 = vld [vmem:[%s699] ss:$2 sm:$0xff]
    %s701 = scalar_lea.vmem %s0, 137
    %v702 = vld [vmem:[%s701] ss:$2 sm:$0xff]
    %s703 = scalar_lea.vmem %s0, 153
    %v704 = vld [vmem:[%s703] ss:$2 sm:$0xff]
    %s705 = scalar_lea.vmem %s0, 169
    %v706 = vld [vmem:[%s705] ss:$2 sm:$0xff]
    %s707 = scalar_lea.vmem %s0, 185
    %v708 = vld [vmem:[%s707] ss:$2 sm:$0xff]
    %s709 = scalar_lea.vmem %s0, 201
    %v710 = vld [vmem:[%s709] ss:$2 sm:$0xff]
    %s711 = scalar_lea.vmem %s0, 217
    %v712 = vld [vmem:[%s711] ss:$2 sm:$0xff]
    %s713 = scalar_lea.vmem %s0, 233
    %v714 = vld [vmem:[%s713] ss:$2 sm:$0xff]
    %s715 = scalar_lea.vmem %s0, 249
    %v716 = vld [vmem:[%s715] ss:$2 sm:$0xff]
    %v717 = vld [vmem:[#allocation7 + $0x100] sm:$0xff]
    %v718 = vld [vmem:[#allocation7 + $0x108] sm:$0xff]
    %v719 = vld [vmem:[#allocation7 + $0x110] sm:$0xff]
    %v720 = vld [vmem:[#allocation7 + $0x118] sm:$0xff]
    %v721 = vld [vmem:[#allocation7 + $0x120] sm:$0xff]
    %v722 = vld [vmem:[#allocation7 + $0x128] sm:$0xff]
    %v723 = vld [vmem:[#allocation7 + $0x130] sm:$0xff]
    %v724 = vld [vmem:[#allocation7 + $0x138] sm:$0xff]
    %v725 = vld [vmem:[#allocation7 + $0x140] sm:$0xff]
    %v726 = vld [vmem:[#allocation7 + $0x148] sm:$0xff]
    %v727 = vld [vmem:[#allocation7 + $0x150] sm:$0xff]
    %v728 = vld [vmem:[#allocation7 + $0x158] sm:$0xff]
    %v729 = vld [vmem:[#allocation7 + $0x160] sm:$0xff]
    %v730 = vld [vmem:[#allocation7 + $0x168] sm:$0xff]
    %v731 = vld [vmem:[#allocation7 + $0x170] sm:$0xff]
    %v732 = vld [vmem:[#allocation7 + $0x178] sm:$0xff]
    %733 = vmatprep.subr.mxu0 0.0
    %734 = vmatpush1.msra.mxu0 %v717
    %735 = vmatprep.subr.mxu0 0.0
    %736 = vmatpush1.msra.mxu0 %v718
    %737 = vmatprep.subr.mxu0 0.0
    %738 = vmatpush1.msra.mxu0 %v719
    %739 = vmatprep.subr.mxu0 0.0
    %740 = vmatpush1.msra.mxu0 %v720
    %741 = vmatprep.subr.mxu0 0.0
    %742 = vmatpush1.msra.mxu0 %v721
    %743 = vmatprep.subr.mxu0 0.0
    %744 = vmatpush1.msra.mxu0 %v722
    %745 = vmatprep.subr.mxu0 0.0
    %746 = vmatpush1.msra.mxu0 %v723
    %747 = vmatprep.subr.mxu0 0.0
    %748 = vmatpush1.msra.mxu0 %v724
    %749 = vmatprep.subr.mxu0 0.0
    %750 = vmatpush1.msra.mxu0 %v725
    %751 = vmatprep.subr.mxu0 0.0
    %752 = vmatpush1.msra.mxu0 %v726
    %753 = vmatprep.subr.mxu0 0.0
    %754 = vmatpush1.msra.mxu0 %v727
    %755 = vmatprep.subr.mxu0 0.0
    %756 = vmatpush1.msra.mxu0 %v728
    %757 = vmatprep.subr.mxu0 0.0
    %758 = vmatpush1.msra.mxu0 %v729
    %759 = vmatprep.subr.mxu0 0.0
    %760 = vmatpush1.msra.mxu0 %v730
    %761 = vmatprep.subr.mxu0 0.0
    %762 = vmatpush1.msra.mxu0 %v731
    %763 = vmatprep.subr.mxu0 0.0
    %764 = vmatpush1.msra.mxu0 %v732
    %765 = vmatprep.subr.mxu0 0.0
    %766 = vmatpush1.msra.mxu0 0.0
    %767 = vmatprep.subr.mxu0 0.0
    %768 = vmatpush1.msra.mxu0 0.0
    %769 = vmatprep.subr.mxu0 0.0
    %770 = vmatpush1.msra.mxu0 0.0
    %771 = vmatprep.subr.mxu0 0.0
    %772 = vmatpush1.msra.mxu0 0.0
    %773 = vmatprep.subr.mxu0 0.0
    %774 = vmatpush1.msra.mxu0 0.0
    %775 = vmatprep.subr.mxu0 0.0
    %776 = vmatpush1.msra.mxu0 0.0
    %777 = vmatprep.subr.mxu0 0.0
    %778 = vmatpush1.msra.mxu0 0.0
    %779 = vmatprep.subr.mxu0 0.0
    %780 = vmatpush1.msra.mxu0 0.0
    %781 = vmatprep.subr.mxu0 0.0
    %782 = vmatpush1.msra.mxu0 0.0
    %783 = vmatprep.subr.mxu0 0.0
    %784 = vmatpush1.msra.mxu0 0.0
    %785 = vmatprep.subr.mxu0 0.0
    %786 = vmatpush1.msra.mxu0 0.0
    %787 = vmatprep.subr.mxu0 0.0
    %788 = vmatpush1.msra.mxu0 0.0
    %789 = vmatprep.subr.mxu0 0.0
    %790 = vmatpush1.msra.mxu0 0.0
    %791 = vmatprep.subr.mxu0 0.0
    %792 = vmatpush1.msra.mxu0 0.0
    %793 = vmatprep.subr.mxu0 0.0
    %794 = vmatpush1.msra.mxu0 0.0
    %795 = vmatprep.subr.mxu0 0.0
    %796 = vmatpush1.msra.mxu0 0.0
    %797 = vmatprep.mubr.f32.mxu0 0.0
    %798 = vmatmul.mubr.f32.gmra.mrb[0].mxu0 %v686
    %v799 = vpop.f32.mrb[0].mxu0
    %v800 = vadd.f32 0.0, %v799
    %v801 = vpop.f32.mrb[0].mxu0
    %802 = vmatprep.mubr.f32.mxu0 0.0
    %803 = vmatmul.mubr.f32.gmra.mrb[0].mxu0 %v688
    %v804 = vpop.f32.mrb[0].mxu0
    %v805 = vadd.f32 0.0, %v804
    %v806 = vpop.f32.mrb[0].mxu0
    %807 = vmatprep.mubr.f32.mxu0 0.0
    %808 = vmatmul.mubr.f32.gmra.mrb[0].mxu0 %v690
    %v809 = vpop.f32.mrb[0].mxu0
    %v810 = vadd.f32 0.0, %v809
    %v811 = vpop.f32.mrb[0].mxu0
    %812 = vmatprep.mubr.f32.mxu0 0.0
    %813 = vmatmul.mubr.f32.gmra.mrb[0].mxu0 %v692
    %v814 = vpop.f32.mrb[0].mxu0
    %v815 = vadd.f32 0.0, %v814
    %v816 = vpop.f32.mrb[0].mxu0
    %817 = vmatprep.mubr.f32.mxu0 0.0
    %818 = vmatmul.mubr.f32.gmra.mrb[0].mxu0 %v694
    %v819 = vpop.f32.mrb[0].mxu0
    %v820 = vadd.f32 0.0, %v819
    %v821 = vpop.f32.mrb[0].mxu0
    %822 = vmatprep.mubr.f32.mxu0 0.0
    %823 = vmatmul.mubr.f32.gmra.mrb[0].mxu0 %v696
    %v824 = vpop.f32.mrb[0].mxu0
    %v825 = vadd.f32 0.0, %v824
    %v826 = vpop.f32.mrb[0].mxu0
    %827 = vmatprep.mubr.f32.mxu0 0.0
    %828 = vmatmul.mubr.f32.gmra.mrb[0].mxu0 %v698
    %v829 = vpop.f32.mrb[0].mxu0
    %v830 = vadd.f32 0.0, %v829
    %v831 = vpop.f32.mrb[0].mxu0
    %832 = vmatprep.mubr.f32.mxu0 0.0
    %833 = vmatmul.mubr.f32.gmra.mrb[0].mxu0 %v700
    %v834 = vpop.f32.mrb[0].mxu0
    %v835 = vadd.f32 0.0, %v834
    %v836 = vpop.f32.mrb[0].mxu0
    %837 = vmatprep.mubr.f32.mxu0 0.0
    %838 = vmatmul.mubr.f32.gmra.mrb[0].mxu0 %v702
    %v839 = vpop.f32.mrb[0].mxu0
    %v840 = vadd.f32 0.0, %v839
    %v841 = vpop.f32.mrb[0].mxu0
    %842 = vmatprep.mubr.f32.mxu0 0.0
    %843 = vmatmul.mubr.f32.gmra.mrb[0].mxu0 %v704
    %v844 = vpop.f32.mrb[0].mxu0
    %v845 = vadd.f32 0.0, %v844
    %v846 = vpop.f32.mrb[0].mxu0
    %847 = vmatprep.mubr.f32.mxu0 0.0
    %848 = vmatmul.mubr.f32.gmra.mrb[0].mxu0 %v706
    %v849 = vpop.f32.mrb[0].mxu0
    %v850 = vadd.f32 0.0, %v849
    %v851 = vpop.f32.mrb[0].mxu0
    %852 = vmatprep.mubr.f32.mxu0 0.0
    %853 = vmatmul.mubr.f32.gmra.mrb[0].mxu0 %v708
    %v854 = vpop.f32.mrb[0].mxu0
    %v855 = vadd.f32 0.0, %v854
    %v856 = vpop.f32.mrb[0].mxu0
    %857 = vmatprep.mubr.f32.mxu0 0.0
    %858 = vmatmul.mubr.f32.gmra.mrb[0].mxu0 %v710
    %v859 = vpop.f32.mrb[0].mxu0
    %v860 = vadd.f32 0.0, %v859
    %v861 = vpop.f32.mrb[0].mxu0
    %862 = vmatprep.mubr.f32.mxu0 0.0
    %863 = vmatmul.mubr.f32.gmra.mrb[0].mxu0 %v712
    %v864 = vpop.f32.mrb[0].mxu0
    %v865 = vadd.f32 0.0, %v864
    %v866 = vpop.f32.mrb[0].mxu0
    %867 = vmatprep.mubr.f32.mxu0 0.0
    %868 = vmatmul.mubr.f32.gmra.mrb[0].mxu0 %v714
    %v869 = vpop.f32.mrb[0].mxu0
    %v870 = vadd.f32 0.0, %v869
    %v871 = vpop.f32.mrb[0].mxu0
    %872 = vmatprep.mubr.f32.mxu0 0.0
    %873 = vmatmul.mubr.f32.gmra.mrb[0].mxu0 %v716
    %v874 = vpop.f32.mrb[0].mxu0
    %v875 = vadd.f32 0.0, %v874
    %v876 = vpop.f32.mrb[0].mxu0
    %877 = vdwg.mxu0
    %v878 = vadd.f32 %v607, %v800
    %v879 = vadd.f32 %v612, %v805
    %v880 = vadd.f32 %v617, %v810
    %v881 = vadd.f32 %v622, %v815
    %v882 = vadd.f32 %v627, %v820
    %v883 = vadd.f32 %v632, %v825
    %v884 = vadd.f32 %v637, %v830
    %v885 = vadd.f32 %v642, %v835
    %v886 = vadd.f32 %v647, %v840
    %v887 = vadd.f32 %v652, %v845
    %v888 = vadd.f32 %v657, %v850
    %v889 = vadd.f32 %v662, %v855
    %v890 = vadd.f32 %v667, %v860
    %v891 = vadd.f32 %v672, %v865
    %v892 = vadd.f32 %v677, %v870
    %v893 = vadd.f32 %v682, %v875
    %s894 = scalar_lea.vmem %s0, 10
    %v895 = vld [vmem:[%s894] ss:$2 sm:$0xff]
    %s896 = scalar_lea.vmem %s0, 26
    %v897 = vld [vmem:[%s896] ss:$2 sm:$0xff]
    %s898 = scalar_lea.vmem %s0, 42
    %v899 = vld [vmem:[%s898] ss:$2 sm:$0xff]
    %s900 = scalar_lea.vmem %s0, 58
    %v901 = vld [vmem:[%s900] ss:$2 sm:$0xff]
    %s902 = scalar_lea.vmem %s0, 74
    %v903 = vld [vmem:[%s902] ss:$2 sm:$0xff]
    %s904 = scalar_lea.vmem %s0, 90
    %v905 = vld [vmem:[%s904] ss:$2 sm:$0xff]
    %s906 = scalar_lea.vmem %s0, 106
    %v907 = vld [vmem:[%s906] ss:$2 sm:$0xff]
    %s908 = scalar_lea.vmem %s0, 122
    %v909 = vld [vmem:[%s908] ss:$2 sm:$0xff]
    %s910 = scalar_lea.vmem %s0, 138
    %v911 = vld [vmem:[%s910] ss:$2 sm:$0xff]
    %s912 = scalar_lea.vmem %s0, 154
    %v913 = vld [vmem:[%s912] ss:$2 sm:$0xff]
    %s914 = scalar_lea.vmem %s0, 170
    %v915 = vld [vmem:[%s914] ss:$2 sm:$0xff]
    %s916 = scalar_lea.vmem %s0, 186
    %v917 = vld [vmem:[%s916] ss:$2 sm:$0xff]
    %s918 = scalar_lea.vmem %s0, 202
    %v919 = vld [vmem:[%s918] ss:$2 sm:$0xff]
    %s920 = scalar_lea.vmem %s0, 218
    %v921 = vld [vmem:[%s920] ss:$2 sm:$0xff]
    %s922 = scalar_lea.vmem %s0, 234
    %v923 = vld [vmem:[%s922] ss:$2 sm:$0xff]
    %s924 = scalar_lea.vmem %s0, 250
    %v925 = vld [vmem:[%s924] ss:$2 sm:$0xff]
    %vm926 = vcmp.eq.s32.totalorder %v251, 63
    %vm927 = vcmp.eq.s32.totalorder %v252, 63
    %vm928 = vcmp.eq.s32.totalorder %v253, 63
    %vm929 = vcmp.eq.s32.totalorder %v254, 63
    %vm930 = vcmp.eq.s32.totalorder %v255, 63
    %vm931 = vcmp.eq.s32.totalorder %v256, 63
    %vm932 = vcmp.eq.s32.totalorder %v257, 63
    %vm933 = vcmp.eq.s32.totalorder %v258, 63
    %vm934 = vcmp.eq.s32.totalorder %v259, 63
    %vm935 = vcmp.eq.s32.totalorder %v260, 63
    %vm936 = vcmp.eq.s32.totalorder %v261, 63
    %vm937 = vcmp.eq.s32.totalorder %v262, 63
    %vm938 = vcmp.eq.s32.totalorder %v263, 63
    %vm939 = vcmp.eq.s32.totalorder %v264, 63
    %vm940 = vcmp.eq.s32.totalorder %v265, 63
    %vm941 = vcmp.eq.s32.totalorder %v266, 63
    %v942 = vsel %vm926, 0.0, %v895
    %v943 = vsel %vm927, 0.0, %v897
    %v944 = vsel %vm928, 0.0, %v899
    %v945 = vsel %vm929, 0.0, %v901
    %v946 = vsel %vm930, 0.0, %v903
    %v947 = vsel %vm931, 0.0, %v905
    %v948 = vsel %vm932, 0.0, %v907
    %v949 = vsel %vm933, 0.0, %v909
    %v950 = vsel %vm934, 0.0, %v911
    %v951 = vsel %vm935, 0.0, %v913
    %v952 = vsel %vm936, 0.0, %v915
    %v953 = vsel %vm937, 0.0, %v917
    %v954 = vsel %vm938, 0.0, %v919
    %v955 = vsel %vm939, 0.0, %v921
    %v956 = vsel %vm940, 0.0, %v923
    %v957 = vsel %vm941, 0.0, %v925
    %v958 = vld [vmem:[#allocation7 + $0x180] sm:$0xff]
    %v959 = vld [vmem:[#allocation7 + $0x188] sm:$0xff]
    %v960 = vld [vmem:[#allocation7 + $0x190] sm:$0xff]
    %v961 = vld [vmem:[#allocation7 + $0x198] sm:$0xff]
    %v962 = vld [vmem:[#allocation7 + $0x1a0] sm:$0xff]
    %v963 = vld [vmem:[#allocation7 + $0x1a8] sm:$0xff]
    %v964 = vld [vmem:[#allocation7 + $0x1b0] sm:$0xff]
    %v965 = vld [vmem:[#allocation7 + $0x1b8] sm:$0xff]
    %v966 = vld [vmem:[#allocation7 + $0x1c0] sm:$0xff]
    %v967 = vld [vmem:[#allocation7 + $0x1c8] sm:$0xff]
    %v968 = vld [vmem:[#allocation7 + $0x1d0] sm:$0xff]
    %v969 = vld [vmem:[#allocation7 + $0x1d8] sm:$0xff]
    %v970 = vld [vmem:[#allocation7 + $0x1e0] sm:$0xff]
    %v971 = vld [vmem:[#allocation7 + $0x1e8] sm:$0xff]
    %v972 = vld [vmem:[#allocation7 + $0x1f0] sm:$0xff]
    %v973 = vld [vmem:[#allocation7 + $0x1f8] sm:$0xff]
    %974 = vmatprep.subr.mxu0 0.0
    %975 = vmatpush1.msra.mxu0 %v958
    %976 = vmatprep.subr.mxu0 0.0
    %977 = vmatpush1.msra.mxu0 %v959
    %978 = vmatprep.subr.mxu0 0.0
    %979 = vmatpush1.msra.mxu0 %v960
    %980 = vmatprep.subr.mxu0 0.0
    %981 = vmatpush1.msra.mxu0 %v961
    %982 = vmatprep.subr.mxu0 0.0
    %983 = vmatpush1.msra.mxu0 %v962
    %984 = vmatprep.subr.mxu0 0.0
    %985 = vmatpush1.msra.mxu0 %v963
    %986 = vmatprep.subr.mxu0 0.0
    %987 = vmatpush1.msra.mxu0 %v964
    %988 = vmatprep.subr.mxu0 0.0
    %989 = vmatpush1.msra.mxu0 %v965
    %990 = vmatprep.subr.mxu0 0.0
    %991 = vmatpush1.msra.mxu0 %v966
    %992 = vmatprep.subr.mxu0 0.0
    %993 = vmatpush1.msra.mxu0 %v967
    %994 = vmatprep.subr.mxu0 0.0
    %995 = vmatpush1.msra.mxu0 %v968
    %996 = vmatprep.subr.mxu0 0.0
    %997 = vmatpush1.msra.mxu0 %v969
    %998 = vmatprep.subr.mxu0 0.0
    %999 = vmatpush1.msra.mxu0 %v970
    %1000 = vmatprep.subr.mxu0 0.0
    %1001 = vmatpush1.msra.mxu0 %v971
    %1002 = vmatprep.subr.mxu0 0.0
    %1003 = vmatpush1.msra.mxu0 %v972
    %1004 = vmatprep.subr.mxu0 0.0
    %1005 = vmatpush1.msra.mxu0 %v973
    %1006 = vmatprep.subr.mxu0 0.0
    %1007 = vmatpush1.msra.mxu0 0.0
    %1008 = vmatprep.subr.mxu0 0.0
    %1009 = vmatpush1.msra.mxu0 0.0
    %1010 = vmatprep.subr.mxu0 0.0
    %1011 = vmatpush1.msra.mxu0 0.0
    %1012 = vmatprep.subr.mxu0 0.0
    %1013 = vmatpush1.msra.mxu0 0.0
    %1014 = vmatprep.subr.mxu0 0.0
    %1015 = vmatpush1.msra.mxu0 0.0
    %1016 = vmatprep.subr.mxu0 0.0
    %1017 = vmatpush1.msra.mxu0 0.0
    %1018 = vmatprep.subr.mxu0 0.0
    %1019 = vmatpush1.msra.mxu0 0.0
    %1020 = vmatprep.subr.mxu0 0.0
    %1021 = vmatpush1.msra.mxu0 0.0
    %1022 = vmatprep.subr.mxu0 0.0
    %1023 = vmatpush1.msra.mxu0 0.0
    %1024 = vmatprep.subr.mxu0 0.0
    %1025 = vmatpush1.msra.mxu0 0.0
    %1026 = vmatprep.subr.mxu0 0.0
    %1027 = vmatpush1.msra.mxu0 0.0
    %1028 = vmatprep.subr.mxu0 0.0
    %1029 = vmatpush1.msra.mxu0 0.0
    %1030 = vmatprep.subr.mxu0 0.0
    %1031 = vmatpush1.msra.mxu0 0.0
    %1032 = vmatprep.subr.mxu0 0.0
    %1033 = vmatpush1.msra.mxu0 0.0
    %1034 = vmatprep.subr.mxu0 0.0
    %1035 = vmatpush1.msra.mxu0 0.0
    %1036 = vmatprep.subr.mxu0 0.0
    %1037 = vmatpush1.msra.mxu0 0.0
    %1038 = vmatprep.mubr.f32.mxu0 0.0
    %1039 = vmatmul.mubr.f32.gmra.mrb[0].mxu0 %v942
    %v1040 = vpop.f32.mrb[0].mxu0
    %v1041 = vadd.f32 0.0, %v1040
    %v1042 = vpop.f32.mrb[0].mxu0
    %1043 = vmatprep.mubr.f32.mxu0 0.0
    %1044 = vmatmul.mubr.f32.gmra.mrb[0].mxu0 %v943
    %v1045 = vpop.f32.mrb[0].mxu0
    %v1046 = vadd.f32 0.0, %v1045
    %v1047 = vpop.f32.mrb[0].mxu0
    %1048 = vmatprep.mubr.f32.mxu0 0.0
    %1049 = vmatmul.mubr.f32.gmra.mrb[0].mxu0 %v944
    %v1050 = vpop.f32.mrb[0].mxu0
    %v1051 = vadd.f32 0.0, %v1050
    %v1052 = vpop.f32.mrb[0].mxu0
    %1053 = vmatprep.mubr.f32.mxu0 0.0
    %1054 = vmatmul.mubr.f32.gmra.mrb[0].mxu0 %v945
    %v1055 = vpop.f32.mrb[0].mxu0
    %v1056 = vadd.f32 0.0, %v1055
    %v1057 = vpop.f32.mrb[0].mxu0
    %1058 = vmatprep.mubr.f32.mxu0 0.0
    %1059 = vmatmul.mubr.f32.gmra.mrb[0].mxu0 %v946
    %v1060 = vpop.f32.mrb[0].mxu0
    %v1061 = vadd.f32 0.0, %v1060
    %v1062 = vpop.f32.mrb[0].mxu0
    %1063 = vmatprep.mubr.f32.mxu0 0.0
    %1064 = vmatmul.mubr.f32.gmra.mrb[0].mxu0 %v947
    %v1065 = vpop.f32.mrb[0].mxu0
    %v1066 = vadd.f32 0.0, %v1065
    %v1067 = vpop.f32.mrb[0].mxu0
    %1068 = vmatprep.mubr.f32.mxu0 0.0
    %1069 = vmatmul.mubr.f32.gmra.mrb[0].mxu0 %v948
    %v1070 = vpop.f32.mrb[0].mxu0
    %v1071 = vadd.f32 0.0, %v1070
    %v1072 = vpop.f32.mrb[0].mxu0
    %1073 = vmatprep.mubr.f32.mxu0 0.0
    %1074 = vmatmul.mubr.f32.gmra.mrb[0].mxu0 %v949
    %v1075 = vpop.f32.mrb[0].mxu0
    %v1076 = vadd.f32 0.0, %v1075
    %v1077 = vpop.f32.mrb[0].mxu0
    %1078 = vmatprep.mubr.f32.mxu0 0.0
    %1079 = vmatmul.mubr.f32.gmra.mrb[0].mxu0 %v950
    %v1080 = vpop.f32.mrb[0].mxu0
    %v1081 = vadd.f32 0.0, %v1080
    %v1082 = vpop.f32.mrb[0].mxu0
    %1083 = vmatprep.mubr.f32.mxu0 0.0
    %1084 = vmatmul.mubr.f32.gmra.mrb[0].mxu0 %v951
    %v1085 = vpop.f32.mrb[0].mxu0
    %v1086 = vadd.f32 0.0, %v1085
    %v1087 = vpop.f32.mrb[0].mxu0
    %1088 = vmatprep.mubr.f32.mxu0 0.0
    %1089 = vmatmul.mubr.f32.gmra.mrb[0].mxu0 %v952
    %v1090 = vpop.f32.mrb[0].mxu0
    %v1091 = vadd.f32 0.0, %v1090
    %v1092 = vpop.f32.mrb[0].mxu0
    %1093 = vmatprep.mubr.f32.mxu0 0.0
    %1094 = vmatmul.mubr.f32.gmra.mrb[0].mxu0 %v953
    %v1095 = vpop.f32.mrb[0].mxu0
    %v1096 = vadd.f32 0.0, %v1095
    %v1097 = vpop.f32.mrb[0].mxu0
    %1098 = vmatprep.mubr.f32.mxu0 0.0
    %1099 = vmatmul.mubr.f32.gmra.mrb[0].mxu0 %v954
    %v1100 = vpop.f32.mrb[0].mxu0
    %v1101 = vadd.f32 0.0, %v1100
    %v1102 = vpop.f32.mrb[0].mxu0
    %1103 = vmatprep.mubr.f32.mxu0 0.0
    %1104 = vmatmul.mubr.f32.gmra.mrb[0].mxu0 %v955
    %v1105 = vpop.f32.mrb[0].mxu0
    %v1106 = vadd.f32 0.0, %v1105
    %v1107 = vpop.f32.mrb[0].mxu0
    %1108 = vmatprep.mubr.f32.mxu0 0.0
    %1109 = vmatmul.mubr.f32.gmra.mrb[0].mxu0 %v956
    %v1110 = vpop.f32.mrb[0].mxu0
    %v1111 = vadd.f32 0.0, %v1110
    %v1112 = vpop.f32.mrb[0].mxu0
    %1113 = vmatprep.mubr.f32.mxu0 0.0
    %1114 = vmatmul.mubr.f32.gmra.mrb[0].mxu0 %v957
    %v1115 = vpop.f32.mrb[0].mxu0
    %v1116 = vadd.f32 0.0, %v1115
    %v1117 = vpop.f32.mrb[0].mxu0
    %1118 = vdwg.mxu0
    %v1119 = vadd.f32 %v878, %v1041
    %v1120 = vadd.f32 %v879, %v1046
    %v1121 = vadd.f32 %v880, %v1051
    %v1122 = vadd.f32 %v881, %v1056
    %v1123 = vadd.f32 %v882, %v1061
    %v1124 = vadd.f32 %v883, %v1066
    %v1125 = vadd.f32 %v884, %v1071
    %v1126 = vadd.f32 %v885, %v1076
    %v1127 = vadd.f32 %v886, %v1081
    %v1128 = vadd.f32 %v887, %v1086
    %v1129 = vadd.f32 %v888, %v1091
    %v1130 = vadd.f32 %v889, %v1096
    %v1131 = vadd.f32 %v890, %v1101
    %v1132 = vadd.f32 %v891, %v1106
    %v1133 = vadd.f32 %v892, %v1111
    %v1134 = vadd.f32 %v893, %v1116
    %v1135 = vadd.f32 %v1119, %v1120
    %v1136 = vadd.f32 %v1135, %v1121
    %v1137 = vadd.f32 %v1136, %v1122
    %v1138 = vadd.f32 %v1137, %v1123
    %v1139 = vadd.f32 %v1138, %v1124
    %v1140 = vadd.f32 %v1139, %v1125
    %v1141 = vadd.f32 %v1140, %v1126
    %v1142 = vadd.f32 %v1141, %v1127
    %v1143 = vadd.f32 %v1142, %v1128
    %v1144 = vadd.f32 %v1143, %v1129
    %v1145 = vadd.f32 %v1144, %v1130
    %v1146 = vadd.f32 %v1145, %v1131
    %v1147 = vadd.f32 %v1146, %v1132
    %v1148 = vadd.f32 %v1147, %v1133
    %v1149 = vadd.f32 %v1148, %v1134
    %v1150 = vrot.slane %v1149, 4
    %v1151 = vadd.f32 %v1149, %v1150
    %v1152 = vrot.slane %v1151, 2
    %v1153 = vadd.f32 %v1151, %v1152
    %v1154 = vrot.slane %v1153, 1
    %v1155 = vadd.f32 %v1153, %v1154
    %v1156 = vmul.f32 %v1155, 0.0078125
    %v1157 = vsub.f32 %v1119, %v1156
    %v1158 = vsub.f32 %v1120, %v1156
    %v1159 = vsub.f32 %v1121, %v1156
    %v1160 = vsub.f32 %v1122, %v1156
    %v1161 = vsub.f32 %v1123, %v1156
    %v1162 = vsub.f32 %v1124, %v1156
    %v1163 = vsub.f32 %v1125, %v1156
    %v1164 = vsub.f32 %v1126, %v1156
    %v1165 = vsub.f32 %v1127, %v1156
    %v1166 = vsub.f32 %v1128, %v1156
    %v1167 = vsub.f32 %v1129, %v1156
    %v1168 = vsub.f32 %v1130, %v1156
    %v1169 = vsub.f32 %v1131, %v1156
    %v1170 = vsub.f32 %v1132, %v1156
    %v1171 = vsub.f32 %v1133, %v1156
    %v1172 = vsub.f32 %v1134, %v1156
    %v1173 = vmul.f32 %v1157, %v1157
    %v1174 = vmul.f32 %v1158, %v1158
    %v1175 = vmul.f32 %v1159, %v1159
    %v1176 = vmul.f32 %v1160, %v1160
    %v1177 = vmul.f32 %v1161, %v1161
    %v1178 = vmul.f32 %v1162, %v1162
    %v1179 = vmul.f32 %v1163, %v1163
    %v1180 = vmul.f32 %v1164, %v1164
    %v1181 = vmul.f32 %v1165, %v1165
    %v1182 = vmul.f32 %v1166, %v1166
    %v1183 = vmul.f32 %v1167, %v1167
    %v1184 = vmul.f32 %v1168, %v1168
    %v1185 = vmul.f32 %v1169, %v1169
    %v1186 = vmul.f32 %v1170, %v1170
    %v1187 = vmul.f32 %v1171, %v1171
    %v1188 = vmul.f32 %v1172, %v1172
    %v1189 = vadd.f32 %v1173, %v1174
    %v1190 = vadd.f32 %v1189, %v1175
    %v1191 = vadd.f32 %v1190, %v1176
    %v1192 = vadd.f32 %v1191, %v1177
    %v1193 = vadd.f32 %v1192, %v1178
    %v1194 = vadd.f32 %v1193, %v1179
    %v1195 = vadd.f32 %v1194, %v1180
    %v1196 = vadd.f32 %v1195, %v1181
    %v1197 = vadd.f32 %v1196, %v1182
    %v1198 = vadd.f32 %v1197, %v1183
    %v1199 = vadd.f32 %v1198, %v1184
    %v1200 = vadd.f32 %v1199, %v1185
    %v1201 = vadd.f32 %v1200, %v1186
    %v1202 = vadd.f32 %v1201, %v1187
    %v1203 = vadd.f32 %v1202, %v1188
    %v1204 = vrot.slane %v1203, 4
    %v1205 = vadd.f32 %v1203, %v1204
    %v1206 = vrot.slane %v1205, 2
    %v1207 = vadd.f32 %v1205, %v1206
    %v1208 = vrot.slane %v1207, 1
    %v1209 = vadd.f32 %v1207, %v1208
    %v1210 = vmul.f32 %v1209, 0.0078125
    %v1211 = vld [vmem:[#allocation9] sm:$0x1]
    %v1212 = vld [vmem:[#allocation9 + $0x5] sm:$0x1]
    %v1213 = vadd.f32 %v1210, 1e-05
    %v1214 = vrsqrt.pop %v1213
    %v1215 = vmul.f32 %v1211, %v1214
    %v1216 = vmul.f32 %v1156, %v1215
    %v1217 = vsub.f32 %v1212, %v1216
    %v1218 = vlaneseq
    %v1219 = vshrl.u32 %v1218, 7
    %v1220 = vsub.s32 0, %v1219
    %v1221 = vrot.slane %v1215, %v1220
    %v1222 = vmul.f32 %v1119, %v1221
    %v1223 = vmul.f32 %v1120, %v1221
    %v1224 = vmul.f32 %v1121, %v1221
    %v1225 = vmul.f32 %v1122, %v1221
    %v1226 = vmul.f32 %v1123, %v1221
    %v1227 = vmul.f32 %v1124, %v1221
    %v1228 = vmul.f32 %v1125, %v1221
    %v1229 = vmul.f32 %v1126, %v1221
    %v1230 = vmul.f32 %v1127, %v1221
    %v1231 = vmul.f32 %v1128, %v1221
    %v1232 = vmul.f32 %v1129, %v1221
    %v1233 = vmul.f32 %v1130, %v1221
    %v1234 = vmul.f32 %v1131, %v1221
    %v1235 = vmul.f32 %v1132, %v1221
    %v1236 = vmul.f32 %v1133, %v1221
    %v1237 = vmul.f32 %v1134, %v1221
    %v1238 = vlaneseq
    %v1239 = vshrl.u32 %v1238, 7
    %v1240 = vsub.s32 0, %v1239
    %v1241 = vrot.slane %v1217, %v1240
    %v1242 = vadd.f32 %v1222, %v1241
    %v1243 = vadd.f32 %v1223, %v1241
    %v1244 = vadd.f32 %v1224, %v1241
    %v1245 = vadd.f32 %v1225, %v1241
    %v1246 = vadd.f32 %v1226, %v1241
    %v1247 = vadd.f32 %v1227, %v1241
    %v1248 = vadd.f32 %v1228, %v1241
    %v1249 = vadd.f32 %v1229, %v1241
    %v1250 = vadd.f32 %v1230, %v1241
    %v1251 = vadd.f32 %v1231, %v1241
    %v1252 = vadd.f32 %v1232, %v1241
    %v1253 = vadd.f32 %v1233, %v1241
    %v1254 = vadd.f32 %v1234, %v1241
    %v1255 = vadd.f32 %v1235, %v1241
    %v1256 = vadd.f32 %v1236, %v1241
    %v1257 = vadd.f32 %v1237, %v1241
    %vm1258 = vcmp.ge.f32.partialorder %v1242, 0.0
    %vm1259 = vcmp.ge.f32.partialorder %v1243, 0.0
    %vm1260 = vcmp.ge.f32.partialorder %v1244, 0.0
    %vm1261 = vcmp.ge.f32.partialorder %v1245, 0.0
    %vm1262 = vcmp.ge.f32.partialorder %v1246, 0.0
    %vm1263 = vcmp.ge.f32.partialorder %v1247, 0.0
    %vm1264 = vcmp.ge.f32.partialorder %v1248, 0.0
    %vm1265 = vcmp.ge.f32.partialorder %v1249, 0.0
    %vm1266 = vcmp.ge.f32.partialorder %v1250, 0.0
    %vm1267 = vcmp.ge.f32.partialorder %v1251, 0.0
    %vm1268 = vcmp.ge.f32.partialorder %v1252, 0.0
    %vm1269 = vcmp.ge.f32.partialorder %v1253, 0.0
    %vm1270 = vcmp.ge.f32.partialorder %v1254, 0.0
    %vm1271 = vcmp.ge.f32.partialorder %v1255, 0.0
    %vm1272 = vcmp.ge.f32.partialorder %v1256, 0.0
    %vm1273 = vcmp.ge.f32.partialorder %v1257, 0.0
    %v1274 = vmul.f32 %v1242, 0.2
    %v1275 = vmul.f32 %v1243, 0.2
    %v1276 = vmul.f32 %v1244, 0.2
    %v1277 = vmul.f32 %v1245, 0.2
    %v1278 = vmul.f32 %v1246, 0.2
    %v1279 = vmul.f32 %v1247, 0.2
    %v1280 = vmul.f32 %v1248, 0.2
    %v1281 = vmul.f32 %v1249, 0.2
    %v1282 = vmul.f32 %v1250, 0.2
    %v1283 = vmul.f32 %v1251, 0.2
    %v1284 = vmul.f32 %v1252, 0.2
    %v1285 = vmul.f32 %v1253, 0.2
    %v1286 = vmul.f32 %v1254, 0.2
    %v1287 = vmul.f32 %v1255, 0.2
    %v1288 = vmul.f32 %v1256, 0.2
    %v1289 = vmul.f32 %v1257, 0.2
    %v1290 = vsel %vm1258, %v1242, %v1274
    %v1291 = vsel %vm1259, %v1243, %v1275
    %v1292 = vsel %vm1260, %v1244, %v1276
    %v1293 = vsel %vm1261, %v1245, %v1277
    %v1294 = vsel %vm1262, %v1246, %v1278
    %v1295 = vsel %vm1263, %v1247, %v1279
    %v1296 = vsel %vm1264, %v1248, %v1280
    %v1297 = vsel %vm1265, %v1249, %v1281
    %v1298 = vsel %vm1266, %v1250, %v1282
    %v1299 = vsel %vm1267, %v1251, %v1283
    %v1300 = vsel %vm1268, %v1252, %v1284
    %v1301 = vsel %vm1269, %v1253, %v1285
    %v1302 = vsel %vm1270, %v1254, %v1286
    %v1303 = vsel %vm1271, %v1255, %v1287
    %v1304 = vsel %vm1272, %v1256, %v1288
    %v1305 = vsel %vm1273, %v1257, %v1289
    %1306 = vst [vmem:[#allocation2 + $0x7] sm:$0x1] 0.0
    %1307 = vst [vmem:[#allocation2 + $0x8] sm:$0xff] %v1290
    %1308 = vst [vmem:[#allocation2 + $0x10] sm:$0xff] %v1291
    %1309 = vst [vmem:[#allocation2 + $0x18] sm:$0xff] %v1292
    %1310 = vst [vmem:[#allocation2 + $0x20] sm:$0xff] %v1293
    %1311 = vst [vmem:[#allocation2 + $0x28] sm:$0xff] %v1294
    %1312 = vst [vmem:[#allocation2 + $0x30] sm:$0xff] %v1295
    %1313 = vst [vmem:[#allocation2 + $0x38] sm:$0xff] %v1296
    %1314 = vst [vmem:[#allocation2 + $0x40] sm:$0xff] %v1297
    %1315 = vst [vmem:[#allocation2 + $0x48] sm:$0xff] %v1298
    %1316 = vst [vmem:[#allocation2 + $0x50] sm:$0xff] %v1299
    %1317 = vst [vmem:[#allocation2 + $0x58] sm:$0xff] %v1300
    %1318 = vst [vmem:[#allocation2 + $0x60] sm:$0xff] %v1301
    %1319 = vst [vmem:[#allocation2 + $0x68] sm:$0xff] %v1302
    %1320 = vst [vmem:[#allocation2 + $0x70] sm:$0xff] %v1303
    %1321 = vst [vmem:[#allocation2 + $0x78] sm:$0xff] %v1304
    %1322 = vst [vmem:[#allocation2 + $0x80] sm:$0xff] %v1305
    %1323 = vst [vmem:[#allocation2 + $0x88] sm:$0x1] 0.0
    %vm1324 = vcmp.lt.s32.totalorder %v59, 0
    %v1325 = vsub.s32 0, %v59
    %v1326 = vsel %vm1324, %v1325, %v59
    %v1327 = vshrl.u32 %v1326, 5
    %v1328 = vand.u32 %v1326, 31
    %v1329 = vsub.s32 0, %v1328
    %v1330 = vsel %vm1324, %v1329, %v1328
    %vm1331 = vcmp.lt.s32.totalorder %v60, 0
    %v1332 = vsub.s32 0, %v60
    %v1333 = vsel %vm1331, %v1332, %v60
    %v1334 = vshrl.u32 %v1333, 5
    %v1335 = vand.u32 %v1333, 31
    %v1336 = vsub.s32 0, %v1335
    %v1337 = vsel %vm1331, %v1336, %v1335
    %vm1338 = vcmp.lt.s32.totalorder %v61, 0
    %v1339 = vsub.s32 0, %v61
    %v1340 = vsel %vm1338, %v1339, %v61
    %v1341 = vshrl.u32 %v1340, 5
    %v1342 = vand.u32 %v1340, 31
    %v1343 = vsub.s32 0, %v1342
    %v1344 = vsel %vm1338, %v1343, %v1342
    %vm1345 = vcmp.lt.s32.totalorder %v62, 0
    %v1346 = vsub.s32 0, %v62
    %v1347 = vsel %vm1345, %v1346, %v62
    %v1348 = vshrl.u32 %v1347, 5
    %v1349 = vand.u32 %v1347, 31
    %v1350 = vsub.s32 0, %v1349
    %v1351 = vsel %vm1345, %v1350, %v1349
    %vm1352 = vcmp.lt.s32.totalorder %v63, 0
    %v1353 = vsub.s32 0, %v63
    %v1354 = vsel %vm1352, %v1353, %v63
    %v1355 = vshrl.u32 %v1354, 5
    %v1356 = vand.u32 %v1354, 31
    %v1357 = vsub.s32 0, %v1356
    %v1358 = vsel %vm1352, %v1357, %v1356
    %vm1359 = vcmp.lt.s32.totalorder %v64, 0
    %v1360 = vsub.s32 0, %v64
    %v1361 = vsel %vm1359, %v1360, %v64
    %v1362 = vshrl.u32 %v1361, 5
    %v1363 = vand.u32 %v1361, 31
    %v1364 = vsub.s32 0, %v1363
    %v1365 = vsel %vm1359, %v1364, %v1363
    %vm1366 = vcmp.lt.s32.totalorder %v65, 0
    %v1367 = vsub.s32 0, %v65
    %v1368 = vsel %vm1366, %v1367, %v65
    %v1369 = vshrl.u32 %v1368, 5
    %v1370 = vand.u32 %v1368, 31
    %v1371 = vsub.s32 0, %v1370
    %v1372 = vsel %vm1366, %v1371, %v1370
    %vm1373 = vcmp.lt.s32.totalorder %v66, 0
    %v1374 = vsub.s32 0, %v66
    %v1375 = vsel %vm1373, %v1374, %v66
    %v1376 = vshrl.u32 %v1375, 5
    %v1377 = vand.u32 %v1375, 31
    %v1378 = vsub.s32 0, %v1377
    %v1379 = vsel %vm1373, %v1378, %v1377
    %vm1380 = vcmp.ne.s32.totalorder %v1330, 0
    %vm1381 = vcmp.ne.s32.totalorder %v1337, 0
    %vm1382 = vcmp.ne.s32.totalorder %v1344, 0
    %vm1383 = vcmp.ne.s32.totalorder %v1351, 0
    %vm1384 = vcmp.ne.s32.totalorder %v1358, 0
    %vm1385 = vcmp.ne.s32.totalorder %v1365, 0
    %vm1386 = vcmp.ne.s32.totalorder %v1372, 0
    %vm1387 = vcmp.ne.s32.totalorder %v1379, 0
    %vm1388 = vcmp.lt.s32.totalorder %v1330, 0
    %vm1389 = vcmp.lt.s32.totalorder %v1337, 0
    %vm1390 = vcmp.lt.s32.totalorder %v1344, 0
    %vm1391 = vcmp.lt.s32.totalorder %v1351, 0
    %vm1392 = vcmp.lt.s32.totalorder %v1358, 0
    %vm1393 = vcmp.lt.s32.totalorder %v1365, 0
    %vm1394 = vcmp.lt.s32.totalorder %v1372, 0
    %vm1395 = vcmp.lt.s32.totalorder %v1379, 0
    %vm1396 = vmand %vm1388, %vm1380
    %vm1397 = vmand %vm1389, %vm1381
    %vm1398 = vmand %vm1390, %vm1382
    %vm1399 = vmand %vm1391, %vm1383
    %vm1400 = vmand %vm1392, %vm1384
    %vm1401 = vmand %vm1393, %vm1385
    %vm1402 = vmand %vm1394, %vm1386
    %vm1403 = vmand %vm1395, %vm1387
    %v1404 = vadd.s32 %v1330, 32
    %v1405 = vadd.s32 %v1337, 32
    %v1406 = vadd.s32 %v1344, 32
    %v1407 = vadd.s32 %v1351, 32
    %v1408 = vadd.s32 %v1358, 32
    %v1409 = vadd.s32 %v1365, 32
    %v1410 = vadd.s32 %v1372, 32
    %v1411 = vadd.s32 %v1379, 32
    %v1412 = vsel %vm1396, %v1404, %v1330
    %v1413 = vsel %vm1397, %v1405, %v1337
    %v1414 = vsel %vm1398, %v1406, %v1344
    %v1415 = vsel %vm1399, %v1407, %v1351
    %v1416 = vsel %vm1400, %v1408, %v1358
    %v1417 = vsel %vm1401, %v1409, %v1365
    %v1418 = vsel %vm1402, %v1410, %v1372
    %v1419 = vsel %vm1403, %v1411, %v1379
    %s1420 = scalar_lea.vmem [#allocation2], 7
    %v1421 = vld [vmem:[%s1420] ss:$2 sm:$0xff]
    %s1422 = scalar_lea.vmem [#allocation2], 23
    %v1423 = vld [vmem:[%s1422] ss:$2 sm:$0xff]
    %s1424 = scalar_lea.vmem [#allocation2], 39
    %v1425 = vld [vmem:[%s1424] ss:$2 sm:$0xff]
    %s1426 = scalar_lea.vmem [#allocation2], 55
    %v1427 = vld [vmem:[%s1426] ss:$2 sm:$0xff]
    %s1428 = scalar_lea.vmem [#allocation2], 71
    %v1429 = vld [vmem:[%s1428] ss:$2 sm:$0xff]
    %s1430 = scalar_lea.vmem [#allocation2], 87
    %v1431 = vld [vmem:[%s1430] ss:$2 sm:$0xff]
    %s1432 = scalar_lea.vmem [#allocation2], 103
    %v1433 = vld [vmem:[%s1432] ss:$2 sm:$0xff]
    %s1434 = scalar_lea.vmem [#allocation2], 119
    %v1435 = vld [vmem:[%s1434] ss:$2 sm:$0xff]
    %vm1436 = vcmp.eq.s32.totalorder %v1412, 0
    %vm1437 = vcmp.eq.s32.totalorder %v1413, 0
    %vm1438 = vcmp.eq.s32.totalorder %v1414, 0
    %vm1439 = vcmp.eq.s32.totalorder %v1415, 0
    %vm1440 = vcmp.eq.s32.totalorder %v1416, 0
    %vm1441 = vcmp.eq.s32.totalorder %v1417, 0
    %vm1442 = vcmp.eq.s32.totalorder %v1418, 0
    %vm1443 = vcmp.eq.s32.totalorder %v1419, 0
    %v1444 = vsel %vm1436, 0.0, %v1421
    %v1445 = vsel %vm1437, 0.0, %v1423
    %v1446 = vsel %vm1438, 0.0, %v1425
    %v1447 = vsel %vm1439, 0.0, %v1427
    %v1448 = vsel %vm1440, 0.0, %v1429
    %v1449 = vsel %vm1441, 0.0, %v1431
    %v1450 = vsel %vm1442, 0.0, %v1433
    %v1451 = vsel %vm1443, 0.0, %v1435
    %v1452 = vld [vmem:[#allocation7 + $0x200] sm:$0xff]
    %v1453 = vld [vmem:[#allocation7 + $0x208] sm:$0xff]
    %v1454 = vld [vmem:[#allocation7 + $0x210] sm:$0xff]
    %v1455 = vld [vmem:[#allocation7 + $0x218] sm:$0xff]
    %v1456 = vld [vmem:[#allocation7 + $0x220] sm:$0xff]
    %v1457 = vld [vmem:[#allocation7 + $0x228] sm:$0xff]
    %v1458 = vld [vmem:[#allocation7 + $0x230] sm:$0xff]
    %v1459 = vld [vmem:[#allocation7 + $0x238] sm:$0xff]
    %v1460 = vld [vmem:[#allocation7 + $0x240] sm:$0xff]
    %v1461 = vld [vmem:[#allocation7 + $0x248] sm:$0xff]
    %v1462 = vld [vmem:[#allocation7 + $0x250] sm:$0xff]
    %v1463 = vld [vmem:[#allocation7 + $0x258] sm:$0xff]
    %v1464 = vld [vmem:[#allocation7 + $0x260] sm:$0xff]
    %v1465 = vld [vmem:[#allocation7 + $0x268] sm:$0xff]
    %v1466 = vld [vmem:[#allocation7 + $0x270] sm:$0xff]
    %v1467 = vld [vmem:[#allocation7 + $0x278] sm:$0xff]
    %s1468 = scalar_lea.vmem [#allocation2], 8
    %v1469 = vld [vmem:[%s1468] ss:$2 sm:$0xff]
    %s1470 = scalar_lea.vmem [#allocation2], 24
    %v1471 = vld [vmem:[%s1470] ss:$2 sm:$0xff]
    %s1472 = scalar_lea.vmem [#allocation2], 40
    %v1473 = vld [vmem:[%s1472] ss:$2 sm:$0xff]
    %s1474 = scalar_lea.vmem [#allocation2], 56
    %v1475 = vld [vmem:[%s1474] ss:$2 sm:$0xff]
    %s1476 = scalar_lea.vmem [#allocation2], 72
    %v1477 = vld [vmem:[%s1476] ss:$2 sm:$0xff]
    %s1478 = scalar_lea.vmem [#allocation2], 88
    %v1479 = vld [vmem:[%s1478] ss:$2 sm:$0xff]
    %s1480 = scalar_lea.vmem [#allocation2], 104
    %v1481 = vld [vmem:[%s1480] ss:$2 sm:$0xff]
    %s1482 = scalar_lea.vmem [#allocation2], 120
    %v1483 = vld [vmem:[%s1482] ss:$2 sm:$0xff]
    %v1484 = vld [vmem:[#allocation7 + $0x280] sm:$0xff]
    %v1485 = vld [vmem:[#allocation7 + $0x288] sm:$0xff]
    %v1486 = vld [vmem:[#allocation7 + $0x290] sm:$0xff]
    %v1487 = vld [vmem:[#allocation7 + $0x298] sm:$0xff]
    %v1488 = vld [vmem:[#allocation7 + $0x2a0] sm:$0xff]
    %v1489 = vld [vmem:[#allocation7 + $0x2a8] sm:$0xff]
    %v1490 = vld [vmem:[#allocation7 + $0x2b0] sm:$0xff]
    %v1491 = vld [vmem:[#allocation7 + $0x2b8] sm:$0xff]
    %v1492 = vld [vmem:[#allocation7 + $0x2c0] sm:$0xff]
    %v1493 = vld [vmem:[#allocation7 + $0x2c8] sm:$0xff]
    %v1494 = vld [vmem:[#allocation7 + $0x2d0] sm:$0xff]
    %v1495 = vld [vmem:[#allocation7 + $0x2d8] sm:$0xff]
    %v1496 = vld [vmem:[#allocation7 + $0x2e0] sm:$0xff]
    %v1497 = vld [vmem:[#allocation7 + $0x2e8] sm:$0xff]
    %v1498 = vld [vmem:[#allocation7 + $0x2f0] sm:$0xff]
    %v1499 = vld [vmem:[#allocation7 + $0x2f8] sm:$0xff]
    %1500 = vmatprep.subr.mxu0 0.0
    %1501 = vmatpush1.msra.mxu0 %v1484
    %1502 = vmatprep.subr.mxu0 0.0
    %1503 = vmatpush1.msra.mxu0 %v1485
    %1504 = vmatprep.subr.mxu0 0.0
    %1505 = vmatpush1.msra.mxu0 %v1486
    %1506 = vmatprep.subr.mxu0 0.0
    %1507 = vmatpush1.msra.mxu0 %v1487
    %1508 = vmatprep.subr.mxu0 0.0
    %1509 = vmatpush1.msra.mxu0 %v1488
    %1510 = vmatprep.subr.mxu0 0.0
    %1511 = vmatpush1.msra.mxu0 %v1489
    %1512 = vmatprep.subr.mxu0 0.0
    %1513 = vmatpush1.msra.mxu0 %v1490
    %1514 = vmatprep.subr.mxu0 0.0
    %1515 = vmatpush1.msra.mxu0 %v1491
    %1516 = vmatprep.subr.mxu0 0.0
    %1517 = vmatpush1.msra.mxu0 %v1492
    %1518 = vmatprep.subr.mxu0 0.0
    %1519 = vmatpush1.msra.mxu0 %v1493
    %1520 = vmatprep.subr.mxu0 0.0
    %1521 = vmatpush1.msra.mxu0 %v1494
    %1522 = vmatprep.subr.mxu0 0.0
    %1523 = vmatpush1.msra.mxu0 %v1495
    %1524 = vmatprep.subr.mxu0 0.0
    %1525 = vmatpush1.msra.mxu0 %v1496
    %1526 = vmatprep.subr.mxu0 0.0
    %1527 = vmatpush1.msra.mxu0 %v1497
    %1528 = vmatprep.subr.mxu0 0.0
    %1529 = vmatpush1.msra.mxu0 %v1498
    %1530 = vmatprep.subr.mxu0 0.0
    %1531 = vmatpush1.msra.mxu0 %v1499
    %1532 = vmatprep.subr.mxu0 0.0
    %1533 = vmatpush1.msra.mxu0 0.0
    %1534 = vmatprep.subr.mxu0 0.0
    %1535 = vmatpush1.msra.mxu0 0.0
    %1536 = vmatprep.subr.mxu0 0.0
    %1537 = vmatpush1.msra.mxu0 0.0
    %1538 = vmatprep.subr.mxu0 0.0
    %1539 = vmatpush1.msra.mxu0 0.0
    %1540 = vmatprep.subr.mxu0 0.0
    %1541 = vmatpush1.msra.mxu0 0.0
    %1542 = vmatprep.subr.mxu0 0.0
    %1543 = vmatpush1.msra.mxu0 0.0
    %1544 = vmatprep.subr.mxu0 0.0
    %1545 = vmatpush1.msra.mxu0 0.0
    %1546 = vmatprep.subr.mxu0 0.0
    %1547 = vmatpush1.msra.mxu0 0.0
    %1548 = vmatprep.subr.mxu0 0.0
    %1549 = vmatpush1.msra.mxu0 0.0
    %1550 = vmatprep.subr.mxu0 0.0
    %1551 = vmatpush1.msra.mxu0 0.0
    %1552 = vmatprep.subr.mxu0 0.0
    %1553 = vmatpush1.msra.mxu0 0.0
    %1554 = vmatprep.subr.mxu0 0.0
    %1555 = vmatpush1.msra.mxu0 0.0
    %1556 = vmatprep.subr.mxu0 0.0
    %1557 = vmatpush1.msra.mxu0 0.0
    %1558 = vmatprep.subr.mxu0 0.0
    %1559 = vmatpush1.msra.mxu0 0.0
    %1560 = vmatprep.subr.mxu0 0.0
    %1561 = vmatpush1.msra.mxu0 0.0
    %1562 = vmatprep.subr.mxu0 0.0
    %1563 = vmatpush1.msra.mxu0 0.0
    %1564 = vmatprep.mubr.f32.mxu0 0.0
    %1565 = vmatmul.mubr.f32.gmra.mrb[0].mxu0 %v1469
    %v1566 = vpop.f32.mrb[0].mxu0
    %v1567 = vadd.f32 0.0, %v1566
    %v1568 = vpop.f32.mrb[0].mxu0
    %1569 = vmatprep.mubr.f32.mxu0 0.0
    %1570 = vmatmul.mubr.f32.gmra.mrb[0].mxu0 %v1471
    %v1571 = vpop.f32.mrb[0].mxu0
    %v1572 = vadd.f32 0.0, %v1571
    %v1573 = vpop.f32.mrb[0].mxu0
    %1574 = vmatprep.mubr.f32.mxu0 0.0
    %1575 = vmatmul.mubr.f32.gmra.mrb[0].mxu0 %v1473
    %v1576 = vpop.f32.mrb[0].mxu0
    %v1577 = vadd.f32 0.0, %v1576
    %v1578 = vpop.f32.mrb[0].mxu0
    %1579 = vmatprep.mubr.f32.mxu0 0.0
    %1580 = vmatmul.mubr.f32.gmra.mrb[0].mxu0 %v1475
    %v1581 = vpop.f32.mrb[0].mxu0
    %v1582 = vadd.f32 0.0, %v1581
    %v1583 = vpop.f32.mrb[0].mxu0
    %1584 = vmatprep.mubr.f32.mxu0 0.0
    %1585 = vmatmul.mubr.f32.gmra.mrb[0].mxu0 %v1477
    %v1586 = vpop.f32.mrb[0].mxu0
    %v1587 = vadd.f32 0.0, %v1586
    %v1588 = vpop.f32.mrb[0].mxu0
    %1589 = vmatprep.mubr.f32.mxu0 0.0
    %1590 = vmatmul.mubr.f32.gmra.mrb[0].mxu0 %v1479
    %v1591 = vpop.f32.mrb[0].mxu0
    %v1592 = vadd.f32 0.0, %v1591
    %v1593 = vpop.f32.mrb[0].mxu0
    %1594 = vmatprep.mubr.f32.mxu0 0.0
    %1595 = vmatmul.mubr.f32.gmra.mrb[0].mxu0 %v1481
    %v1596 = vpop.f32.mrb[0].mxu0
    %v1597 = vadd.f32 0.0, %v1596
    %v1598 = vpop.f32.mrb[0].mxu0
    %1599 = vmatprep.mubr.f32.mxu0 0.0
    %1600 = vmatmul.mubr.f32.gmra.mrb[0].mxu0 %v1483
    %v1601 = vpop.f32.mrb[0].mxu0
    %v1602 = vadd.f32 0.0, %v1601
    %v1603 = vpop.f32.mrb[0].mxu0
    %1604 = vdwg.mxu0
    %1605 = vmatprep.subr.mxu0 0.0
    %1606 = vmatpush1.msra.mxu0 %v1452
    %1607 = vmatprep.subr.mxu0 0.0
    %1608 = vmatpush1.msra.mxu0 %v1453
    %1609 = vmatprep.subr.mxu0 0.0
    %1610 = vmatpush1.msra.mxu0 %v1454
    %1611 = vmatprep.subr.mxu0 0.0
    %1612 = vmatpush1.msra.mxu0 %v1455
    %1613 = vmatprep.subr.mxu0 0.0
    %1614 = vmatpush1.msra.mxu0 %v1456
    %1615 = vmatprep.subr.mxu0 0.0
    %1616 = vmatpush1.msra.mxu0 %v1457
    %1617 = vmatprep.subr.mxu0 0.0
    %1618 = vmatpush1.msra.mxu0 %v1458
    %1619 = vmatprep.subr.mxu0 0.0
    %1620 = vmatpush1.msra.mxu0 %v1459
    %1621 = vmatprep.subr.mxu0 0.0
    %1622 = vmatpush1.msra.mxu0 %v1460
    %1623 = vmatprep.subr.mxu0 0.0
    %1624 = vmatpush1.msra.mxu0 %v1461
    %1625 = vmatprep.subr.mxu0 0.0
    %1626 = vmatpush1.msra.mxu0 %v1462
    %1627 = vmatprep.subr.mxu0 0.0
    %1628 = vmatpush1.msra.mxu0 %v1463
    %1629 = vmatprep.subr.mxu0 0.0
    %1630 = vmatpush1.msra.mxu0 %v1464
    %1631 = vmatprep.subr.mxu0 0.0
    %1632 = vmatpush1.msra.mxu0 %v1465
    %1633 = vmatprep.subr.mxu0 0.0
    %1634 = vmatpush1.msra.mxu0 %v1466
    %1635 = vmatprep.subr.mxu0 0.0
    %1636 = vmatpush1.msra.mxu0 %v1467
    %1637 = vmatprep.subr.mxu0 0.0
    %1638 = vmatpush1.msra.mxu0 0.0
    %1639 = vmatprep.subr.mxu0 0.0
    %1640 = vmatpush1.msra.mxu0 0.0
    %1641 = vmatprep.subr.mxu0 0.0
    %1642 = vmatpush1.msra.mxu0 0.0
    %1643 = vmatprep.subr.mxu0 0.0
    %1644 = vmatpush1.msra.mxu0 0.0
    %1645 = vmatprep.subr.mxu0 0.0
    %1646 = vmatpush1.msra.mxu0 0.0
    %1647 = vmatprep.subr.mxu0 0.0
    %1648 = vmatpush1.msra.mxu0 0.0
    %1649 = vmatprep.subr.mxu0 0.0
    %1650 = vmatpush1.msra.mxu0 0.0
    %1651 = vmatprep.subr.mxu0 0.0
    %1652 = vmatpush1.msra.mxu0 0.0
    %1653 = vmatprep.subr.mxu0 0.0
    %1654 = vmatpush1.msra.mxu0 0.0
    %1655 = vmatprep.subr.mxu0 0.0
    %1656 = vmatpush1.msra.mxu0 0.0
    %1657 = vmatprep.subr.mxu0 0.0
    %1658 = vmatpush1.msra.mxu0 0.0
    %1659 = vmatprep.subr.mxu0 0.0
    %1660 = vmatpush1.msra.mxu0 0.0
    %1661 = vmatprep.subr.mxu0 0.0
    %1662 = vmatpush1.msra.mxu0 0.0
    %1663 = vmatprep.subr.mxu0 0.0
    %1664 = vmatpush1.msra.mxu0 0.0
    %1665 = vmatprep.subr.mxu0 0.0
    %1666 = vmatpush1.msra.mxu0 0.0
    %1667 = vmatprep.subr.mxu0 0.0
    %1668 = vmatpush1.msra.mxu0 0.0
    %1669 = vmatprep.mubr.f32.mxu0 0.0
    %1670 = vmatmul.mubr.f32.gmra.mrb[0].mxu0 %v1444
    %v1671 = vpop.f32.mrb[0].mxu0
    %v1672 = vadd.f32 %v1567, %v1671
    %v1673 = vpop.f32.mrb[0].mxu0
    %1674 = vmatprep.mubr.f32.mxu0 0.0
    %1675 = vmatmul.mubr.f32.gmra.mrb[0].mxu0 %v1445
    %v1676 = vpop.f32.mrb[0].mxu0
    %v1677 = vadd.f32 %v1572, %v1676
    %v1678 = vpop.f32.mrb[0].mxu0
    %1679 = vmatprep.mubr.f32.mxu0 0.0
    %1680 = vmatmul.mubr.f32.gmra.mrb[0].mxu0 %v1446
    %v1681 = vpop.f32.mrb[0].mxu0
    %v1682 = vadd.f32 %v1577, %v1681
    %v1683 = vpop.f32.mrb[0].mxu0
    %1684 = vmatprep.mubr.f32.mxu0 0.0
    %1685 = vmatmul.mubr.f32.gmra.mrb[0].mxu0 %v1447
    %v1686 = vpop.f32.mrb[0].mxu0
    %v1687 = vadd.f32 %v1582, %v1686
    %v1688 = vpop.f32.mrb[0].mxu0
    %1689 = vmatprep.mubr.f32.mxu0 0.0
    %1690 = vmatmul.mubr.f32.gmra.mrb[0].mxu0 %v1448
    %v1691 = vpop.f32.mrb[0].mxu0
    %v1692 = vadd.f32 %v1587, %v1691
    %v1693 = vpop.f32.mrb[0].mxu0
    %1694 = vmatprep.mubr.f32.mxu0 0.0
    %1695 = vmatmul.mubr.f32.gmra.mrb[0].mxu0 %v1449
    %v1696 = vpop.f32.mrb[0].mxu0
    %v1697 = vadd.f32 %v1592, %v1696
    %v1698 = vpop.f32.mrb[0].mxu0
    %1699 = vmatprep.mubr.f32.mxu0 0.0
    %1700 = vmatmul.mubr.f32.gmra.mrb[0].mxu0 %v1450
    %v1701 = vpop.f32.mrb[0].mxu0
    %v1702 = vadd.f32 %v1597, %v1701
    %v1703 = vpop.f32.mrb[0].mxu0
    %1704 = vmatprep.mubr.f32.mxu0 0.0
    %1705 = vmatmul.mubr.f32.gmra.mrb[0].mxu0 %v1451
    %v1706 = vpop.f32.mrb[0].mxu0
    %v1707 = vadd.f32 %v1602, %v1706
    %v1708 = vpop.f32.mrb[0].mxu0
    %1709 = vdwg.mxu0
    %s1710 = scalar_lea.vmem [#allocation2], 9
    %v1711 = vld [vmem:[%s1710] ss:$2 sm:$0xff]
    %s1712 = scalar_lea.vmem [#allocation2], 25
    %v1713 = vld [vmem:[%s1712] ss:$2 sm:$0xff]
    %s1714 = scalar_lea.vmem [#allocation2], 41
    %v1715 = vld [vmem:[%s1714] ss:$2 sm:$0xff]
    %s1716 = scalar_lea.vmem [#allocation2], 57
    %v1717 = vld [vmem:[%s1716] ss:$2 sm:$0xff]
    %s1718 = scalar_lea.vmem [#allocation2], 73
    %v1719 = vld [vmem:[%s1718] ss:$2 sm:$0xff]
    %s1720 = scalar_lea.vmem [#allocation2], 89
    %v1721 = vld [vmem:[%s1720] ss:$2 sm:$0xff]
    %s1722 = scalar_lea.vmem [#allocation2], 105
    %v1723 = vld [vmem:[%s1722] ss:$2 sm:$0xff]
    %s1724 = scalar_lea.vmem [#allocation2], 121
    %v1725 = vld [vmem:[%s1724] ss:$2 sm:$0xff]
    %v1726 = vld [vmem:[#allocation7 + $0x300] sm:$0xff]
    %v1727 = vld [vmem:[#allocation7 + $0x308] sm:$0xff]
    %v1728 = vld [vmem:[#allocation7 + $0x310] sm:$0xff]
    %v1729 = vld [vmem:[#allocation7 + $0x318] sm:$0xff]
    %v1730 = vld [vmem:[#allocation7 + $0x320] sm:$0xff]
    %v1731 = vld [vmem:[#allocation7 + $0x328] sm:$0xff]
    %v1732 = vld [vmem:[#allocation7 + $0x330] sm:$0xff]
    %v1733 = vld [vmem:[#allocation7 + $0x338] sm:$0xff]
    %v1734 = vld [vmem:[#allocation7 + $0x340] sm:$0xff]
    %v1735 = vld [vmem:[#allocation7 + $0x348] sm:$0xff]
    %v1736 = vld [vmem:[#allocation7 + $0x350] sm:$0xff]
    %v1737 = vld [vmem:[#allocation7 + $0x358] sm:$0xff]
    %v1738 = vld [vmem:[#allocation7 + $0x360] sm:$0xff]
    %v1739 = vld [vmem:[#allocation7 + $0x368] sm:$0xff]
    %v1740 = vld [vmem:[#allocation7 + $0x370] sm:$0xff]
    %v1741 = vld [vmem:[#allocation7 + $0x378] sm:$0xff]
    %1742 = vmatprep.subr.mxu0 0.0
    %1743 = vmatpush1.msra.mxu0 %v1726
    %1744 = vmatprep.subr.mxu0 0.0
    %1745 = vmatpush1.msra.mxu0 %v1727
    %1746 = vmatprep.subr.mxu0 0.0
    %1747 = vmatpush1.msra.mxu0 %v1728
    %1748 = vmatprep.subr.mxu0 0.0
    %1749 = vmatpush1.msra.mxu0 %v1729
    %1750 = vmatprep.subr.mxu0 0.0
    %1751 = vmatpush1.msra.mxu0 %v1730
    %1752 = vmatprep.subr.mxu0 0.0
    %1753 = vmatpush1.msra.mxu0 %v1731
    %1754 = vmatprep.subr.mxu0 0.0
    %1755 = vmatpush1.msra.mxu0 %v1732
    %1756 = vmatprep.subr.mxu0 0.0
    %1757 = vmatpush1.msra.mxu0 %v1733
    %1758 = vmatprep.subr.mxu0 0.0
    %1759 = vmatpush1.msra.mxu0 %v1734
    %1760 = vmatprep.subr.mxu0 0.0
    %1761 = vmatpush1.msra.mxu0 %v1735
    %1762 = vmatprep.subr.mxu0 0.0
    %1763 = vmatpush1.msra.mxu0 %v1736
    %1764 = vmatprep.subr.mxu0 0.0
    %1765 = vmatpush1.msra.mxu0 %v1737
    %1766 = vmatprep.subr.mxu0 0.0
    %1767 = vmatpush1.msra.mxu0 %v1738
    %1768 = vmatprep.subr.mxu0 0.0
    %1769 = vmatpush1.msra.mxu0 %v1739
    %1770 = vmatprep.subr.mxu0 0.0
    %1771 = vmatpush1.msra.mxu0 %v1740
    %1772 = vmatprep.subr.mxu0 0.0
    %1773 = vmatpush1.msra.mxu0 %v1741
    %1774 = vmatprep.subr.mxu0 0.0
    %1775 = vmatpush1.msra.mxu0 0.0
    %1776 = vmatprep.subr.mxu0 0.0
    %1777 = vmatpush1.msra.mxu0 0.0
    %1778 = vmatprep.subr.mxu0 0.0
    %1779 = vmatpush1.msra.mxu0 0.0
    %1780 = vmatprep.subr.mxu0 0.0
    %1781 = vmatpush1.msra.mxu0 0.0
    %1782 = vmatprep.subr.mxu0 0.0
    %1783 = vmatpush1.msra.mxu0 0.0
    %1784 = vmatprep.subr.mxu0 0.0
    %1785 = vmatpush1.msra.mxu0 0.0
    %1786 = vmatprep.subr.mxu0 0.0
    %1787 = vmatpush1.msra.mxu0 0.0
    %1788 = vmatprep.subr.mxu0 0.0
    %1789 = vmatpush1.msra.mxu0 0.0
    %1790 = vmatprep.subr.mxu0 0.0
    %1791 = vmatpush1.msra.mxu0 0.0
    %1792 = vmatprep.subr.mxu0 0.0
    %1793 = vmatpush1.msra.mxu0 0.0
    %1794 = vmatprep.subr.mxu0 0.0
    %1795 = vmatpush1.msra.mxu0 0.0
    %1796 = vmatprep.subr.mxu0 0.0
    %1797 = vmatpush1.msra.mxu0 0.0
    %1798 = vmatprep.subr.mxu0 0.0
    %1799 = vmatpush1.msra.mxu0 0.0
    %1800 = vmatprep.subr.mxu0 0.0
    %1801 = vmatpush1.msra.mxu0 0.0
    %1802 = vmatprep.subr.mxu0 0.0
    %1803 = vmatpush1.msra.mxu0 0.0
    %1804 = vmatprep.subr.mxu0 0.0
    %1805 = vmatpush1.msra.mxu0 0.0
    %1806 = vmatprep.mubr.f32.mxu0 0.0
    %1807 = vmatmul.mubr.f32.gmra.mrb[0].mxu0 %v1711
    %v1808 = vpop.f32.mrb[0].mxu0
    %v1809 = vadd.f32 0.0, %v1808
    %v1810 = vpop.f32.mrb[0].mxu0
    %1811 = vmatprep.mubr.f32.mxu0 0.0
    %1812 = vmatmul.mubr.f32.gmra.mrb[0].mxu0 %v1713
    %v1813 = vpop.f32.mrb[0].mxu0
    %v1814 = vadd.f32 0.0, %v1813
    %v1815 = vpop.f32.mrb[0].mxu0
    %1816 = vmatprep.mubr.f32.mxu0 0.0
    %1817 = vmatmul.mubr.f32.gmra.mrb[0].mxu0 %v1715
    %v1818 = vpop.f32.mrb[0].mxu0
    %v1819 = vadd.f32 0.0, %v1818
    %v1820 = vpop.f32.mrb[0].mxu0
    %1821 = vmatprep.mubr.f32.mxu0 0.0
    %1822 = vmatmul.mubr.f32.gmra.mrb[0].mxu0 %v1717
    %v1823 = vpop.f32.mrb[0].mxu0
    %v1824 = vadd.f32 0.0, %v1823
    %v1825 = vpop.f32.mrb[0].mxu0
    %1826 = vmatprep.mubr.f32.mxu0 0.0
    %1827 = vmatmul.mubr.f32.gmra.mrb[0].mxu0 %v1719
    %v1828 = vpop.f32.mrb[0].mxu0
    %v1829 = vadd.f32 0.0, %v1828
    %v1830 = vpop.f32.mrb[0].mxu0
    %1831 = vmatprep.mubr.f32.mxu0 0.0
    %1832 = vmatmul.mubr.f32.gmra.mrb[0].mxu0 %v1721
    %v1833 = vpop.f32.mrb[0].mxu0
    %v1834 = vadd.f32 0.0, %v1833
    %v1835 = vpop.f32.mrb[0].mxu0
    %1836 = vmatprep.mubr.f32.mxu0 0.0
    %1837 = vmatmul.mubr.f32.gmra.mrb[0].mxu0 %v1723
    %v1838 = vpop.f32.mrb[0].mxu0
    %v1839 = vadd.f32 0.0, %v1838
    %v1840 = vpop.f32.mrb[0].mxu0
    %1841 = vmatprep.mubr.f32.mxu0 0.0
    %1842 = vmatmul.mubr.f32.gmra.mrb[0].mxu0 %v1725
    %v1843 = vpop.f32.mrb[0].mxu0
    %v1844 = vadd.f32 0.0, %v1843
    %v1845 = vpop.f32.mrb[0].mxu0
    %1846 = vdwg.mxu0
    %v1847 = vadd.f32 %v1672, %v1809
    %v1848 = vadd.f32 %v1677, %v1814
    %v1849 = vadd.f32 %v1682, %v1819
    %v1850 = vadd.f32 %v1687, %v1824
    %v1851 = vadd.f32 %v1692, %v1829
    %v1852 = vadd.f32 %v1697, %v1834
    %v1853 = vadd.f32 %v1702, %v1839
    %v1854 = vadd.f32 %v1707, %v1844
    %s1855 = scalar_lea.vmem [#allocation2], 10
    %v1856 = vld [vmem:[%s1855] ss:$2 sm:$0xff]
    %s1857 = scalar_lea.vmem [#allocation2], 26
    %v1858 = vld [vmem:[%s1857] ss:$2 sm:$0xff]
    %s1859 = scalar_lea.vmem [#allocation2], 42
    %v1860 = vld [vmem:[%s1859] ss:$2 sm:$0xff]
    %s1861 = scalar_lea.vmem [#allocation2], 58
    %v1862 = vld [vmem:[%s1861] ss:$2 sm:$0xff]
    %s1863 = scalar_lea.vmem [#allocation2], 74
    %v1864 = vld [vmem:[%s1863] ss:$2 sm:$0xff]
    %s1865 = scalar_lea.vmem [#allocation2], 90
    %v1866 = vld [vmem:[%s1865] ss:$2 sm:$0xff]
    %s1867 = scalar_lea.vmem [#allocation2], 106
    %v1868 = vld [vmem:[%s1867] ss:$2 sm:$0xff]
    %s1869 = scalar_lea.vmem [#allocation2], 122
    %v1870 = vld [vmem:[%s1869] ss:$2 sm:$0xff]
    %vm1871 = vcmp.eq.s32.totalorder %v1412, 31
    %vm1872 = vcmp.eq.s32.totalorder %v1413, 31
    %vm1873 = vcmp.eq.s32.totalorder %v1414, 31
    %vm1874 = vcmp.eq.s32.totalorder %v1415, 31
    %vm1875 = vcmp.eq.s32.totalorder %v1416, 31
    %vm1876 = vcmp.eq.s32.totalorder %v1417, 31
    %vm1877 = vcmp.eq.s32.totalorder %v1418, 31
    %vm1878 = vcmp.eq.s32.totalorder %v1419, 31
    %v1879 = vsel %vm1871, 0.0, %v1856
    %v1880 = vsel %vm1872, 0.0, %v1858
    %v1881 = vsel %vm1873, 0.0, %v1860
    %v1882 = vsel %vm1874, 0.0, %v1862
    %v1883 = vsel %vm1875, 0.0, %v1864
    %v1884 = vsel %vm1876, 0.0, %v1866
    %v1885 = vsel %vm1877, 0.0, %v1868
    %v1886 = vsel %vm1878, 0.0, %v1870
    %v1887 = vld [vmem:[#allocation7 + $0x380] sm:$0xff]
    %v1888 = vld [vmem:[#allocation7 + $0x388] sm:$0xff]
    %v1889 = vld [vmem:[#allocation7 + $0x390] sm:$0xff]
    %v1890 = vld [vmem:[#allocation7 + $0x398] sm:$0xff]
    %v1891 = vld [vmem:[#allocation7 + $0x3a0] sm:$0xff]
    %v1892 = vld [vmem:[#allocation7 + $0x3a8] sm:$0xff]
    %v1893 = vld [vmem:[#allocation7 + $0x3b0] sm:$0xff]
    %v1894 = vld [vmem:[#allocation7 + $0x3b8] sm:$0xff]
    %v1895 = vld [vmem:[#allocation7 + $0x3c0] sm:$0xff]
    %v1896 = vld [vmem:[#allocation7 + $0x3c8] sm:$0xff]
    %v1897 = vld [vmem:[#allocation7 + $0x3d0] sm:$0xff]
    %v1898 = vld [vmem:[#allocation7 + $0x3d8] sm:$0xff]
    %v1899 = vld [vmem:[#allocation7 + $0x3e0] sm:$0xff]
    %v1900 = vld [vmem:[#allocation7 + $0x3e8] sm:$0xff]
    %v1901 = vld [vmem:[#allocation7 + $0x3f0] sm:$0xff]
    %v1902 = vld [vmem:[#allocation7 + $0x3f8] sm:$0xff]
    %1903 = vmatprep.subr.mxu0 0.0
    %1904 = vmatpush1.msra.mxu0 %v1887
    %1905 = vmatprep.subr.mxu0 0.0
    %1906 = vmatpush1.msra.mxu0 %v1888
    %1907 = vmatprep.subr.mxu0 0.0
    %1908 = vmatpush1.msra.mxu0 %v1889
    %1909 = vmatprep.subr.mxu0 0.0
    %1910 = vmatpush1.msra.mxu0 %v1890
    %1911 = vmatprep.subr.mxu0 0.0
    %1912 = vmatpush1.msra.mxu0 %v1891
    %1913 = vmatprep.subr.mxu0 0.0
    %1914 = vmatpush1.msra.mxu0 %v1892
    %1915 = vmatprep.subr.mxu0 0.0
    %1916 = vmatpush1.msra.mxu0 %v1893
    %1917 = vmatprep.subr.mxu0 0.0
    %1918 = vmatpush1.msra.mxu0 %v1894
    %1919 = vmatprep.subr.mxu0 0.0
    %1920 = vmatpush1.msra.mxu0 %v1895
    %1921 = vmatprep.subr.mxu0 0.0
    %1922 = vmatpush1.msra.mxu0 %v1896
    %1923 = vmatprep.subr.mxu0 0.0
    %1924 = vmatpush1.msra.mxu0 %v1897
    %1925 = vmatprep.subr.mxu0 0.0
    %1926 = vmatpush1.msra.mxu0 %v1898
    %1927 = vmatprep.subr.mxu0 0.0
    %1928 = vmatpush1.msra.mxu0 %v1899
    %1929 = vmatprep.subr.mxu0 0.0
    %1930 = vmatpush1.msra.mxu0 %v1900
    %1931 = vmatprep.subr.mxu0 0.0
    %1932 = vmatpush1.msra.mxu0 %v1901
    %1933 = vmatprep.subr.mxu0 0.0
    %1934 = vmatpush1.msra.mxu0 %v1902
    %1935 = vmatprep.subr.mxu0 0.0
    %1936 = vmatpush1.msra.mxu0 0.0
    %1937 = vmatprep.subr.mxu0 0.0
    %1938 = vmatpush1.msra.mxu0 0.0
    %1939 = vmatprep.subr.mxu0 0.0
    %1940 = vmatpush1.msra.mxu0 0.0
    %1941 = vmatprep.subr.mxu0 0.0
    %1942 = vmatpush1.msra.mxu0 0.0
    %1943 = vmatprep.subr.mxu0 0.0
    %1944 = vmatpush1.msra.mxu0 0.0
    %1945 = vmatprep.subr.mxu0 0.0
    %1946 = vmatpush1.msra.mxu0 0.0
    %1947 = vmatprep.subr.mxu0 0.0
    %1948 = vmatpush1.msra.mxu0 0.0
    %1949 = vmatprep.subr.mxu0 0.0
    %1950 = vmatpush1.msra.mxu0 0.0
    %1951 = vmatprep.subr.mxu0 0.0
    %1952 = vmatpush1.msra.mxu0 0.0
    %1953 = vmatprep.subr.mxu0 0.0
    %1954 = vmatpush1.msra.mxu0 0.0
    %1955 = vmatprep.subr.mxu0 0.0
    %1956 = vmatpush1.msra.mxu0 0.0
    %1957 = vmatprep.subr.mxu0 0.0
    %1958 = vmatpush1.msra.mxu0 0.0
    %1959 = vmatprep.subr.mxu0 0.0
    %1960 = vmatpush1.msra.mxu0 0.0
    %1961 = vmatprep.subr.mxu0 0.0
    %1962 = vmatpush1.msra.mxu0 0.0
    %1963 = vmatprep.subr.mxu0 0.0
    %1964 = vmatpush1.msra.mxu0 0.0
    %1965 = vmatprep.subr.mxu0 0.0
    %1966 = vmatpush1.msra.mxu0 0.0
    %1967 = vmatprep.mubr.f32.mxu0 0.0
    %1968 = vmatmul.mubr.f32.gmra.mrb[0].mxu0 %v1879
    %v1969 = vpop.f32.mrb[0].mxu0
    %v1970 = vadd.f32 0.0, %v1969
    %v1971 = vpop.f32.mrb[0].mxu0
    %1972 = vmatprep.mubr.f32.mxu0 0.0
    %1973 = vmatmul.mubr.f32.gmra.mrb[0].mxu0 %v1880
    %v1974 = vpop.f32.mrb[0].mxu0
    %v1975 = vadd.f32 0.0, %v1974
    %v1976 = vpop.f32.mrb[0].mxu0
    %1977 = vmatprep.mubr.f32.mxu0 0.0
    %1978 = vmatmul.mubr.f32.gmra.mrb[0].mxu0 %v1881
    %v1979 = vpop.f32.mrb[0].mxu0
    %v1980 = vadd.f32 0.0, %v1979
    %v1981 = vpop.f32.mrb[0].mxu0
    %1982 = vmatprep.mubr.f32.mxu0 0.0
    %1983 = vmatmul.mubr.f32.gmra.mrb[0].mxu0 %v1882
    %v1984 = vpop.f32.mrb[0].mxu0
    %v1985 = vadd.f32 0.0, %v1984
    %v1986 = vpop.f32.mrb[0].mxu0
    %1987 = vmatprep.mubr.f32.mxu0 0.0
    %1988 = vmatmul.mubr.f32.gmra.mrb[0].mxu0 %v1883
    %v1989 = vpop.f32.mrb[0].mxu0
    %v1990 = vadd.f32 0.0, %v1989
    %v1991 = vpop.f32.mrb[0].mxu0
    %1992 = vmatprep.mubr.f32.mxu0 0.0
    %1993 = vmatmul.mubr.f32.gmra.mrb[0].mxu0 %v1884
    %v1994 = vpop.f32.mrb[0].mxu0
    %v1995 = vadd.f32 0.0, %v1994
    %v1996 = vpop.f32.mrb[0].mxu0
    %1997 = vmatprep.mubr.f32.mxu0 0.0
    %1998 = vmatmul.mubr.f32.gmra.mrb[0].mxu0 %v1885
    %v1999 = vpop.f32.mrb[0].mxu0
    %v2000 = vadd.f32 0.0, %v1999
    %v2001 = vpop.f32.mrb[0].mxu0
    %2002 = vmatprep.mubr.f32.mxu0 0.0
    %2003 = vmatmul.mubr.f32.gmra.mrb[0].mxu0 %v1886
    %v2004 = vpop.f32.mrb[0].mxu0
    %v2005 = vadd.f32 0.0, %v2004
    %v2006 = vpop.f32.mrb[0].mxu0
    %2007 = vdwg.mxu0
    %v2008 = vadd.f32 %v1847, %v1970
    %v2009 = vadd.f32 %v1848, %v1975
    %v2010 = vadd.f32 %v1849, %v1980
    %v2011 = vadd.f32 %v1850, %v1985
    %v2012 = vadd.f32 %v1851, %v1990
    %v2013 = vadd.f32 %v1852, %v1995
    %v2014 = vadd.f32 %v1853, %v2000
    %v2015 = vadd.f32 %v1854, %v2005
    %v2016 = vadd.f32 %v2008, %v2009
    %v2017 = vadd.f32 %v2016, %v2010
    %v2018 = vadd.f32 %v2017, %v2011
    %v2019 = vadd.f32 %v2018, %v2012
    %v2020 = vadd.f32 %v2019, %v2013
    %v2021 = vadd.f32 %v2020, %v2014
    %v2022 = vadd.f32 %v2021, %v2015
    %v2023 = vrot.slane %v2022, 4
    %v2024 = vadd.f32 %v2022, %v2023
    %v2025 = vrot.slane %v2024, 2
    %v2026 = vadd.f32 %v2024, %v2025
    %v2027 = vrot.slane %v2026, 1
    %v2028 = vadd.f32 %v2026, %v2027
    %v2029 = vmul.f32 %v2028, 0.015625
    %v2030 = vsub.f32 %v2008, %v2029
    %v2031 = vsub.f32 %v2009, %v2029
    %v2032 = vsub.f32 %v2010, %v2029
    %v2033 = vsub.f32 %v2011, %v2029
    %v2034 = vsub.f32 %v2012, %v2029
    %v2035 = vsub.f32 %v2013, %v2029
    %v2036 = vsub.f32 %v2014, %v2029
    %v2037 = vsub.f32 %v2015, %v2029
    %v2038 = vmul.f32 %v2030, %v2030
    %v2039 = vmul.f32 %v2031, %v2031
    %v2040 = vmul.f32 %v2032, %v2032
    %v2041 = vmul.f32 %v2033, %v2033
    %v2042 = vmul.f32 %v2034, %v2034
    %v2043 = vmul.f32 %v2035, %v2035
    %v2044 = vmul.f32 %v2036, %v2036
    %v2045 = vmul.f32 %v2037, %v2037
    %v2046 = vadd.f32 %v2038, %v2039
    %v2047 = vadd.f32 %v2046, %v2040
    %v2048 = vadd.f32 %v2047, %v2041
    %v2049 = vadd.f32 %v2048, %v2042
    %v2050 = vadd.f32 %v2049, %v2043
    %v2051 = vadd.f32 %v2050, %v2044
    %v2052 = vadd.f32 %v2051, %v2045
    %v2053 = vrot.slane %v2052, 4
    %v2054 = vadd.f32 %v2052, %v2053
    %v2055 = vrot.slane %v2054, 2
    %v2056 = vadd.f32 %v2054, %v2055
    %v2057 = vrot.slane %v2056, 1
    %v2058 = vadd.f32 %v2056, %v2057
    %v2059 = vmul.f32 %v2058, 0.015625
    %v2060 = vld [vmem:[#allocation9 + $0x1] sm:$0x1]
    %v2061 = vld [vmem:[#allocation9 + $0x6] sm:$0x1]
    %v2062 = vadd.f32 %v2059, 1e-05
    %v2063 = vrsqrt.pop %v2062
    %v2064 = vmul.f32 %v2060, %v2063
    %v2065 = vmul.f32 %v2029, %v2064
    %v2066 = vsub.f32 %v2061, %v2065
    %v2067 = vlaneseq
    %v2068 = vshrl.u32 %v2067, 7
    %v2069 = vsub.s32 0, %v2068
    %v2070 = vrot.slane %v2064, %v2069
    %v2071 = vmul.f32 %v2008, %v2070
    %v2072 = vmul.f32 %v2009, %v2070
    %v2073 = vmul.f32 %v2010, %v2070
    %v2074 = vmul.f32 %v2011, %v2070
    %v2075 = vmul.f32 %v2012, %v2070
    %v2076 = vmul.f32 %v2013, %v2070
    %v2077 = vmul.f32 %v2014, %v2070
    %v2078 = vmul.f32 %v2015, %v2070
    %v2079 = vlaneseq
    %v2080 = vshrl.u32 %v2079, 7
    %v2081 = vsub.s32 0, %v2080
    %v2082 = vrot.slane %v2066, %v2081
    %v2083 = vadd.f32 %v2071, %v2082
    %v2084 = vadd.f32 %v2072, %v2082
    %v2085 = vadd.f32 %v2073, %v2082
    %v2086 = vadd.f32 %v2074, %v2082
    %v2087 = vadd.f32 %v2075, %v2082
    %v2088 = vadd.f32 %v2076, %v2082
    %v2089 = vadd.f32 %v2077, %v2082
    %v2090 = vadd.f32 %v2078, %v2082
    %vm2091 = vcmp.ge.f32.partialorder %v2083, 0.0
    %vm2092 = vcmp.ge.f32.partialorder %v2084, 0.0
    %vm2093 = vcmp.ge.f32.partialorder %v2085, 0.0
    %vm2094 = vcmp.ge.f32.partialorder %v2086, 0.0
    %vm2095 = vcmp.ge.f32.partialorder %v2087, 0.0
    %vm2096 = vcmp.ge.f32.partialorder %v2088, 0.0
    %vm2097 = vcmp.ge.f32.partialorder %v2089, 0.0
    %vm2098 = vcmp.ge.f32.partialorder %v2090, 0.0
    %v2099 = vmul.f32 %v2083, 0.2
    %v2100 = vmul.f32 %v2084, 0.2
    %v2101 = vmul.f32 %v2085, 0.2
    %v2102 = vmul.f32 %v2086, 0.2
    %v2103 = vmul.f32 %v2087, 0.2
    %v2104 = vmul.f32 %v2088, 0.2
    %v2105 = vmul.f32 %v2089, 0.2
    %v2106 = vmul.f32 %v2090, 0.2
    %v2107 = vsel %vm2091, %v2083, %v2099
    %v2108 = vsel %vm2092, %v2084, %v2100
    %v2109 = vsel %vm2093, %v2085, %v2101
    %v2110 = vsel %vm2094, %v2086, %v2102
    %v2111 = vsel %vm2095, %v2087, %v2103
    %v2112 = vsel %vm2096, %v2088, %v2104
    %v2113 = vsel %vm2097, %v2089, %v2105
    %v2114 = vsel %vm2098, %v2090, %v2106
    %2115 = vst [vmem:[#allocation3 + $0x7] sm:$0x1] 0.0
    %2116 = vst [vmem:[#allocation3 + $0x8] sm:$0xff] %v2107
    %2117 = vst [vmem:[#allocation3 + $0x10] sm:$0xff] %v2108
    %2118 = vst [vmem:[#allocation3 + $0x18] sm:$0xff] %v2109
    %2119 = vst [vmem:[#allocation3 + $0x20] sm:$0xff] %v2110
    %2120 = vst [vmem:[#allocation3 + $0x28] sm:$0xff] %v2111
    %2121 = vst [vmem:[#allocation3 + $0x30] sm:$0xff] %v2112
    %2122 = vst [vmem:[#allocation3 + $0x38] sm:$0xff] %v2113
    %2123 = vst [vmem:[#allocation3 + $0x40] sm:$0xff] %v2114
    %2124 = vst [vmem:[#allocation3 + $0x48] sm:$0x1] 0.0
    %vm2125 = vcmp.lt.s32.totalorder %v59, 0
    %v2126 = vsub.s32 0, %v59
    %v2127 = vsel %vm2125, %v2126, %v59
    %v2128 = vshrl.u32 %v2127, 4
    %v2129 = vand.u32 %v2127, 15
    %v2130 = vsub.s32 0, %v2129
    %v2131 = vsel %vm2125, %v2130, %v2129
    %vm2132 = vcmp.lt.s32.totalorder %v60, 0
    %v2133 = vsub.s32 0, %v60
    %v2134 = vsel %vm2132, %v2133, %v60
    %v2135 = vshrl.u32 %v2134, 4
    %v2136 = vand.u32 %v2134, 15
    %v2137 = vsub.s32 0, %v2136
    %v2138 = vsel %vm2132, %v2137, %v2136
    %vm2139 = vcmp.lt.s32.totalorder %v61, 0
    %v2140 = vsub.s32 0, %v61
    %v2141 = vsel %vm2139, %v2140, %v61
    %v2142 = vshrl.u32 %v2141, 4
    %v2143 = vand.u32 %v2141, 15
    %v2144 = vsub.s32 0, %v2143
    %v2145 = vsel %vm2139, %v2144, %v2143
    %vm2146 = vcmp.lt.s32.totalorder %v62, 0
    %v2147 = vsub.s32 0, %v62
    %v2148 = vsel %vm2146, %v2147, %v62
    %v2149 = vshrl.u32 %v2148, 4
    %v2150 = vand.u32 %v2148, 15
    %v2151 = vsub.s32 0, %v2150
    %v2152 = vsel %vm2146, %v2151, %v2150
    %vm2153 = vcmp.ne.s32.totalorder %v2131, 0
    %vm2154 = vcmp.ne.s32.totalorder %v2138, 0
    %vm2155 = vcmp.ne.s32.totalorder %v2145, 0
    %vm2156 = vcmp.ne.s32.totalorder %v2152, 0
    %vm2157 = vcmp.lt.s32.totalorder %v2131, 0
    %vm2158 = vcmp.lt.s32.totalorder %v2138, 0
    %vm2159 = vcmp.lt.s32.totalorder %v2145, 0
    %vm2160 = vcmp.lt.s32.totalorder %v2152, 0
    %vm2161 = vmand %vm2157, %vm2153
    %vm2162 = vmand %vm2158, %vm2154
    %vm2163 = vmand %vm2159, %vm2155
    %vm2164 = vmand %vm2160, %vm2156
    %v2165 = vadd.s32 %v2131, 16
    %v2166 = vadd.s32 %v2138, 16
    %v2167 = vadd.s32 %v2145, 16
    %v2168 = vadd.s32 %v2152, 16
    %v2169 = vsel %vm2161, %v2165, %v2131
    %v2170 = vsel %vm2162, %v2166, %v2138
    %v2171 = vsel %vm2163, %v2167, %v2145
    %v2172 = vsel %vm2164, %v2168, %v2152
    %s2173 = scalar_lea.vmem [#allocation3], 7
    %v2174 = vld [vmem:[%s2173] ss:$2 sm:$0xff]
    %s2175 = scalar_lea.vmem [#allocation3], 23
    %v2176 = vld [vmem:[%s2175] ss:$2 sm:$0xff]
    %s2177 = scalar_lea.vmem [#allocation3], 39
    %v2178 = vld [vmem:[%s2177] ss:$2 sm:$0xff]
    %s2179 = scalar_lea.vmem [#allocation3], 55
    %v2180 = vld [vmem:[%s2179] ss:$2 sm:$0xff]
    %vm2181 = vcmp.eq.s32.totalorder %v2169, 0
    %vm2182 = vcmp.eq.s32.totalorder %v2170, 0
    %vm2183 = vcmp.eq.s32.totalorder %v2171, 0
    %vm2184 = vcmp.eq.s32.totalorder %v2172, 0
    %v2185 = vsel %vm2181, 0.0, %v2174
    %v2186 = vsel %vm2182, 0.0, %v2176
    %v2187 = vsel %vm2183, 0.0, %v2178
    %v2188 = vsel %vm2184, 0.0, %v2180
    %v2189 = vld [vmem:[#allocation7 + $0x400] sm:$0xff]
    %v2190 = vld [vmem:[#allocation7 + $0x408] sm:$0xff]
    %v2191 = vld [vmem:[#allocation7 + $0x410] sm:$0xff]
    %v2192 = vld [vmem:[#allocation7 + $0x418] sm:$0xff]
    %v2193 = vld [vmem:[#allocation7 + $0x420] sm:$0xff]
    %v2194 = vld [vmem:[#allocation7 + $0x428] sm:$0xff]
    %v2195 = vld [vmem:[#allocation7 + $0x430] sm:$0xff]
    %v2196 = vld [vmem:[#allocation7 + $0x438] sm:$0xff]
    %v2197 = vld [vmem:[#allocation7 + $0x440] sm:$0xff]
    %v2198 = vld [vmem:[#allocation7 + $0x448] sm:$0xff]
    %v2199 = vld [vmem:[#allocation7 + $0x450] sm:$0xff]
    %v2200 = vld [vmem:[#allocation7 + $0x458] sm:$0xff]
    %v2201 = vld [vmem:[#allocation7 + $0x460] sm:$0xff]
    %v2202 = vld [vmem:[#allocation7 + $0x468] sm:$0xff]
    %v2203 = vld [vmem:[#allocation7 + $0x470] sm:$0xff]
    %v2204 = vld [vmem:[#allocation7 + $0x478] sm:$0xff]
    %s2205 = scalar_lea.vmem [#allocation3], 8
    %v2206 = vld [vmem:[%s2205] ss:$2 sm:$0xff]
    %s2207 = scalar_lea.vmem [#allocation3], 24
    %v2208 = vld [vmem:[%s2207] ss:$2 sm:$0xff]
    %s2209 = scalar_lea.vmem [#allocation3], 40
    %v2210 = vld [vmem:[%s2209] ss:$2 sm:$0xff]
    %s2211 = scalar_lea.vmem [#allocation3], 56
    %v2212 = vld [vmem:[%s2211] ss:$2 sm:$0xff]
    %v2213 = vld [vmem:[#allocation7 + $0x480] sm:$0xff]
    %v2214 = vld [vmem:[#allocation7 + $0x488] sm:$0xff]
    %v2215 = vld [vmem:[#allocation7 + $0x490] sm:$0xff]
    %v2216 = vld [vmem:[#allocation7 + $0x498] sm:$0xff]
    %v2217 = vld [vmem:[#allocation7 + $0x4a0] sm:$0xff]
    %v2218 = vld [vmem:[#allocation7 + $0x4a8] sm:$0xff]
    %v2219 = vld [vmem:[#allocation7 + $0x4b0] sm:$0xff]
    %v2220 = vld [vmem:[#allocation7 + $0x4b8] sm:$0xff]
    %v2221 = vld [vmem:[#allocation7 + $0x4c0] sm:$0xff]
    %v2222 = vld [vmem:[#allocation7 + $0x4c8] sm:$0xff]
    %v2223 = vld [vmem:[#allocation7 + $0x4d0] sm:$0xff]
    %v2224 = vld [vmem:[#allocation7 + $0x4d8] sm:$0xff]
    %v2225 = vld [vmem:[#allocation7 + $0x4e0] sm:$0xff]
    %v2226 = vld [vmem:[#allocation7 + $0x4e8] sm:$0xff]
    %v2227 = vld [vmem:[#allocation7 + $0x4f0] sm:$0xff]
    %v2228 = vld [vmem:[#allocation7 + $0x4f8] sm:$0xff]
    %2229 = vmatprep.subr.mxu0 0.0
    %2230 = vmatpush1.msra.mxu0 %v2213
    %2231 = vmatprep.subr.mxu0 0.0
    %2232 = vmatpush1.msra.mxu0 %v2214
    %2233 = vmatprep.subr.mxu0 0.0
    %2234 = vmatpush1.msra.mxu0 %v2215
    %2235 = vmatprep.subr.mxu0 0.0
    %2236 = vmatpush1.msra.mxu0 %v2216
    %2237 = vmatprep.subr.mxu0 0.0
    %2238 = vmatpush1.msra.mxu0 %v2217
    %2239 = vmatprep.subr.mxu0 0.0
    %2240 = vmatpush1.msra.mxu0 %v2218
    %2241 = vmatprep.subr.mxu0 0.0
    %2242 = vmatpush1.msra.mxu0 %v2219
    %2243 = vmatprep.subr.mxu0 0.0
    %2244 = vmatpush1.msra.mxu0 %v2220
    %2245 = vmatprep.subr.mxu0 0.0
    %2246 = vmatpush1.msra.mxu0 %v2221
    %2247 = vmatprep.subr.mxu0 0.0
    %2248 = vmatpush1.msra.mxu0 %v2222
    %2249 = vmatprep.subr.mxu0 0.0
    %2250 = vmatpush1.msra.mxu0 %v2223
    %2251 = vmatprep.subr.mxu0 0.0
    %2252 = vmatpush1.msra.mxu0 %v2224
    %2253 = vmatprep.subr.mxu0 0.0
    %2254 = vmatpush1.msra.mxu0 %v2225
    %2255 = vmatprep.subr.mxu0 0.0
    %2256 = vmatpush1.msra.mxu0 %v2226
    %2257 = vmatprep.subr.mxu0 0.0
    %2258 = vmatpush1.msra.mxu0 %v2227
    %2259 = vmatprep.subr.mxu0 0.0
    %2260 = vmatpush1.msra.mxu0 %v2228
    %2261 = vmatprep.subr.mxu0 0.0
    %2262 = vmatpush1.msra.mxu0 0.0
    %2263 = vmatprep.subr.mxu0 0.0
    %2264 = vmatpush1.msra.mxu0 0.0
    %2265 = vmatprep.subr.mxu0 0.0
    %2266 = vmatpush1.msra.mxu0 0.0
    %2267 = vmatprep.subr.mxu0 0.0
    %2268 = vmatpush1.msra.mxu0 0.0
    %2269 = vmatprep.subr.mxu0 0.0
    %2270 = vmatpush1.msra.mxu0 0.0
    %2271 = vmatprep.subr.mxu0 0.0
    %2272 = vmatpush1.msra.mxu0 0.0
    %2273 = vmatprep.subr.mxu0 0.0
    %2274 = vmatpush1.msra.mxu0 0.0
    %2275 = vmatprep.subr.mxu0 0.0
    %2276 = vmatpush1.msra.mxu0 0.0
    %2277 = vmatprep.subr.mxu0 0.0
    %2278 = vmatpush1.msra.mxu0 0.0
    %2279 = vmatprep.subr.mxu0 0.0
    %2280 = vmatpush1.msra.mxu0 0.0
    %2281 = vmatprep.subr.mxu0 0.0
    %2282 = vmatpush1.msra.mxu0 0.0
    %2283 = vmatprep.subr.mxu0 0.0
    %2284 = vmatpush1.msra.mxu0 0.0
    %2285 = vmatprep.subr.mxu0 0.0
    %2286 = vmatpush1.msra.mxu0 0.0
    %2287 = vmatprep.subr.mxu0 0.0
    %2288 = vmatpush1.msra.mxu0 0.0
    %2289 = vmatprep.subr.mxu0 0.0
    %2290 = vmatpush1.msra.mxu0 0.0
    %2291 = vmatprep.subr.mxu0 0.0
    %2292 = vmatpush1.msra.mxu0 0.0
    %2293 = vmatprep.mubr.f32.mxu0 0.0
    %2294 = vmatmul.mubr.f32.gmra.mrb[0].mxu0 %v2206
    %v2295 = vpop.f32.mrb[0].mxu0
    %v2296 = vadd.f32 0.0, %v2295
    %v2297 = vpop.f32.mrb[0].mxu0
    %2298 = vmatprep.mubr.f32.mxu0 0.0
    %2299 = vmatmul.mubr.f32.gmra.mrb[0].mxu0 %v2208
    %v2300 = vpop.f32.mrb[0].mxu0
    %v2301 = vadd.f32 0.0, %v2300
    %v2302 = vpop.f32.mrb[0].mxu0
    %2303 = vmatprep.mubr.f32.mxu0 0.0
    %2304 = vmatmul.mubr.f32.gmra.mrb[0].mxu0 %v2210
    %v2305 = vpop.f32.mrb[0].mxu0
    %v2306 = vadd.f32 0.0, %v2305
    %v2307 = vpop.f32.mrb[0].mxu0
    %2308 = vmatprep.mubr.f32.mxu0 0.0
    %2309 = vmatmul.mubr.f32.gmra.mrb[0].mxu0 %v2212
    %v2310 = vpop.f32.mrb[0].mxu0
    %v2311 = vadd.f32 0.0, %v2310
    %v2312 = vpop.f32.mrb[0].mxu0
    %2313 = vdwg.mxu0
    %2314 = vmatprep.subr.mxu0 0.0
    %2315 = vmatpush1.msra.mxu0 %v2189
    %2316 = vmatprep.subr.mxu0 0.0
    %2317 = vmatpush1.msra.mxu0 %v2190
    %2318 = vmatprep.subr.mxu0 0.0
    %2319 = vmatpush1.msra.mxu0 %v2191
    %2320 = vmatprep.subr.mxu0 0.0
    %2321 = vmatpush1.msra.mxu0 %v2192
    %2322 = vmatprep.subr.mxu0 0.0
    %2323 = vmatpush1.msra.mxu0 %v2193
    %2324 = vmatprep.subr.mxu0 0.0
    %2325 = vmatpush1.msra.mxu0 %v2194
    %2326 = vmatprep.subr.mxu0 0.0
    %2327 = vmatpush1.msra.mxu0 %v2195
    %2328 = vmatprep.subr.mxu0 0.0
    %2329 = vmatpush1.msra.mxu0 %v2196
    %2330 = vmatprep.subr.mxu0 0.0
    %2331 = vmatpush1.msra.mxu0 %v2197
    %2332 = vmatprep.subr.mxu0 0.0
    %2333 = vmatpush1.msra.mxu0 %v2198
    %2334 = vmatprep.subr.mxu0 0.0
    %2335 = vmatpush1.msra.mxu0 %v2199
    %2336 = vmatprep.subr.mxu0 0.0
    %2337 = vmatpush1.msra.mxu0 %v2200
    %2338 = vmatprep.subr.mxu0 0.0
    %2339 = vmatpush1.msra.mxu0 %v2201
    %2340 = vmatprep.subr.mxu0 0.0
    %2341 = vmatpush1.msra.mxu0 %v2202
    %2342 = vmatprep.subr.mxu0 0.0
    %2343 = vmatpush1.msra.mxu0 %v2203
    %2344 = vmatprep.subr.mxu0 0.0
    %2345 = vmatpush1.msra.mxu0 %v2204
    %2346 = vmatprep.subr.mxu0 0.0
    %2347 = vmatpush1.msra.mxu0 0.0
    %2348 = vmatprep.subr.mxu0 0.0
    %2349 = vmatpush1.msra.mxu0 0.0
    %2350 = vmatprep.subr.mxu0 0.0
    %2351 = vmatpush1.msra.mxu0 0.0
    %2352 = vmatprep.subr.mxu0 0.0
    %2353 = vmatpush1.msra.mxu0 0.0
    %2354 = vmatprep.subr.mxu0 0.0
    %2355 = vmatpush1.msra.mxu0 0.0
    %2356 = vmatprep.subr.mxu0 0.0
    %2357 = vmatpush1.msra.mxu0 0.0
    %2358 = vmatprep.subr.mxu0 0.0
    %2359 = vmatpush1.msra.mxu0 0.0
    %2360 = vmatprep.subr.mxu0 0.0
    %2361 = vmatpush1.msra.mxu0 0.0
    %2362 = vmatprep.subr.mxu0 0.0
    %2363 = vmatpush1.msra.mxu0 0.0
    %2364 = vmatprep.subr.mxu0 0.0
    %2365 = vmatpush1.msra.mxu0 0.0
    %2366 = vmatprep.subr.mxu0 0.0
    %2367 = vmatpush1.msra.mxu0 0.0
    %2368 = vmatprep.subr.mxu0 0.0
    %2369 = vmatpush1.msra.mxu0 0.0
    %2370 = vmatprep.subr.mxu0 0.0
    %2371 = vmatpush1.msra.mxu0 0.0
    %2372 = vmatprep.subr.mxu0 0.0
    %2373 = vmatpush1.msra.mxu0 0.0
    %2374 = vmatprep.subr.mxu0 0.0
    %2375 = vmatpush1.msra.mxu0 0.0
    %2376 = vmatprep.subr.mxu0 0.0
    %2377 = vmatpush1.msra.mxu0 0.0
    %2378 = vmatprep.mubr.f32.mxu0 0.0
    %2379 = vmatmul.mubr.f32.gmra.mrb[0].mxu0 %v2185
    %v2380 = vpop.f32.mrb[0].mxu0
    %v2381 = vadd.f32 %v2296, %v2380
    %v2382 = vpop.f32.mrb[0].mxu0
    %2383 = vmatprep.mubr.f32.mxu0 0.0
    %2384 = vmatmul.mubr.f32.gmra.mrb[0].mxu0 %v2186
    %v2385 = vpop.f32.mrb[0].mxu0
    %v2386 = vadd.f32 %v2301, %v2385
    %v2387 = vpop.f32.mrb[0].mxu0
    %2388 = vmatprep.mubr.f32.mxu0 0.0
    %2389 = vmatmul.mubr.f32.gmra.mrb[0].mxu0 %v2187
    %v2390 = vpop.f32.mrb[0].mxu0
    %v2391 = vadd.f32 %v2306, %v2390
    %v2392 = vpop.f32.mrb[0].mxu0
    %2393 = vmatprep.mubr.f32.mxu0 0.0
    %2394 = vmatmul.mubr.f32.gmra.mrb[0].mxu0 %v2188
    %v2395 = vpop.f32.mrb[0].mxu0
    %v2396 = vadd.f32 %v2311, %v2395
    %v2397 = vpop.f32.mrb[0].mxu0
    %2398 = vdwg.mxu0
    %s2399 = scalar_lea.vmem [#allocation3], 9
    %v2400 = vld [vmem:[%s2399] ss:$2 sm:$0xff]
    %s2401 = scalar_lea.vmem [#allocation3], 25
    %v2402 = vld [vmem:[%s2401] ss:$2 sm:$0xff]
    %s2403 = scalar_lea.vmem [#allocation3], 41
    %v2404 = vld [vmem:[%s2403] ss:$2 sm:$0xff]
    %s2405 = scalar_lea.vmem [#allocation3], 57
    %v2406 = vld [vmem:[%s2405] ss:$2 sm:$0xff]
    %v2407 = vld [vmem:[#allocation7 + $0x500] sm:$0xff]
    %v2408 = vld [vmem:[#allocation7 + $0x508] sm:$0xff]
    %v2409 = vld [vmem:[#allocation7 + $0x510] sm:$0xff]
    %v2410 = vld [vmem:[#allocation7 + $0x518] sm:$0xff]
    %v2411 = vld [vmem:[#allocation7 + $0x520] sm:$0xff]
    %v2412 = vld [vmem:[#allocation7 + $0x528] sm:$0xff]
    %v2413 = vld [vmem:[#allocation7 + $0x530] sm:$0xff]
    %v2414 = vld [vmem:[#allocation7 + $0x538] sm:$0xff]
    %v2415 = vld [vmem:[#allocation7 + $0x540] sm:$0xff]
    %v2416 = vld [vmem:[#allocation7 + $0x548] sm:$0xff]
    %v2417 = vld [vmem:[#allocation7 + $0x550] sm:$0xff]
    %v2418 = vld [vmem:[#allocation7 + $0x558] sm:$0xff]
    %v2419 = vld [vmem:[#allocation7 + $0x560] sm:$0xff]
    %v2420 = vld [vmem:[#allocation7 + $0x568] sm:$0xff]
    %v2421 = vld [vmem:[#allocation7 + $0x570] sm:$0xff]
    %v2422 = vld [vmem:[#allocation7 + $0x578] sm:$0xff]
    %2423 = vmatprep.subr.mxu0 0.0
    %2424 = vmatpush1.msra.mxu0 %v2407
    %2425 = vmatprep.subr.mxu0 0.0
    %2426 = vmatpush1.msra.mxu0 %v2408
    %2427 = vmatprep.subr.mxu0 0.0
    %2428 = vmatpush1.msra.mxu0 %v2409
    %2429 = vmatprep.subr.mxu0 0.0
    %2430 = vmatpush1.msra.mxu0 %v2410
    %2431 = vmatprep.subr.mxu0 0.0
    %2432 = vmatpush1.msra.mxu0 %v2411
    %2433 = vmatprep.subr.mxu0 0.0
    %2434 = vmatpush1.msra.mxu0 %v2412
    %2435 = vmatprep.subr.mxu0 0.0
    %2436 = vmatpush1.msra.mxu0 %v2413
    %2437 = vmatprep.subr.mxu0 0.0
    %2438 = vmatpush1.msra.mxu0 %v2414
    %2439 = vmatprep.subr.mxu0 0.0
    %2440 = vmatpush1.msra.mxu0 %v2415
    %2441 = vmatprep.subr.mxu0 0.0
    %2442 = vmatpush1.msra.mxu0 %v2416
    %2443 = vmatprep.subr.mxu0 0.0
    %2444 = vmatpush1.msra.mxu0 %v2417
    %2445 = vmatprep.subr.mxu0 0.0
    %2446 = vmatpush1.msra.mxu0 %v2418
    %2447 = vmatprep.subr.mxu0 0.0
    %2448 = vmatpush1.msra.mxu0 %v2419
    %2449 = vmatprep.subr.mxu0 0.0
    %2450 = vmatpush1.msra.mxu0 %v2420
    %2451 = vmatprep.subr.mxu0 0.0
    %2452 = vmatpush1.msra.mxu0 %v2421
    %2453 = vmatprep.subr.mxu0 0.0
    %2454 = vmatpush1.msra.mxu0 %v2422
    %2455 = vmatprep.subr.mxu0 0.0
    %2456 = vmatpush1.msra.mxu0 0.0
    %2457 = vmatprep.subr.mxu0 0.0
    %2458 = vmatpush1.msra.mxu0 0.0
    %2459 = vmatprep.subr.mxu0 0.0
    %2460 = vmatpush1.msra.mxu0 0.0
    %2461 = vmatprep.subr.mxu0 0.0
    %2462 = vmatpush1.msra.mxu0 0.0
    %2463 = vmatprep.subr.mxu0 0.0
    %2464 = vmatpush1.msra.mxu0 0.0
    %2465 = vmatprep.subr.mxu0 0.0
    %2466 = vmatpush1.msra.mxu0 0.0
    %2467 = vmatprep.subr.mxu0 0.0
    %2468 = vmatpush1.msra.mxu0 0.0
    %2469 = vmatprep.subr.mxu0 0.0
    %2470 = vmatpush1.msra.mxu0 0.0
    %2471 = vmatprep.subr.mxu0 0.0
    %2472 = vmatpush1.msra.mxu0 0.0
    %2473 = vmatprep.subr.mxu0 0.0
    %2474 = vmatpush1.msra.mxu0 0.0
    %2475 = vmatprep.subr.mxu0 0.0
    %2476 = vmatpush1.msra.mxu0 0.0
    %2477 = vmatprep.subr.mxu0 0.0
    %2478 = vmatpush1.msra.mxu0 0.0
    %2479 = vmatprep.subr.mxu0 0.0
    %2480 = vmatpush1.msra.mxu0 0.0
    %2481 = vmatprep.subr.mxu0 0.0
    %2482 = vmatpush1.msra.mxu0 0.0
    %2483 = vmatprep.subr.mxu0 0.0
    %2484 = vmatpush1.msra.mxu0 0.0
    %2485 = vmatprep.subr.mxu0 0.0
    %2486 = vmatpush1.msra.mxu0 0.0
    %2487 = vmatprep.mubr.f32.mxu0 0.0
    %2488 = vmatmul.mubr.f32.gmra.mrb[0].mxu0 %v2400
    %v2489 = vpop.f32.mrb[0].mxu0
    %v2490 = vadd.f32 0.0, %v2489
    %v2491 = vpop.f32.mrb[0].mxu0
    %2492 = vmatprep.mubr.f32.mxu0 0.0
    %2493 = vmatmul.mubr.f32.gmra.mrb[0].mxu0 %v2402
    %v2494 = vpop.f32.mrb[0].mxu0
    %v2495 = vadd.f32 0.0, %v2494
    %v2496 = vpop.f32.mrb[0].mxu0
    %2497 = vmatprep.mubr.f32.mxu0 0.0
    %2498 = vmatmul.mubr.f32.gmra.mrb[0].mxu0 %v2404
    %v2499 = vpop.f32.mrb[0].mxu0
    %v2500 = vadd.f32 0.0, %v2499
    %v2501 = vpop.f32.mrb[0].mxu0
    %2502 = vmatprep.mubr.f32.mxu0 0.0
    %2503 = vmatmul.mubr.f32.gmra.mrb[0].mxu0 %v2406
    %v2504 = vpop.f32.mrb[0].mxu0
    %v2505 = vadd.f32 0.0, %v2504
    %v2506 = vpop.f32.mrb[0].mxu0
    %2507 = vdwg.mxu0
    %v2508 = vadd.f32 %v2381, %v2490
    %v2509 = vadd.f32 %v2386, %v2495
    %v2510 = vadd.f32 %v2391, %v2500
    %v2511 = vadd.f32 %v2396, %v2505
    %s2512 = scalar_lea.vmem [#allocation3], 10
    %v2513 = vld [vmem:[%s2512] ss:$2 sm:$0xff]
    %s2514 = scalar_lea.vmem [#allocation3], 26
    %v2515 = vld [vmem:[%s2514] ss:$2 sm:$0xff]
    %s2516 = scalar_lea.vmem [#allocation3], 42
    %v2517 = vld [vmem:[%s2516] ss:$2 sm:$0xff]
    %s2518 = scalar_lea.vmem [#allocation3], 58
    %v2519 = vld [vmem:[%s2518] ss:$2 sm:$0xff]
    %vm2520 = vcmp.eq.s32.totalorder %v2169, 15
    %vm2521 = vcmp.eq.s32.totalorder %v2170, 15
    %vm2522 = vcmp.eq.s32.totalorder %v2171, 15
    %vm2523 = vcmp.eq.s32.totalorder %v2172, 15
    %v2524 = vsel %vm2520, 0.0, %v2513
    %v2525 = vsel %vm2521, 0.0, %v2515
    %v2526 = vsel %vm2522, 0.0, %v2517
    %v2527 = vsel %vm2523, 0.0, %v2519
    %v2528 = vld [vmem:[#allocation7 + $0x580] sm:$0xff]
    %v2529 = vld [vmem:[#allocation7 + $0x588] sm:$0xff]
    %v2530 = vld [vmem:[#allocation7 + $0x590] sm:$0xff]
    %v2531 = vld [vmem:[#allocation7 + $0x598] sm:$0xff]
    %v2532 = vld [vmem:[#allocation7 + $0x5a0] sm:$0xff]
    %v2533 = vld [vmem:[#allocation7 + $0x5a8] sm:$0xff]
    %v2534 = vld [vmem:[#allocation7 + $0x5b0] sm:$0xff]
    %v2535 = vld [vmem:[#allocation7 + $0x5b8] sm:$0xff]
    %v2536 = vld [vmem:[#allocation7 + $0x5c0] sm:$0xff]
    %v2537 = vld [vmem:[#allocation7 + $0x5c8] sm:$0xff]
    %v2538 = vld [vmem:[#allocation7 + $0x5d0] sm:$0xff]
    %v2539 = vld [vmem:[#allocation7 + $0x5d8] sm:$0xff]
    %v2540 = vld [vmem:[#allocation7 + $0x5e0] sm:$0xff]
    %v2541 = vld [vmem:[#allocation7 + $0x5e8] sm:$0xff]
    %v2542 = vld [vmem:[#allocation7 + $0x5f0] sm:$0xff]
    %v2543 = vld [vmem:[#allocation7 + $0x5f8] sm:$0xff]
    %2544 = vmatprep.subr.mxu0 0.0
    %2545 = vmatpush1.msra.mxu0 %v2528
    %2546 = vmatprep.subr.mxu0 0.0
    %2547 = vmatpush1.msra.mxu0 %v2529
    %2548 = vmatprep.subr.mxu0 0.0
    %2549 = vmatpush1.msra.mxu0 %v2530
    %2550 = vmatprep.subr.mxu0 0.0
    %2551 = vmatpush1.msra.mxu0 %v2531
    %2552 = vmatprep.subr.mxu0 0.0
    %2553 = vmatpush1.msra.mxu0 %v2532
    %2554 = vmatprep.subr.mxu0 0.0
    %2555 = vmatpush1.msra.mxu0 %v2533
    %2556 = vmatprep.subr.mxu0 0.0
    %2557 = vmatpush1.msra.mxu0 %v2534
    %2558 = vmatprep.subr.mxu0 0.0
    %2559 = vmatpush1.msra.mxu0 %v2535
    %2560 = vmatprep.subr.mxu0 0.0
    %2561 = vmatpush1.msra.mxu0 %v2536
    %2562 = vmatprep.subr.mxu0 0.0
    %2563 = vmatpush1.msra.mxu0 %v2537
    %2564 = vmatprep.subr.mxu0 0.0
    %2565 = vmatpush1.msra.mxu0 %v2538
    %2566 = vmatprep.subr.mxu0 0.0
    %2567 = vmatpush1.msra.mxu0 %v2539
    %2568 = vmatprep.subr.mxu0 0.0
    %2569 = vmatpush1.msra.mxu0 %v2540
    %2570 = vmatprep.subr.mxu0 0.0
    %2571 = vmatpush1.msra.mxu0 %v2541
    %2572 = vmatprep.subr.mxu0 0.0
    %2573 = vmatpush1.msra.mxu0 %v2542
    %2574 = vmatprep.subr.mxu0 0.0
    %2575 = vmatpush1.msra.mxu0 %v2543
    %2576 = vmatprep.subr.mxu0 0.0
    %2577 = vmatpush1.msra.mxu0 0.0
    %2578 = vmatprep.subr.mxu0 0.0
    %2579 = vmatpush1.msra.mxu0 0.0
    %2580 = vmatprep.subr.mxu0 0.0
    %2581 = vmatpush1.msra.mxu0 0.0
    %2582 = vmatprep.subr.mxu0 0.0
    %2583 = vmatpush1.msra.mxu0 0.0
    %2584 = vmatprep.subr.mxu0 0.0
    %2585 = vmatpush1.msra.mxu0 0.0
    %2586 = vmatprep.subr.mxu0 0.0
    %2587 = vmatpush1.msra.mxu0 0.0
    %2588 = vmatprep.subr.mxu0 0.0
    %2589 = vmatpush1.msra.mxu0 0.0
    %2590 = vmatprep.subr.mxu0 0.0
    %2591 = vmatpush1.msra.mxu0 0.0
    %2592 = vmatprep.subr.mxu0 0.0
    %2593 = vmatpush1.msra.mxu0 0.0
    %2594 = vmatprep.subr.mxu0 0.0
    %2595 = vmatpush1.msra.mxu0 0.0
    %2596 = vmatprep.subr.mxu0 0.0
    %2597 = vmatpush1.msra.mxu0 0.0
    %2598 = vmatprep.subr.mxu0 0.0
    %2599 = vmatpush1.msra.mxu0 0.0
    %2600 = vmatprep.subr.mxu0 0.0
    %2601 = vmatpush1.msra.mxu0 0.0
    %2602 = vmatprep.subr.mxu0 0.0
    %2603 = vmatpush1.msra.mxu0 0.0
    %2604 = vmatprep.subr.mxu0 0.0
    %2605 = vmatpush1.msra.mxu0 0.0
    %2606 = vmatprep.subr.mxu0 0.0
    %2607 = vmatpush1.msra.mxu0 0.0
    %2608 = vmatprep.mubr.f32.mxu0 0.0
    %2609 = vmatmul.mubr.f32.gmra.mrb[0].mxu0 %v2524
    %v2610 = vpop.f32.mrb[0].mxu0
    %v2611 = vadd.f32 0.0, %v2610
    %v2612 = vpop.f32.mrb[0].mxu0
    %2613 = vmatprep.mubr.f32.mxu0 0.0
    %2614 = vmatmul.mubr.f32.gmra.mrb[0].mxu0 %v2525
    %v2615 = vpop.f32.mrb[0].mxu0
    %v2616 = vadd.f32 0.0, %v2615
    %v2617 = vpop.f32.mrb[0].mxu0
    %2618 = vmatprep.mubr.f32.mxu0 0.0
    %2619 = vmatmul.mubr.f32.gmra.mrb[0].mxu0 %v2526
    %v2620 = vpop.f32.mrb[0].mxu0
    %v2621 = vadd.f32 0.0, %v2620
    %v2622 = vpop.f32.mrb[0].mxu0
    %2623 = vmatprep.mubr.f32.mxu0 0.0
    %2624 = vmatmul.mubr.f32.gmra.mrb[0].mxu0 %v2527
    %v2625 = vpop.f32.mrb[0].mxu0
    %v2626 = vadd.f32 0.0, %v2625
    %v2627 = vpop.f32.mrb[0].mxu0
    %2628 = vdwg.mxu0
    %v2629 = vadd.f32 %v2508, %v2611
    %v2630 = vadd.f32 %v2509, %v2616
    %v2631 = vadd.f32 %v2510, %v2621
    %v2632 = vadd.f32 %v2511, %v2626
    %v2633 = vadd.f32 %v2629, %v2630
    %v2634 = vadd.f32 %v2633, %v2631
    %v2635 = vadd.f32 %v2634, %v2632
    %v2636 = vrot.slane %v2635, 4
    %v2637 = vadd.f32 %v2635, %v2636
    %v2638 = vrot.slane %v2637, 2
    %v2639 = vadd.f32 %v2637, %v2638
    %v2640 = vrot.slane %v2639, 1
    %v2641 = vadd.f32 %v2639, %v2640
    %v2642 = vmul.f32 %v2641, 0.03125
    %v2643 = vsub.f32 %v2629, %v2642
    %v2644 = vsub.f32 %v2630, %v2642
    %v2645 = vsub.f32 %v2631, %v2642
    %v2646 = vsub.f32 %v2632, %v2642
    %v2647 = vmul.f32 %v2643, %v2643
    %v2648 = vmul.f32 %v2644, %v2644
    %v2649 = vmul.f32 %v2645, %v2645
    %v2650 = vmul.f32 %v2646, %v2646
    %v2651 = vadd.f32 %v2647, %v2648
    %v2652 = vadd.f32 %v2651, %v2649
    %v2653 = vadd.f32 %v2652, %v2650
    %v2654 = vrot.slane %v2653, 4
    %v2655 = vadd.f32 %v2653, %v2654
    %v2656 = vrot.slane %v2655, 2
    %v2657 = vadd.f32 %v2655, %v2656
    %v2658 = vrot.slane %v2657, 1
    %v2659 = vadd.f32 %v2657, %v2658
    %v2660 = vmul.f32 %v2659, 0.03125
    %v2661 = vld [vmem:[#allocation9 + $0x2] sm:$0x1]
    %v2662 = vld [vmem:[#allocation9 + $0x7] sm:$0x1]
    %v2663 = vadd.f32 %v2660, 1e-05
    %v2664 = vrsqrt.pop %v2663
    %v2665 = vmul.f32 %v2661, %v2664
    %v2666 = vmul.f32 %v2642, %v2665
    %v2667 = vsub.f32 %v2662, %v2666
    %v2668 = vlaneseq
    %v2669 = vshrl.u32 %v2668, 7
    %v2670 = vsub.s32 0, %v2669
    %v2671 = vrot.slane %v2665, %v2670
    %v2672 = vmul.f32 %v2629, %v2671
    %v2673 = vmul.f32 %v2630, %v2671
    %v2674 = vmul.f32 %v2631, %v2671
    %v2675 = vmul.f32 %v2632, %v2671
    %v2676 = vlaneseq
    %v2677 = vshrl.u32 %v2676, 7
    %v2678 = vsub.s32 0, %v2677
    %v2679 = vrot.slane %v2667, %v2678
    %v2680 = vadd.f32 %v2672, %v2679
    %v2681 = vadd.f32 %v2673, %v2679
    %v2682 = vadd.f32 %v2674, %v2679
    %v2683 = vadd.f32 %v2675, %v2679
    %vm2684 = vcmp.ge.f32.partialorder %v2680, 0.0
    %vm2685 = vcmp.ge.f32.partialorder %v2681, 0.0
    %vm2686 = vcmp.ge.f32.partialorder %v2682, 0.0
    %vm2687 = vcmp.ge.f32.partialorder %v2683, 0.0
    %v2688 = vmul.f32 %v2680, 0.2
    %v2689 = vmul.f32 %v2681, 0.2
    %v2690 = vmul.f32 %v2682, 0.2
    %v2691 = vmul.f32 %v2683, 0.2
    %v2692 = vsel %vm2684, %v2680, %v2688
    %v2693 = vsel %vm2685, %v2681, %v2689
    %v2694 = vsel %vm2686, %v2682, %v2690
    %v2695 = vsel %vm2687, %v2683, %v2691
    %2696 = vst [vmem:[#allocation4 + $0x7] sm:$0x1] 0.0
    %2697 = vst [vmem:[#allocation4 + $0x8] sm:$0xff] %v2692
    %2698 = vst [vmem:[#allocation4 + $0x10] sm:$0xff] %v2693
    %2699 = vst [vmem:[#allocation4 + $0x18] sm:$0xff] %v2694
    %2700 = vst [vmem:[#allocation4 + $0x20] sm:$0xff] %v2695
    %2701 = vst [vmem:[#allocation4 + $0x28] sm:$0x1] 0.0
    %vm2702 = vcmp.lt.s32.totalorder %v59, 0
    %v2703 = vsub.s32 0, %v59
    %v2704 = vsel %vm2702, %v2703, %v59
    %v2705 = vshrl.u32 %v2704, 3
    %v2706 = vand.u32 %v2704, 7
    %v2707 = vsub.s32 0, %v2706
    %v2708 = vsel %vm2702, %v2707, %v2706
    %vm2709 = vcmp.lt.s32.totalorder %v60, 0
    %v2710 = vsub.s32 0, %v60
    %v2711 = vsel %vm2709, %v2710, %v60
    %v2712 = vshrl.u32 %v2711, 3
    %v2713 = vand.u32 %v2711, 7
    %v2714 = vsub.s32 0, %v2713
    %v2715 = vsel %vm2709, %v2714, %v2713
    %vm2716 = vcmp.ne.s32.totalorder %v2708, 0
    %vm2717 = vcmp.ne.s32.totalorder %v2715, 0
    %vm2718 = vcmp.lt.s32.totalorder %v2708, 0
    %vm2719 = vcmp.lt.s32.totalorder %v2715, 0
    %vm2720 = vmand %vm2718, %vm2716
    %vm2721 = vmand %vm2719, %vm2717
    %v2722 = vadd.s32 %v2708, 8
    %v2723 = vadd.s32 %v2715, 8
    %v2724 = vsel %vm2720, %v2722, %v2708
    %v2725 = vsel %vm2721, %v2723, %v2715
    %s2726 = scalar_lea.vmem [#allocation4], 7
    %v2727 = vld [vmem:[%s2726] ss:$2 sm:$0xff]
    %s2728 = scalar_lea.vmem [#allocation4], 23
    %v2729 = vld [vmem:[%s2728] ss:$2 sm:$0xff]
    %vm2730 = vcmp.eq.s32.totalorder %v2724, 0
    %vm2731 = vcmp.eq.s32.totalorder %v2725, 0
    %v2732 = vsel %vm2730, 0.0, %v2727
    %v2733 = vsel %vm2731, 0.0, %v2729
    %v2734 = vld [vmem:[#allocation7 + $0x600] sm:$0xff]
    %v2735 = vld [vmem:[#allocation7 + $0x608] sm:$0xff]
    %v2736 = vld [vmem:[#allocation7 + $0x610] sm:$0xff]
    %v2737 = vld [vmem:[#allocation7 + $0x618] sm:$0xff]
    %v2738 = vld [vmem:[#allocation7 + $0x620] sm:$0xff]
    %v2739 = vld [vmem:[#allocation7 + $0x628] sm:$0xff]
    %v2740 = vld [vmem:[#allocation7 + $0x630] sm:$0xff]
    %v2741 = vld [vmem:[#allocation7 + $0x638] sm:$0xff]
    %v2742 = vld [vmem:[#allocation7 + $0x640] sm:$0xff]
    %v2743 = vld [vmem:[#allocation7 + $0x648] sm:$0xff]
    %v2744 = vld [vmem:[#allocation7 + $0x650] sm:$0xff]
    %v2745 = vld [vmem:[#allocation7 + $0x658] sm:$0xff]
    %v2746 = vld [vmem:[#allocation7 + $0x660] sm:$0xff]
    %v2747 = vld [vmem:[#allocation7 + $0x668] sm:$0xff]
    %v2748 = vld [vmem:[#allocation7 + $0x670] sm:$0xff]
    %v2749 = vld [vmem:[#allocation7 + $0x678] sm:$0xff]
    %s2750 = scalar_lea.vmem [#allocation4], 8
    %v2751 = vld [vmem:[%s2750] ss:$2 sm:$0xff]
    %s2752 = scalar_lea.vmem [#allocation4], 24
    %v2753 = vld [vmem:[%s2752] ss:$2 sm:$0xff]
    %v2754 = vld [vmem:[#allocation7 + $0x680] sm:$0xff]
    %v2755 = vld [vmem:[#allocation7 + $0x688] sm:$0xff]
    %v2756 = vld [vmem:[#allocation7 + $0x690] sm:$0xff]
    %v2757 = vld [vmem:[#allocation7 + $0x698] sm:$0xff]
    %v2758 = vld [vmem:[#allocation7 + $0x6a0] sm:$0xff]
    %v2759 = vld [vmem:[#allocation7 + $0x6a8] sm:$0xff]
    %v2760 = vld [vmem:[#allocation7 + $0x6b0] sm:$0xff]
    %v2761 = vld [vmem:[#allocation7 + $0x6b8] sm:$0xff]
    %v2762 = vld [vmem:[#allocation7 + $0x6c0] sm:$0xff]
    %v2763 = vld [vmem:[#allocation7 + $0x6c8] sm:$0xff]
    %v2764 = vld [vmem:[#allocation7 + $0x6d0] sm:$0xff]
    %v2765 = vld [vmem:[#allocation7 + $0x6d8] sm:$0xff]
    %v2766 = vld [vmem:[#allocation7 + $0x6e0] sm:$0xff]
    %v2767 = vld [vmem:[#allocation7 + $0x6e8] sm:$0xff]
    %v2768 = vld [vmem:[#allocation7 + $0x6f0] sm:$0xff]
    %v2769 = vld [vmem:[#allocation7 + $0x6f8] sm:$0xff]
    %2770 = vmatprep.subr.mxu0 0.0
    %2771 = vmatpush1.msra.mxu0 %v2754
    %2772 = vmatprep.subr.mxu0 0.0
    %2773 = vmatpush1.msra.mxu0 %v2755
    %2774 = vmatprep.subr.mxu0 0.0
    %2775 = vmatpush1.msra.mxu0 %v2756
    %2776 = vmatprep.subr.mxu0 0.0
    %2777 = vmatpush1.msra.mxu0 %v2757
    %2778 = vmatprep.subr.mxu0 0.0
    %2779 = vmatpush1.msra.mxu0 %v2758
    %2780 = vmatprep.subr.mxu0 0.0
    %2781 = vmatpush1.msra.mxu0 %v2759
    %2782 = vmatprep.subr.mxu0 0.0
    %2783 = vmatpush1.msra.mxu0 %v2760
    %2784 = vmatprep.subr.mxu0 0.0
    %2785 = vmatpush1.msra.mxu0 %v2761
    %2786 = vmatprep.subr.mxu0 0.0
    %2787 = vmatpush1.msra.mxu0 %v2762
    %2788 = vmatprep.subr.mxu0 0.0
    %2789 = vmatpush1.msra.mxu0 %v2763
    %2790 = vmatprep.subr.mxu0 0.0
    %2791 = vmatpush1.msra.mxu0 %v2764
    %2792 = vmatprep.subr.mxu0 0.0
    %2793 = vmatpush1.msra.mxu0 %v2765
    %2794 = vmatprep.subr.mxu0 0.0
    %2795 = vmatpush1.msra.mxu0 %v2766
    %2796 = vmatprep.subr.mxu0 0.0
    %2797 = vmatpush1.msra.mxu0 %v2767
    %2798 = vmatprep.subr.mxu0 0.0
    %2799 = vmatpush1.msra.mxu0 %v2768
    %2800 = vmatprep.subr.mxu0 0.0
    %2801 = vmatpush1.msra.mxu0 %v2769
    %2802 = vmatprep.subr.mxu0 0.0
    %2803 = vmatpush1.msra.mxu0 0.0
    %2804 = vmatprep.subr.mxu0 0.0
    %2805 = vmatpush1.msra.mxu0 0.0
    %2806 = vmatprep.subr.mxu0 0.0
    %2807 = vmatpush1.msra.mxu0 0.0
    %2808 = vmatprep.subr.mxu0 0.0
    %2809 = vmatpush1.msra.mxu0 0.0
    %2810 = vmatprep.subr.mxu0 0.0
    %2811 = vmatpush1.msra.mxu0 0.0
    %2812 = vmatprep.subr.mxu0 0.0
    %2813 = vmatpush1.msra.mxu0 0.0
    %2814 = vmatprep.subr.mxu0 0.0
    %2815 = vmatpush1.msra.mxu0 0.0
    %2816 = vmatprep.subr.mxu0 0.0
    %2817 = vmatpush1.msra.mxu0 0.0
    %2818 = vmatprep.subr.mxu0 0.0
    %2819 = vmatpush1.msra.mxu0 0.0
    %2820 = vmatprep.subr.mxu0 0.0
    %2821 = vmatpush1.msra.mxu0 0.0
    %2822 = vmatprep.subr.mxu0 0.0
    %2823 = vmatpush1.msra.mxu0 0.0
    %2824 = vmatprep.subr.mxu0 0.0
    %2825 = vmatpush1.msra.mxu0 0.0
    %2826 = vmatprep.subr.mxu0 0.0
    %2827 = vmatpush1.msra.mxu0 0.0
    %2828 = vmatprep.subr.mxu0 0.0
    %2829 = vmatpush1.msra.mxu0 0.0
    %2830 = vmatprep.subr.mxu0 0.0
    %2831 = vmatpush1.msra.mxu0 0.0
    %2832 = vmatprep.subr.mxu0 0.0
    %2833 = vmatpush1.msra.mxu0 0.0
    %2834 = vmatprep.mubr.f32.mxu0 0.0
    %2835 = vmatmul.mubr.f32.gmra.mrb[0].mxu0 %v2751
    %v2836 = vpop.f32.mrb[0].mxu0
    %v2837 = vadd.f32 0.0, %v2836
    %v2838 = vpop.f32.mrb[0].mxu0
    %2839 = vmatprep.mubr.f32.mxu0 0.0
    %2840 = vmatmul.mubr.f32.gmra.mrb[0].mxu0 %v2753
    %v2841 = vpop.f32.mrb[0].mxu0
    %v2842 = vadd.f32 0.0, %v2841
    %v2843 = vpop.f32.mrb[0].mxu0
    %2844 = vdwg.mxu0
    %2845 = vmatprep.subr.mxu0 0.0
    %2846 = vmatpush1.msra.mxu0 %v2734
    %2847 = vmatprep.subr.mxu0 0.0
    %2848 = vmatpush1.msra.mxu0 %v2735
    %2849 = vmatprep.subr.mxu0 0.0
    %2850 = vmatpush1.msra.mxu0 %v2736
    %2851 = vmatprep.subr.mxu0 0.0
    %2852 = vmatpush1.msra.mxu0 %v2737
    %2853 = vmatprep.subr.mxu0 0.0
    %2854 = vmatpush1.msra.mxu0 %v2738
    %2855 = vmatprep.subr.mxu0 0.0
    %2856 = vmatpush1.msra.mxu0 %v2739
    %2857 = vmatprep.subr.mxu0 0.0
    %2858 = vmatpush1.msra.mxu0 %v2740
    %2859 = vmatprep.subr.mxu0 0.0
    %2860 = vmatpush1.msra.mxu0 %v2741
    %2861 = vmatprep.subr.mxu0 0.0
    %2862 = vmatpush1.msra.mxu0 %v2742
    %2863 = vmatprep.subr.mxu0 0.0
    %2864 = vmatpush1.msra.mxu0 %v2743
    %2865 = vmatprep.subr.mxu0 0.0
    %2866 = vmatpush1.msra.mxu0 %v2744
    %2867 = vmatprep.subr.mxu0 0.0
    %2868 = vmatpush1.msra.mxu0 %v2745
    %2869 = vmatprep.subr.mxu0 0.0
    %2870 = vmatpush1.msra.mxu0 %v2746
    %2871 = vmatprep.subr.mxu0 0.0
    %2872 = vmatpush1.msra.mxu0 %v2747
    %2873 = vmatprep.subr.mxu0 0.0
    %2874 = vmatpush1.msra.mxu0 %v2748
    %2875 = vmatprep.subr.mxu0 0.0
    %2876 = vmatpush1.msra.mxu0 %v2749
    %2877 = vmatprep.subr.mxu0 0.0
    %2878 = vmatpush1.msra.mxu0 0.0
    %2879 = vmatprep.subr.mxu0 0.0
    %2880 = vmatpush1.msra.mxu0 0.0
    %2881 = vmatprep.subr.mxu0 0.0
    %2882 = vmatpush1.msra.mxu0 0.0
    %2883 = vmatprep.subr.mxu0 0.0
    %2884 = vmatpush1.msra.mxu0 0.0
    %2885 = vmatprep.subr.mxu0 0.0
    %2886 = vmatpush1.msra.mxu0 0.0
    %2887 = vmatprep.subr.mxu0 0.0
    %2888 = vmatpush1.msra.mxu0 0.0
    %2889 = vmatprep.subr.mxu0 0.0
    %2890 = vmatpush1.msra.mxu0 0.0
    %2891 = vmatprep.subr.mxu0 0.0
    %2892 = vmatpush1.msra.mxu0 0.0
    %2893 = vmatprep.subr.mxu0 0.0
    %2894 = vmatpush1.msra.mxu0 0.0
    %2895 = vmatprep.subr.mxu0 0.0
    %2896 = vmatpush1.msra.mxu0 0.0
    %2897 = vmatprep.subr.mxu0 0.0
    %2898 = vmatpush1.msra.mxu0 0.0
    %2899 = vmatprep.subr.mxu0 0.0
    %2900 = vmatpush1.msra.mxu0 0.0
    %2901 = vmatprep.subr.mxu0 0.0
    %2902 = vmatpush1.msra.mxu0 0.0
    %2903 = vmatprep.subr.mxu0 0.0
    %2904 = vmatpush1.msra.mxu0 0.0
    %2905 = vmatprep.subr.mxu0 0.0
    %2906 = vmatpush1.msra.mxu0 0.0
    %2907 = vmatprep.subr.mxu0 0.0
    %2908 = vmatpush1.msra.mxu0 0.0
    %2909 = vmatprep.mubr.f32.mxu0 0.0
    %2910 = vmatmul.mubr.f32.gmra.mrb[0].mxu0 %v2732
    %v2911 = vpop.f32.mrb[0].mxu0
    %v2912 = vadd.f32 %v2837, %v2911
    %v2913 = vpop.f32.mrb[0].mxu0
    %2914 = vmatprep.mubr.f32.mxu0 0.0
    %2915 = vmatmul.mubr.f32.gmra.mrb[0].mxu0 %v2733
    %v2916 = vpop.f32.mrb[0].mxu0
    %v2917 = vadd.f32 %v2842, %v2916
    %v2918 = vpop.f32.mrb[0].mxu0
    %2919 = vdwg.mxu0
    %s2920 = scalar_lea.vmem [#allocation4], 9
    %v2921 = vld [vmem:[%s2920] ss:$2 sm:$0xff]
    %s2922 = scalar_lea.vmem [#allocation4], 25
    %v2923 = vld [vmem:[%s2922] ss:$2 sm:$0xff]
    %v2924 = vld [vmem:[#allocation7 + $0x700] sm:$0xff]
    %v2925 = vld [vmem:[#allocation7 + $0x708] sm:$0xff]
    %v2926 = vld [vmem:[#allocation7 + $0x710] sm:$0xff]
    %v2927 = vld [vmem:[#allocation7 + $0x718] sm:$0xff]
    %v2928 = vld [vmem:[#allocation7 + $0x720] sm:$0xff]
    %v2929 = vld [vmem:[#allocation7 + $0x728] sm:$0xff]
    %v2930 = vld [vmem:[#allocation7 + $0x730] sm:$0xff]
    %v2931 = vld [vmem:[#allocation7 + $0x738] sm:$0xff]
    %v2932 = vld [vmem:[#allocation7 + $0x740] sm:$0xff]
    %v2933 = vld [vmem:[#allocation7 + $0x748] sm:$0xff]
    %v2934 = vld [vmem:[#allocation7 + $0x750] sm:$0xff]
    %v2935 = vld [vmem:[#allocation7 + $0x758] sm:$0xff]
    %v2936 = vld [vmem:[#allocation7 + $0x760] sm:$0xff]
    %v2937 = vld [vmem:[#allocation7 + $0x768] sm:$0xff]
    %v2938 = vld [vmem:[#allocation7 + $0x770] sm:$0xff]
    %v2939 = vld [vmem:[#allocation7 + $0x778] sm:$0xff]
    %2940 = vmatprep.subr.mxu0 0.0
    %2941 = vmatpush1.msra.mxu0 %v2924
    %2942 = vmatprep.subr.mxu0 0.0
    %2943 = vmatpush1.msra.mxu0 %v2925
    %2944 = vmatprep.subr.mxu0 0.0
    %2945 = vmatpush1.msra.mxu0 %v2926
    %2946 = vmatprep.subr.mxu0 0.0
    %2947 = vmatpush1.msra.mxu0 %v2927
    %2948 = vmatprep.subr.mxu0 0.0
    %2949 = vmatpush1.msra.mxu0 %v2928
    %2950 = vmatprep.subr.mxu0 0.0
    %2951 = vmatpush1.msra.mxu0 %v2929
    %2952 = vmatprep.subr.mxu0 0.0
    %2953 = vmatpush1.msra.mxu0 %v2930
    %2954 = vmatprep.subr.mxu0 0.0
    %2955 = vmatpush1.msra.mxu0 %v2931
    %2956 = vmatprep.subr.mxu0 0.0
    %2957 = vmatpush1.msra.mxu0 %v2932
    %2958 = vmatprep.subr.mxu0 0.0
    %2959 = vmatpush1.msra.mxu0 %v2933
    %2960 = vmatprep.subr.mxu0 0.0
    %2961 = vmatpush1.msra.mxu0 %v2934
    %2962 = vmatprep.subr.mxu0 0.0
    %2963 = vmatpush1.msra.mxu0 %v2935
    %2964 = vmatprep.subr.mxu0 0.0
    %2965 = vmatpush1.msra.mxu0 %v2936
    %2966 = vmatprep.subr.mxu0 0.0
    %2967 = vmatpush1.msra.mxu0 %v2937
    %2968 = vmatprep.subr.mxu0 0.0
    %2969 = vmatpush1.msra.mxu0 %v2938
    %2970 = vmatprep.subr.mxu0 0.0
    %2971 = vmatpush1.msra.mxu0 %v2939
    %2972 = vmatprep.subr.mxu0 0.0
    %2973 = vmatpush1.msra.mxu0 0.0
    %2974 = vmatprep.subr.mxu0 0.0
    %2975 = vmatpush1.msra.mxu0 0.0
    %2976 = vmatprep.subr.mxu0 0.0
    %2977 = vmatpush1.msra.mxu0 0.0
    %2978 = vmatprep.subr.mxu0 0.0
    %2979 = vmatpush1.msra.mxu0 0.0
    %2980 = vmatprep.subr.mxu0 0.0
    %2981 = vmatpush1.msra.mxu0 0.0
    %2982 = vmatprep.subr.mxu0 0.0
    %2983 = vmatpush1.msra.mxu0 0.0
    %2984 = vmatprep.subr.mxu0 0.0
    %2985 = vmatpush1.msra.mxu0 0.0
    %2986 = vmatprep.subr.mxu0 0.0
    %2987 = vmatpush1.msra.mxu0 0.0
    %2988 = vmatprep.subr.mxu0 0.0
    %2989 = vmatpush1.msra.mxu0 0.0
    %2990 = vmatprep.subr.mxu0 0.0
    %2991 = vmatpush1.msra.mxu0 0.0
    %2992 = vmatprep.subr.mxu0 0.0
    %2993 = vmatpush1.msra.mxu0 0.0
    %2994 = vmatprep.subr.mxu0 0.0
    %2995 = vmatpush1.msra.mxu0 0.0
    %2996 = vmatprep.subr.mxu0 0.0
    %2997 = vmatpush1.msra.mxu0 0.0
    %2998 = vmatprep.subr.mxu0 0.0
    %2999 = vmatpush1.msra.mxu0 0.0
    %3000 = vmatprep.subr.mxu0 0.0
    %3001 = vmatpush1.msra.mxu0 0.0
    %3002 = vmatprep.subr.mxu0 0.0
    %3003 = vmatpush1.msra.mxu0 0.0
    %3004 = vmatprep.mubr.f32.mxu0 0.0
    %3005 = vmatmul.mubr.f32.gmra.mrb[0].mxu0 %v2921
    %v3006 = vpop.f32.mrb[0].mxu0
    %v3007 = vadd.f32 0.0, %v3006
    %v3008 = vpop.f32.mrb[0].mxu0
    %3009 = vmatprep.mubr.f32.mxu0 0.0
    %3010 = vmatmul.mubr.f32.gmra.mrb[0].mxu0 %v2923
    %v3011 = vpop.f32.mrb[0].mxu0
    %v3012 = vadd.f32 0.0, %v3011
    %v3013 = vpop.f32.mrb[0].mxu0
    %3014 = vdwg.mxu0
    %v3015 = vadd.f32 %v2912, %v3007
    %v3016 = vadd.f32 %v2917, %v3012
    %s3017 = scalar_lea.vmem [#allocation4], 10
    %v3018 = vld [vmem:[%s3017] ss:$2 sm:$0xff]
    %s3019 = scalar_lea.vmem [#allocation4], 26
    %v3020 = vld [vmem:[%s3019] ss:$2 sm:$0xff]
    %vm3021 = vcmp.eq.s32.totalorder %v2724, 7
    %vm3022 = vcmp.eq.s32.totalorder %v2725, 7
    %v3023 = vsel %vm3021, 0.0, %v3018
    %v3024 = vsel %vm3022, 0.0, %v3020
    %v3025 = vld [vmem:[#allocation7 + $0x780] sm:$0xff]
    %v3026 = vld [vmem:[#allocation7 + $0x788] sm:$0xff]
    %v3027 = vld [vmem:[#allocation7 + $0x790] sm:$0xff]
    %v3028 = vld [vmem:[#allocation7 + $0x798] sm:$0xff]
    %v3029 = vld [vmem:[#allocation7 + $0x7a0] sm:$0xff]
    %v3030 = vld [vmem:[#allocation7 + $0x7a8] sm:$0xff]
    %v3031 = vld [vmem:[#allocation7 + $0x7b0] sm:$0xff]
    %v3032 = vld [vmem:[#allocation7 + $0x7b8] sm:$0xff]
    %v3033 = vld [vmem:[#allocation7 + $0x7c0] sm:$0xff]
    %v3034 = vld [vmem:[#allocation7 + $0x7c8] sm:$0xff]
    %v3035 = vld [vmem:[#allocation7 + $0x7d0] sm:$0xff]
    %v3036 = vld [vmem:[#allocation7 + $0x7d8] sm:$0xff]
    %v3037 = vld [vmem:[#allocation7 + $0x7e0] sm:$0xff]
    %v3038 = vld [vmem:[#allocation7 + $0x7e8] sm:$0xff]
    %v3039 = vld [vmem:[#allocation7 + $0x7f0] sm:$0xff]
    %v3040 = vld [vmem:[#allocation7 + $0x7f8] sm:$0xff]
    %3041 = vmatprep.subr.mxu0 0.0
    %3042 = vmatpush1.msra.mxu0 %v3025
    %3043 = vmatprep.subr.mxu0 0.0
    %3044 = vmatpush1.msra.mxu0 %v3026
    %3045 = vmatprep.subr.mxu0 0.0
    %3046 = vmatpush1.msra.mxu0 %v3027
    %3047 = vmatprep.subr.mxu0 0.0
    %3048 = vmatpush1.msra.mxu0 %v3028
    %3049 = vmatprep.subr.mxu0 0.0
    %3050 = vmatpush1.msra.mxu0 %v3029
    %3051 = vmatprep.subr.mxu0 0.0
    %3052 = vmatpush1.msra.mxu0 %v3030
    %3053 = vmatprep.subr.mxu0 0.0
    %3054 = vmatpush1.msra.mxu0 %v3031
    %3055 = vmatprep.subr.mxu0 0.0
    %3056 = vmatpush1.msra.mxu0 %v3032
    %3057 = vmatprep.subr.mxu0 0.0
    %3058 = vmatpush1.msra.mxu0 %v3033
    %3059 = vmatprep.subr.mxu0 0.0
    %3060 = vmatpush1.msra.mxu0 %v3034
    %3061 = vmatprep.subr.mxu0 0.0
    %3062 = vmatpush1.msra.mxu0 %v3035
    %3063 = vmatprep.subr.mxu0 0.0
    %3064 = vmatpush1.msra.mxu0 %v3036
    %3065 = vmatprep.subr.mxu0 0.0
    %3066 = vmatpush1.msra.mxu0 %v3037
    %3067 = vmatprep.subr.mxu0 0.0
    %3068 = vmatpush1.msra.mxu0 %v3038
    %3069 = vmatprep.subr.mxu0 0.0
    %3070 = vmatpush1.msra.mxu0 %v3039
    %3071 = vmatprep.subr.mxu0 0.0
    %3072 = vmatpush1.msra.mxu0 %v3040
    %3073 = vmatprep.subr.mxu0 0.0
    %3074 = vmatpush1.msra.mxu0 0.0
    %3075 = vmatprep.subr.mxu0 0.0
    %3076 = vmatpush1.msra.mxu0 0.0
    %3077 = vmatprep.subr.mxu0 0.0
    %3078 = vmatpush1.msra.mxu0 0.0
    %3079 = vmatprep.subr.mxu0 0.0
    %3080 = vmatpush1.msra.mxu0 0.0
    %3081 = vmatprep.subr.mxu0 0.0
    %3082 = vmatpush1.msra.mxu0 0.0
    %3083 = vmatprep.subr.mxu0 0.0
    %3084 = vmatpush1.msra.mxu0 0.0
    %3085 = vmatprep.subr.mxu0 0.0
    %3086 = vmatpush1.msra.mxu0 0.0
    %3087 = vmatprep.subr.mxu0 0.0
    %3088 = vmatpush1.msra.mxu0 0.0
    %3089 = vmatprep.subr.mxu0 0.0
    %3090 = vmatpush1.msra.mxu0 0.0
    %3091 = vmatprep.subr.mxu0 0.0
    %3092 = vmatpush1.msra.mxu0 0.0
    %3093 = vmatprep.subr.mxu0 0.0
    %3094 = vmatpush1.msra.mxu0 0.0
    %3095 = vmatprep.subr.mxu0 0.0
    %3096 = vmatpush1.msra.mxu0 0.0
    %3097 = vmatprep.subr.mxu0 0.0
    %3098 = vmatpush1.msra.mxu0 0.0
    %3099 = vmatprep.subr.mxu0 0.0
    %3100 = vmatpush1.msra.mxu0 0.0
    %3101 = vmatprep.subr.mxu0 0.0
    %3102 = vmatpush1.msra.mxu0 0.0
    %3103 = vmatprep.subr.mxu0 0.0
    %3104 = vmatpush1.msra.mxu0 0.0
    %3105 = vmatprep.mubr.f32.mxu0 0.0
    %3106 = vmatmul.mubr.f32.gmra.mrb[0].mxu0 %v3023
    %v3107 = vpop.f32.mrb[0].mxu0
    %v3108 = vadd.f32 0.0, %v3107
    %v3109 = vpop.f32.mrb[0].mxu0
    %3110 = vmatprep.mubr.f32.mxu0 0.0
    %3111 = vmatmul.mubr.f32.gmra.mrb[0].mxu0 %v3024
    %v3112 = vpop.f32.mrb[0].mxu0
    %v3113 = vadd.f32 0.0, %v3112
    %v3114 = vpop.f32.mrb[0].mxu0
    %3115 = vdwg.mxu0
    %v3116 = vadd.f32 %v3015, %v3108
    %v3117 = vadd.f32 %v3016, %v3113
    %v3118 = vadd.f32 %v3116, %v3117
    %v3119 = vrot.slane %v3118, 4
    %v3120 = vadd.f32 %v3118, %v3119
    %v3121 = vrot.slane %v3120, 2
    %v3122 = vadd.f32 %v3120, %v3121
    %v3123 = vrot.slane %v3122, 1
    %v3124 = vadd.f32 %v3122, %v3123
    %v3125 = vmul.f32 %v3124, 0.0625
    %v3126 = vsub.f32 %v3116, %v3125
    %v3127 = vsub.f32 %v3117, %v3125
    %v3128 = vmul.f32 %v3126, %v3126
    %v3129 = vmul.f32 %v3127, %v3127
    %v3130 = vadd.f32 %v3128, %v3129
    %v3131 = vrot.slane %v3130, 4
    %v3132 = vadd.f32 %v3130, %v3131
    %v3133 = vrot.slane %v3132, 2
    %v3134 = vadd.f32 %v3132, %v3133
    %v3135 = vrot.slane %v3134, 1
    %v3136 = vadd.f32 %v3134, %v3135
    %v3137 = vmul.f32 %v3136, 0.0625
    %v3138 = vld [vmem:[#allocation9 + $0x3] sm:$0x1]
    %v3139 = vld [vmem:[#allocation9 + $0x8] sm:$0x1]
    %v3140 = vadd.f32 %v3137, 1e-05
    %v3141 = vrsqrt.pop %v3140
    %v3142 = vmul.f32 %v3138, %v3141
    %v3143 = vmul.f32 %v3125, %v3142
    %v3144 = vsub.f32 %v3139, %v3143
    %v3145 = vlaneseq
    %v3146 = vshrl.u32 %v3145, 7
    %v3147 = vsub.s32 0, %v3146
    %v3148 = vrot.slane %v3142, %v3147
    %v3149 = vmul.f32 %v3116, %v3148
    %v3150 = vmul.f32 %v3117, %v3148
    %v3151 = vlaneseq
    %v3152 = vshrl.u32 %v3151, 7
    %v3153 = vsub.s32 0, %v3152
    %v3154 = vrot.slane %v3144, %v3153
    %v3155 = vadd.f32 %v3149, %v3154
    %v3156 = vadd.f32 %v3150, %v3154
    %vm3157 = vcmp.ge.f32.partialorder %v3155, 0.0
    %vm3158 = vcmp.ge.f32.partialorder %v3156, 0.0
    %v3159 = vmul.f32 %v3155, 0.2
    %v3160 = vmul.f32 %v3156, 0.2
    %v3161 = vsel %vm3157, %v3155, %v3159
    %v3162 = vsel %vm3158, %v3156, %v3160
    %3163 = vst [vmem:[#allocation5 + $0x7] sm:$0x1] 0.0
    %3164 = vst [vmem:[#allocation5 + $0x8] sm:$0xff] %v3161
    %3165 = vst [vmem:[#allocation5 + $0x10] sm:$0xff] %v3162
    %3166 = vst [vmem:[#allocation5 + $0x18] sm:$0x1] 0.0
    %vm3167 = vcmp.lt.s32.totalorder %v59, 0
    %v3168 = vsub.s32 0, %v59
    %v3169 = vsel %vm3167, %v3168, %v59
    %v3170 = vshrl.u32 %v3169, 2
    %v3171 = vand.u32 %v3169, 3
    %v3172 = vsub.s32 0, %v3171
    %v3173 = vsel %vm3167, %v3172, %v3171
    %vm3174 = vcmp.ne.s32.totalorder %v3173, 0
    %vm3175 = vcmp.lt.s32.totalorder %v3173, 0
    %vm3176 = vmand %vm3175, %vm3174
    %v3177 = vadd.s32 %v3173, 4
    %v3178 = vsel %vm3176, %v3177, %v3173
    %s3179 = scalar_lea.vmem [#allocation5], 7
    %v3180 = vld [vmem:[%s3179] ss:$2 sm:$0xff]
    %vm3181 = vcmp.eq.s32.totalorder %v3178, 0
    %v3182 = vsel %vm3181, 0.0, %v3180
    %v3183 = vld [vmem:[#allocation7 + $0x800] sm:$0xff]
    %v3184 = vld [vmem:[#allocation7 + $0x808] sm:$0xff]
    %v3185 = vld [vmem:[#allocation7 + $0x810] sm:$0xff]
    %v3186 = vld [vmem:[#allocation7 + $0x818] sm:$0xff]
    %v3187 = vld [vmem:[#allocation7 + $0x820] sm:$0xff]
    %v3188 = vld [vmem:[#allocation7 + $0x828] sm:$0xff]
    %v3189 = vld [vmem:[#allocation7 + $0x830] sm:$0xff]
    %v3190 = vld [vmem:[#allocation7 + $0x838] sm:$0xff]
    %v3191 = vld [vmem:[#allocation7 + $0x840] sm:$0xff]
    %v3192 = vld [vmem:[#allocation7 + $0x848] sm:$0xff]
    %v3193 = vld [vmem:[#allocation7 + $0x850] sm:$0xff]
    %v3194 = vld [vmem:[#allocation7 + $0x858] sm:$0xff]
    %v3195 = vld [vmem:[#allocation7 + $0x860] sm:$0xff]
    %v3196 = vld [vmem:[#allocation7 + $0x868] sm:$0xff]
    %v3197 = vld [vmem:[#allocation7 + $0x870] sm:$0xff]
    %v3198 = vld [vmem:[#allocation7 + $0x878] sm:$0xff]
    %s3199 = scalar_lea.vmem [#allocation5], 8
    %v3200 = vld [vmem:[%s3199] ss:$2 sm:$0xff]
    %v3201 = vld [vmem:[#allocation7 + $0x880] sm:$0xff]
    %v3202 = vld [vmem:[#allocation7 + $0x888] sm:$0xff]
    %v3203 = vld [vmem:[#allocation7 + $0x890] sm:$0xff]
    %v3204 = vld [vmem:[#allocation7 + $0x898] sm:$0xff]
    %v3205 = vld [vmem:[#allocation7 + $0x8a0] sm:$0xff]
    %v3206 = vld [vmem:[#allocation7 + $0x8a8] sm:$0xff]
    %v3207 = vld [vmem:[#allocation7 + $0x8b0] sm:$0xff]
    %v3208 = vld [vmem:[#allocation7 + $0x8b8] sm:$0xff]
    %v3209 = vld [vmem:[#allocation7 + $0x8c0] sm:$0xff]
    %v3210 = vld [vmem:[#allocation7 + $0x8c8] sm:$0xff]
    %v3211 = vld [vmem:[#allocation7 + $0x8d0] sm:$0xff]
    %v3212 = vld [vmem:[#allocation7 + $0x8d8] sm:$0xff]
    %v3213 = vld [vmem:[#allocation7 + $0x8e0] sm:$0xff]
    %v3214 = vld [vmem:[#allocation7 + $0x8e8] sm:$0xff]
    %v3215 = vld [vmem:[#allocation7 + $0x8f0] sm:$0xff]
    %v3216 = vld [vmem:[#allocation7 + $0x8f8] sm:$0xff]
    %3217 = vmatprep.subr.mxu0 0.0
    %3218 = vmatpush1.msra.mxu0 %v3201
    %3219 = vmatprep.subr.mxu0 0.0
    %3220 = vmatpush1.msra.mxu0 %v3202
    %3221 = vmatprep.subr.mxu0 0.0
    %3222 = vmatpush1.msra.mxu0 %v3203
    %3223 = vmatprep.subr.mxu0 0.0
    %3224 = vmatpush1.msra.mxu0 %v3204
    %3225 = vmatprep.subr.mxu0 0.0
    %3226 = vmatpush1.msra.mxu0 %v3205
    %3227 = vmatprep.subr.mxu0 0.0
    %3228 = vmatpush1.msra.mxu0 %v3206
    %3229 = vmatprep.subr.mxu0 0.0
    %3230 = vmatpush1.msra.mxu0 %v3207
    %3231 = vmatprep.subr.mxu0 0.0
    %3232 = vmatpush1.msra.mxu0 %v3208
    %3233 = vmatprep.subr.mxu0 0.0
    %3234 = vmatpush1.msra.mxu0 %v3209
    %3235 = vmatprep.subr.mxu0 0.0
    %3236 = vmatpush1.msra.mxu0 %v3210
    %3237 = vmatprep.subr.mxu0 0.0
    %3238 = vmatpush1.msra.mxu0 %v3211
    %3239 = vmatprep.subr.mxu0 0.0
    %3240 = vmatpush1.msra.mxu0 %v3212
    %3241 = vmatprep.subr.mxu0 0.0
    %3242 = vmatpush1.msra.mxu0 %v3213
    %3243 = vmatprep.subr.mxu0 0.0
    %3244 = vmatpush1.msra.mxu0 %v3214
    %3245 = vmatprep.subr.mxu0 0.0
    %3246 = vmatpush1.msra.mxu0 %v3215
    %3247 = vmatprep.subr.mxu0 0.0
    %3248 = vmatpush1.msra.mxu0 %v3216
    %3249 = vmatprep.subr.mxu0 0.0
    %3250 = vmatpush1.msra.mxu0 0.0
    %3251 = vmatprep.subr.mxu0 0.0
    %3252 = vmatpush1.msra.mxu0 0.0
    %3253 = vmatprep.subr.mxu0 0.0
    %3254 = vmatpush1.msra.mxu0 0.0
    %3255 = vmatprep.subr.mxu0 0.0
    %3256 = vmatpush1.msra.mxu0 0.0
    %3257 = vmatprep.subr.mxu0 0.0
    %3258 = vmatpush1.msra.mxu0 0.0
    %3259 = vmatprep.subr.mxu0 0.0
    %3260 = vmatpush1.msra.mxu0 0.0
    %3261 = vmatprep.subr.mxu0 0.0
    %3262 = vmatpush1.msra.mxu0 0.0
    %3263 = vmatprep.subr.mxu0 0.0
    %3264 = vmatpush1.msra.mxu0 0.0
    %3265 = vmatprep.subr.mxu0 0.0
    %3266 = vmatpush1.msra.mxu0 0.0
    %3267 = vmatprep.subr.mxu0 0.0
    %3268 = vmatpush1.msra.mxu0 0.0
    %3269 = vmatprep.subr.mxu0 0.0
    %3270 = vmatpush1.msra.mxu0 0.0
    %3271 = vmatprep.subr.mxu0 0.0
    %3272 = vmatpush1.msra.mxu0 0.0
    %3273 = vmatprep.subr.mxu0 0.0
    %3274 = vmatpush1.msra.mxu0 0.0
    %3275 = vmatprep.subr.mxu0 0.0
    %3276 = vmatpush1.msra.mxu0 0.0
    %3277 = vmatprep.subr.mxu0 0.0
    %3278 = vmatpush1.msra.mxu0 0.0
    %3279 = vmatprep.subr.mxu0 0.0
    %3280 = vmatpush1.msra.mxu0 0.0
    %3281 = vmatprep.mubr.f32.mxu0 0.0
    %3282 = vmatmul.mubr.f32.gmra.mrb[0].mxu0 %v3200
    %v3283 = vpop.f32.mrb[0].mxu0
    %v3284 = vadd.f32 0.0, %v3283
    %v3285 = vpop.f32.mrb[0].mxu0
    %3286 = vdwg.mxu0
    %3287 = vmatprep.subr.mxu0 0.0
    %3288 = vmatpush1.msra.mxu0 %v3183
    %3289 = vmatprep.subr.mxu0 0.0
    %3290 = vmatpush1.msra.mxu0 %v3184
    %3291 = vmatprep.subr.mxu0 0.0
    %3292 = vmatpush1.msra.mxu0 %v3185
    %3293 = vmatprep.subr.mxu0 0.0
    %3294 = vmatpush1.msra.mxu0 %v3186
    %3295 = vmatprep.subr.mxu0 0.0
    %3296 = vmatpush1.msra.mxu0 %v3187
    %3297 = vmatprep.subr.mxu0 0.0
    %3298 = vmatpush1.msra.mxu0 %v3188
    %3299 = vmatprep.subr.mxu0 0.0
    %3300 = vmatpush1.msra.mxu0 %v3189
    %3301 = vmatprep.subr.mxu0 0.0
    %3302 = vmatpush1.msra.mxu0 %v3190
    %3303 = vmatprep.subr.mxu0 0.0
    %3304 = vmatpush1.msra.mxu0 %v3191
    %3305 = vmatprep.subr.mxu0 0.0
    %3306 = vmatpush1.msra.mxu0 %v3192
    %3307 = vmatprep.subr.mxu0 0.0
    %3308 = vmatpush1.msra.mxu0 %v3193
    %3309 = vmatprep.subr.mxu0 0.0
    %3310 = vmatpush1.msra.mxu0 %v3194
    %3311 = vmatprep.subr.mxu0 0.0
    %3312 = vmatpush1.msra.mxu0 %v3195
    %3313 = vmatprep.subr.mxu0 0.0
    %3314 = vmatpush1.msra.mxu0 %v3196
    %3315 = vmatprep.subr.mxu0 0.0
    %3316 = vmatpush1.msra.mxu0 %v3197
    %3317 = vmatprep.subr.mxu0 0.0
    %3318 = vmatpush1.msra.mxu0 %v3198
    %3319 = vmatprep.subr.mxu0 0.0
    %3320 = vmatpush1.msra.mxu0 0.0
    %3321 = vmatprep.subr.mxu0 0.0
    %3322 = vmatpush1.msra.mxu0 0.0
    %3323 = vmatprep.subr.mxu0 0.0
    %3324 = vmatpush1.msra.mxu0 0.0
    %3325 = vmatprep.subr.mxu0 0.0
    %3326 = vmatpush1.msra.mxu0 0.0
    %3327 = vmatprep.subr.mxu0 0.0
    %3328 = vmatpush1.msra.mxu0 0.0
    %3329 = vmatprep.subr.mxu0 0.0
    %3330 = vmatpush1.msra.mxu0 0.0
    %3331 = vmatprep.subr.mxu0 0.0
    %3332 = vmatpush1.msra.mxu0 0.0
    %3333 = vmatprep.subr.mxu0 0.0
    %3334 = vmatpush1.msra.mxu0 0.0
    %3335 = vmatprep.subr.mxu0 0.0
    %3336 = vmatpush1.msra.mxu0 0.0
    %3337 = vmatprep.subr.mxu0 0.0
    %3338 = vmatpush1.msra.mxu0 0.0
    %3339 = vmatprep.subr.mxu0 0.0
    %3340 = vmatpush1.msra.mxu0 0.0
    %3341 = vmatprep.subr.mxu0 0.0
    %3342 = vmatpush1.msra.mxu0 0.0
    %3343 = vmatprep.subr.mxu0 0.0
    %3344 = vmatpush1.msra.mxu0 0.0
    %3345 = vmatprep.subr.mxu0 0.0
    %3346 = vmatpush1.msra.mxu0 0.0
    %3347 = vmatprep.subr.mxu0 0.0
    %3348 = vmatpush1.msra.mxu0 0.0
    %3349 = vmatprep.subr.mxu0 0.0
    %3350 = vmatpush1.msra.mxu0 0.0
    %3351 = vmatprep.mubr.f32.mxu0 0.0
    %3352 = vmatmul.mubr.f32.gmra.mrb[0].mxu0 %v3182
    %v3353 = vpop.f32.mrb[0].mxu0
    %v3354 = vadd.f32 %v3284, %v3353
    %v3355 = vpop.f32.mrb[0].mxu0
    %3356 = vdwg.mxu0
    %s3357 = scalar_lea.vmem [#allocation5], 9
    %v3358 = vld [vmem:[%s3357] ss:$2 sm:$0xff]
    %v3359 = vld [vmem:[#allocation7 + $0x900] sm:$0xff]
    %v3360 = vld [vmem:[#allocation7 + $0x908] sm:$0xff]
    %v3361 = vld [vmem:[#allocation7 + $0x910] sm:$0xff]
    %v3362 = vld [vmem:[#allocation7 + $0x918] sm:$0xff]
    %v3363 = vld [vmem:[#allocation7 + $0x920] sm:$0xff]
    %v3364 = vld [vmem:[#allocation7 + $0x928] sm:$0xff]
    %v3365 = vld [vmem:[#allocation7 + $0x930] sm:$0xff]
    %v3366 = vld [vmem:[#allocation7 + $0x938] sm:$0xff]
    %v3367 = vld [vmem:[#allocation7 + $0x940] sm:$0xff]
    %v3368 = vld [vmem:[#allocation7 + $0x948] sm:$0xff]
    %v3369 = vld [vmem:[#allocation7 + $0x950] sm:$0xff]
    %v3370 = vld [vmem:[#allocation7 + $0x958] sm:$0xff]
    %v3371 = vld [vmem:[#allocation7 + $0x960] sm:$0xff]
    %v3372 = vld [vmem:[#allocation7 + $0x968] sm:$0xff]
    %v3373 = vld [vmem:[#allocation7 + $0x970] sm:$0xff]
    %v3374 = vld [vmem:[#allocation7 + $0x978] sm:$0xff]
    %3375 = vmatprep.subr.mxu0 0.0
    %3376 = vmatpush1.msra.mxu0 %v3359
    %3377 = vmatprep.subr.mxu0 0.0
    %3378 = vmatpush1.msra.mxu0 %v3360
    %3379 = vmatprep.subr.mxu0 0.0
    %3380 = vmatpush1.msra.mxu0 %v3361
    %3381 = vmatprep.subr.mxu0 0.0
    %3382 = vmatpush1.msra.mxu0 %v3362
    %3383 = vmatprep.subr.mxu0 0.0
    %3384 = vmatpush1.msra.mxu0 %v3363
    %3385 = vmatprep.subr.mxu0 0.0
    %3386 = vmatpush1.msra.mxu0 %v3364
    %3387 = vmatprep.subr.mxu0 0.0
    %3388 = vmatpush1.msra.mxu0 %v3365
    %3389 = vmatprep.subr.mxu0 0.0
    %3390 = vmatpush1.msra.mxu0 %v3366
    %3391 = vmatprep.subr.mxu0 0.0
    %3392 = vmatpush1.msra.mxu0 %v3367
    %3393 = vmatprep.subr.mxu0 0.0
    %3394 = vmatpush1.msra.mxu0 %v3368
    %3395 = vmatprep.subr.mxu0 0.0
    %3396 = vmatpush1.msra.mxu0 %v3369
    %3397 = vmatprep.subr.mxu0 0.0
    %3398 = vmatpush1.msra.mxu0 %v3370
    %3399 = vmatprep.subr.mxu0 0.0
    %3400 = vmatpush1.msra.mxu0 %v3371
    %3401 = vmatprep.subr.mxu0 0.0
    %3402 = vmatpush1.msra.mxu0 %v3372
    %3403 = vmatprep.subr.mxu0 0.0
    %3404 = vmatpush1.msra.mxu0 %v3373
    %3405 = vmatprep.subr.mxu0 0.0
    %3406 = vmatpush1.msra.mxu0 %v3374
    %3407 = vmatprep.subr.mxu0 0.0
    %3408 = vmatpush1.msra.mxu0 0.0
    %3409 = vmatprep.subr.mxu0 0.0
    %3410 = vmatpush1.msra.mxu0 0.0
    %3411 = vmatprep.subr.mxu0 0.0
    %3412 = vmatpush1.msra.mxu0 0.0
    %3413 = vmatprep.subr.mxu0 0.0
    %3414 = vmatpush1.msra.mxu0 0.0
    %3415 = vmatprep.subr.mxu0 0.0
    %3416 = vmatpush1.msra.mxu0 0.0
    %3417 = vmatprep.subr.mxu0 0.0
    %3418 = vmatpush1.msra.mxu0 0.0
    %3419 = vmatprep.subr.mxu0 0.0
    %3420 = vmatpush1.msra.mxu0 0.0
    %3421 = vmatprep.subr.mxu0 0.0
    %3422 = vmatpush1.msra.mxu0 0.0
    %3423 = vmatprep.subr.mxu0 0.0
    %3424 = vmatpush1.msra.mxu0 0.0
    %3425 = vmatprep.subr.mxu0 0.0
    %3426 = vmatpush1.msra.mxu0 0.0
    %3427 = vmatprep.subr.mxu0 0.0
    %3428 = vmatpush1.msra.mxu0 0.0
    %3429 = vmatprep.subr.mxu0 0.0
    %3430 = vmatpush1.msra.mxu0 0.0
    %3431 = vmatprep.subr.mxu0 0.0
    %3432 = vmatpush1.msra.mxu0 0.0
    %3433 = vmatprep.subr.mxu0 0.0
    %3434 = vmatpush1.msra.mxu0 0.0
    %3435 = vmatprep.subr.mxu0 0.0
    %3436 = vmatpush1.msra.mxu0 0.0
    %3437 = vmatprep.subr.mxu0 0.0
    %3438 = vmatpush1.msra.mxu0 0.0
    %3439 = vmatprep.mubr.f32.mxu0 0.0
    %3440 = vmatmul.mubr.f32.gmra.mrb[0].mxu0 %v3358
    %v3441 = vpop.f32.mrb[0].mxu0
    %v3442 = vadd.f32 0.0, %v3441
    %v3443 = vpop.f32.mrb[0].mxu0
    %3444 = vdwg.mxu0
    %v3445 = vadd.f32 %v3354, %v3442
    %s3446 = scalar_lea.vmem [#allocation5], 10
    %v3447 = vld [vmem:[%s3446] ss:$2 sm:$0xff]
    %vm3448 = vcmp.eq.s32.totalorder %v3178, 3
    %v3449 = vsel %vm3448, 0.0, %v3447
    %v3450 = vld [vmem:[#allocation7 + $0x980] sm:$0xff]
    %v3451 = vld [vmem:[#allocation7 + $0x988] sm:$0xff]
    %v3452 = vld [vmem:[#allocation7 + $0x990] sm:$0xff]
    %v3453 = vld [vmem:[#allocation7 + $0x998] sm:$0xff]
    %v3454 = vld [vmem:[#allocation7 + $0x9a0] sm:$0xff]
    %v3455 = vld [vmem:[#allocation7 + $0x9a8] sm:$0xff]
    %v3456 = vld [vmem:[#allocation7 + $0x9b0] sm:$0xff]
    %v3457 = vld [vmem:[#allocation7 + $0x9b8] sm:$0xff]
    %v3458 = vld [vmem:[#allocation7 + $0x9c0] sm:$0xff]
    %v3459 = vld [vmem:[#allocation7 + $0x9c8] sm:$0xff]
    %v3460 = vld [vmem:[#allocation7 + $0x9d0] sm:$0xff]
    %v3461 = vld [vmem:[#allocation7 + $0x9d8] sm:$0xff]
    %v3462 = vld [vmem:[#allocation7 + $0x9e0] sm:$0xff]
    %v3463 = vld [vmem:[#allocation7 + $0x9e8] sm:$0xff]
    %v3464 = vld [vmem:[#allocation7 + $0x9f0] sm:$0xff]
    %v3465 = vld [vmem:[#allocation7 + $0x9f8] sm:$0xff]
    %3466 = vmatprep.subr.mxu0 0.0
    %3467 = vmatpush1.msra.mxu0 %v3450
    %3468 = vmatprep.subr.mxu0 0.0
    %3469 = vmatpush1.msra.mxu0 %v3451
    %3470 = vmatprep.subr.mxu0 0.0
    %3471 = vmatpush1.msra.mxu0 %v3452
    %3472 = vmatprep.subr.mxu0 0.0
    %3473 = vmatpush1.msra.mxu0 %v3453
    %3474 = vmatprep.subr.mxu0 0.0
    %3475 = vmatpush1.msra.mxu0 %v3454
    %3476 = vmatprep.subr.mxu0 0.0
    %3477 = vmatpush1.msra.mxu0 %v3455
    %3478 = vmatprep.subr.mxu0 0.0
    %3479 = vmatpush1.msra.mxu0 %v3456
    %3480 = vmatprep.subr.mxu0 0.0
    %3481 = vmatpush1.msra.mxu0 %v3457
    %3482 = vmatprep.subr.mxu0 0.0
    %3483 = vmatpush1.msra.mxu0 %v3458
    %3484 = vmatprep.subr.mxu0 0.0
    %3485 = vmatpush1.msra.mxu0 %v3459
    %3486 = vmatprep.subr.mxu0 0.0
    %3487 = vmatpush1.msra.mxu0 %v3460
    %3488 = vmatprep.subr.mxu0 0.0
    %3489 = vmatpush1.msra.mxu0 %v3461
    %3490 = vmatprep.subr.mxu0 0.0
    %3491 = vmatpush1.msra.mxu0 %v3462
    %3492 = vmatprep.subr.mxu0 0.0
    %3493 = vmatpush1.msra.mxu0 %v3463
    %3494 = vmatprep.subr.mxu0 0.0
    %3495 = vmatpush1.msra.mxu0 %v3464
    %3496 = vmatprep.subr.mxu0 0.0
    %3497 = vmatpush1.msra.mxu0 %v3465
    %3498 = vmatprep.subr.mxu0 0.0
    %3499 = vmatpush1.msra.mxu0 0.0
    %3500 = vmatprep.subr.mxu0 0.0
    %3501 = vmatpush1.msra.mxu0 0.0
    %3502 = vmatprep.subr.mxu0 0.0
    %3503 = vmatpush1.msra.mxu0 0.0
    %3504 = vmatprep.subr.mxu0 0.0
    %3505 = vmatpush1.msra.mxu0 0.0
    %3506 = vmatprep.subr.mxu0 0.0
    %3507 = vmatpush1.msra.mxu0 0.0
    %3508 = vmatprep.subr.mxu0 0.0
    %3509 = vmatpush1.msra.mxu0 0.0
    %3510 = vmatprep.subr.mxu0 0.0
    %3511 = vmatpush1.msra.mxu0 0.0
    %3512 = vmatprep.subr.mxu0 0.0
    %3513 = vmatpush1.msra.mxu0 0.0
    %3514 = vmatprep.subr.mxu0 0.0
    %3515 = vmatpush1.msra.mxu0 0.0
    %3516 = vmatprep.subr.mxu0 0.0
    %3517 = vmatpush1.msra.mxu0 0.0
    %3518 = vmatprep.subr.mxu0 0.0
    %3519 = vmatpush1.msra.mxu0 0.0
    %3520 = vmatprep.subr.mxu0 0.0
    %3521 = vmatpush1.msra.mxu0 0.0
    %3522 = vmatprep.subr.mxu0 0.0
    %3523 = vmatpush1.msra.mxu0 0.0
    %3524 = vmatprep.subr.mxu0 0.0
    %3525 = vmatpush1.msra.mxu0 0.0
    %3526 = vmatprep.subr.mxu0 0.0
    %3527 = vmatpush1.msra.mxu0 0.0
    %3528 = vmatprep.subr.mxu0 0.0
    %3529 = vmatpush1.msra.mxu0 0.0
    %3530 = vmatprep.mubr.f32.mxu0 0.0
    %3531 = vmatmul.mubr.f32.gmra.mrb[0].mxu0 %v3449
    %v3532 = vpop.f32.mrb[0].mxu0
    %v3533 = vadd.f32 0.0, %v3532
    %v3534 = vpop.f32.mrb[0].mxu0
    %3535 = vdwg.mxu0
    %v3536 = vadd.f32 %v3445, %v3533
    %v3537 = vrot.slane %v3536, 4
    %v3538 = vadd.f32 %v3536, %v3537
    %v3539 = vrot.slane %v3538, 2
    %v3540 = vadd.f32 %v3538, %v3539
    %v3541 = vrot.slane %v3540, 1
    %v3542 = vadd.f32 %v3540, %v3541
    %v3543 = vmul.f32 %v3542, 0.125
    %v3544 = vsub.f32 %v3536, %v3543
    %v3545 = vmul.f32 %v3544, %v3544
    %v3546 = vrot.slane %v3545, 4
    %v3547 = vadd.f32 %v3545, %v3546
    %v3548 = vrot.slane %v3547, 2
    %v3549 = vadd.f32 %v3547, %v3548
    %v3550 = vrot.slane %v3549, 1
    %v3551 = vadd.f32 %v3549, %v3550
    %v3552 = vmul.f32 %v3551, 0.125
    %v3553 = vld [vmem:[#allocation9 + $0x4] sm:$0x1]
    %v3554 = vld [vmem:[#allocation9 + $0x9] sm:$0x1]
    %v3555 = vadd.f32 %v3552, 1e-05
    %v3556 = vrsqrt.pop %v3555
    %v3557 = vmul.f32 %v3553, %v3556
    %v3558 = vmul.f32 %v3543, %v3557
    %v3559 = vsub.f32 %v3554, %v3558
    %v3560 = vlaneseq
    %v3561 = vshrl.u32 %v3560, 7
    %v3562 = vsub.s32 0, %v3561
    %v3563 = vrot.slane %v3557, %v3562
    %v3564 = vmul.f32 %v3536, %v3563
    %v3565 = vlaneseq
    %v3566 = vshrl.u32 %v3565, 7
    %v3567 = vsub.s32 0, %v3566
    %v3568 = vrot.slane %v3559, %v3567
    %v3569 = vadd.f32 %v3564, %v3568
    %vm3570 = vcmp.ge.f32.partialorder %v3569, 0.0
    %v3571 = vmul.f32 %v3569, 0.2
    %v3572 = vsel %vm3570, %v3569, %v3571
    %3573 = vst [vmem:[#allocation6 + $0x7] sm:$0x1] 0.0
    %3574 = vst [vmem:[#allocation6 + $0x8] sm:$0xff] %v3572
    %3575 = vst [vmem:[#allocation6 + $0x10] sm:$0x1] 0.0
    %s3576 = scalar_lea.vmem [#allocation6], 8
    %v3577 = vld [vmem:[%s3576] ss:$4 sm:$0x3]
    %v3578 = vld [vmem:[#allocation11] sm:$0xff]
    %v3579 = vld [vmem:[#allocation11 + $0x8] sm:$0xff]
    %v3580 = vld [vmem:[#allocation11 + $0x10] sm:$0xff]
    %v3581 = vld [vmem:[#allocation11 + $0x18] sm:$0xff]
    %v3582 = vld [vmem:[#allocation11 + $0x20] sm:$0xff]
    %v3583 = vld [vmem:[#allocation11 + $0x28] sm:$0xff]
    %v3584 = vld [vmem:[#allocation11 + $0x30] sm:$0xff]
    %v3585 = vld [vmem:[#allocation11 + $0x38] sm:$0xff]
    %v3586 = vld [vmem:[#allocation11 + $0x40] sm:$0xff]
    %v3587 = vld [vmem:[#allocation11 + $0x48] sm:$0xff]
    %v3588 = vld [vmem:[#allocation11 + $0x50] sm:$0xff]
    %v3589 = vld [vmem:[#allocation11 + $0x58] sm:$0xff]
    %v3590 = vld [vmem:[#allocation11 + $0x60] sm:$0xff]
    %v3591 = vld [vmem:[#allocation11 + $0x68] sm:$0xff]
    %v3592 = vld [vmem:[#allocation11 + $0x70] sm:$0xff]
    %v3593 = vld [vmem:[#allocation11 + $0x78] sm:$0xff]
    %s3594 = scalar_lea.vmem [#allocation6], 9
    %v3595 = vld [vmem:[%s3594] ss:$4 sm:$0x3]
    %v3596 = vld [vmem:[#allocation11 + $0x80] sm:$0xff]
    %v3597 = vld [vmem:[#allocation11 + $0x88] sm:$0xff]
    %v3598 = vld [vmem:[#allocation11 + $0x90] sm:$0xff]
    %v3599 = vld [vmem:[#allocation11 + $0x98] sm:$0xff]
    %v3600 = vld [vmem:[#allocation11 + $0xa0] sm:$0xff]
    %v3601 = vld [vmem:[#allocation11 + $0xa8] sm:$0xff]
    %v3602 = vld [vmem:[#allocation11 + $0xb0] sm:$0xff]
    %v3603 = vld [vmem:[#allocation11 + $0xb8] sm:$0xff]
    %v3604 = vld [vmem:[#allocation11 + $0xc0] sm:$0xff]
    %v3605 = vld [vmem:[#allocation11 + $0xc8] sm:$0xff]
    %v3606 = vld [vmem:[#allocation11 + $0xd0] sm:$0xff]
    %v3607 = vld [vmem:[#allocation11 + $0xd8] sm:$0xff]
    %v3608 = vld [vmem:[#allocation11 + $0xe0] sm:$0xff]
    %v3609 = vld [vmem:[#allocation11 + $0xe8] sm:$0xff]
    %v3610 = vld [vmem:[#allocation11 + $0xf0] sm:$0xff]
    %v3611 = vld [vmem:[#allocation11 + $0xf8] sm:$0xff]
    %3612 = vmatprep.subr.mxu0 0.0
    %3613 = vmatpush1.msra.mxu0 %v3596
    %3614 = vmatprep.subr.mxu0 0.0
    %3615 = vmatpush1.msra.mxu0 %v3597
    %3616 = vmatprep.subr.mxu0 0.0
    %3617 = vmatpush1.msra.mxu0 %v3598
    %3618 = vmatprep.subr.mxu0 0.0
    %3619 = vmatpush1.msra.mxu0 %v3599
    %3620 = vmatprep.subr.mxu0 0.0
    %3621 = vmatpush1.msra.mxu0 %v3600
    %3622 = vmatprep.subr.mxu0 0.0
    %3623 = vmatpush1.msra.mxu0 %v3601
    %3624 = vmatprep.subr.mxu0 0.0
    %3625 = vmatpush1.msra.mxu0 %v3602
    %3626 = vmatprep.subr.mxu0 0.0
    %3627 = vmatpush1.msra.mxu0 %v3603
    %3628 = vmatprep.subr.mxu0 0.0
    %3629 = vmatpush1.msra.mxu0 %v3604
    %3630 = vmatprep.subr.mxu0 0.0
    %3631 = vmatpush1.msra.mxu0 %v3605
    %3632 = vmatprep.subr.mxu0 0.0
    %3633 = vmatpush1.msra.mxu0 %v3606
    %3634 = vmatprep.subr.mxu0 0.0
    %3635 = vmatpush1.msra.mxu0 %v3607
    %3636 = vmatprep.subr.mxu0 0.0
    %3637 = vmatpush1.msra.mxu0 %v3608
    %3638 = vmatprep.subr.mxu0 0.0
    %3639 = vmatpush1.msra.mxu0 %v3609
    %3640 = vmatprep.subr.mxu0 0.0
    %3641 = vmatpush1.msra.mxu0 %v3610
    %3642 = vmatprep.subr.mxu0 0.0
    %3643 = vmatpush1.msra.mxu0 %v3611
    %3644 = vmatprep.subr.mxu0 0.0
    %3645 = vmatpush1.msra.mxu0 0.0
    %3646 = vmatprep.subr.mxu0 0.0
    %3647 = vmatpush1.msra.mxu0 0.0
    %3648 = vmatprep.subr.mxu0 0.0
    %3649 = vmatpush1.msra.mxu0 0.0
    %3650 = vmatprep.subr.mxu0 0.0
    %3651 = vmatpush1.msra.mxu0 0.0
    %3652 = vmatprep.subr.mxu0 0.0
    %3653 = vmatpush1.msra.mxu0 0.0
    %3654 = vmatprep.subr.mxu0 0.0
    %3655 = vmatpush1.msra.mxu0 0.0
    %3656 = vmatprep.subr.mxu0 0.0
    %3657 = vmatpush1.msra.mxu0 0.0
    %3658 = vmatprep.subr.mxu0 0.0
    %3659 = vmatpush1.msra.mxu0 0.0
    %3660 = vmatprep.subr.mxu0 0.0
    %3661 = vmatpush1.msra.mxu0 0.0
    %3662 = vmatprep.subr.mxu0 0.0
    %3663 = vmatpush1.msra.mxu0 0.0
    %3664 = vmatprep.subr.mxu0 0.0
    %3665 = vmatpush1.msra.mxu0 0.0
    %3666 = vmatprep.subr.mxu0 0.0
    %3667 = vmatpush1.msra.mxu0 0.0
    %3668 = vmatprep.subr.mxu0 0.0
    %3669 = vmatpush1.msra.mxu0 0.0
    %3670 = vmatprep.subr.mxu0 0.0
    %3671 = vmatpush1.msra.mxu0 0.0
    %3672 = vmatprep.subr.mxu0 0.0
    %3673 = vmatpush1.msra.mxu0 0.0
    %3674 = vmatprep.subr.mxu0 0.0
    %3675 = vmatpush1.msra.mxu0 0.0
    %3676 = vmatprep.mubr.f32.mxu0 0.0
    %3677 = vmatmul.mubr.f32.gmra.mrb[0].mxu0 %v3595
    %v3678 = vpop.f32.mrb[0].mxu0
    %v3679 = vadd.f32 0.0, %v3678
    %v3680 = vpop.f32.mrb[0].mxu0
    %3681 = vdwg.mxu0
    %3682 = vmatprep.subr.mxu0 0.0
    %3683 = vmatpush1.msra.mxu0 %v3578
    %3684 = vmatprep.subr.mxu0 0.0
    %3685 = vmatpush1.msra.mxu0 %v3579
    %3686 = vmatprep.subr.mxu0 0.0
    %3687 = vmatpush1.msra.mxu0 %v3580
    %3688 = vmatprep.subr.mxu0 0.0
    %3689 = vmatpush1.msra.mxu0 %v3581
    %3690 = vmatprep.subr.mxu0 0.0
    %3691 = vmatpush1.msra.mxu0 %v3582
    %3692 = vmatprep.subr.mxu0 0.0
    %3693 = vmatpush1.msra.mxu0 %v3583
    %3694 = vmatprep.subr.mxu0 0.0
    %3695 = vmatpush1.msra.mxu0 %v3584
    %3696 = vmatprep.subr.mxu0 0.0
    %3697 = vmatpush1.msra.mxu0 %v3585
    %3698 = vmatprep.subr.mxu0 0.0
    %3699 = vmatpush1.msra.mxu0 %v3586
    %3700 = vmatprep.subr.mxu0 0.0
    %3701 = vmatpush1.msra.mxu0 %v3587
    %3702 = vmatprep.subr.mxu0 0.0
    %3703 = vmatpush1.msra.mxu0 %v3588
    %3704 = vmatprep.subr.mxu0 0.0
    %3705 = vmatpush1.msra.mxu0 %v3589
    %3706 = vmatprep.subr.mxu0 0.0
    %3707 = vmatpush1.msra.mxu0 %v3590
    %3708 = vmatprep.subr.mxu0 0.0
    %3709 = vmatpush1.msra.mxu0 %v3591
    %3710 = vmatprep.subr.mxu0 0.0
    %3711 = vmatpush1.msra.mxu0 %v3592
    %3712 = vmatprep.subr.mxu0 0.0
    %3713 = vmatpush1.msra.mxu0 %v3593
    %3714 = vmatprep.subr.mxu0 0.0
    %3715 = vmatpush1.msra.mxu0 0.0
    %3716 = vmatprep.subr.mxu0 0.0
    %3717 = vmatpush1.msra.mxu0 0.0
    %3718 = vmatprep.subr.mxu0 0.0
    %3719 = vmatpush1.msra.mxu0 0.0
    %3720 = vmatprep.subr.mxu0 0.0
    %3721 = vmatpush1.msra.mxu0 0.0
    %3722 = vmatprep.subr.mxu0 0.0
    %3723 = vmatpush1.msra.mxu0 0.0
    %3724 = vmatprep.subr.mxu0 0.0
    %3725 = vmatpush1.msra.mxu0 0.0
    %3726 = vmatprep.subr.mxu0 0.0
    %3727 = vmatpush1.msra.mxu0 0.0
    %3728 = vmatprep.subr.mxu0 0.0
    %3729 = vmatpush1.msra.mxu0 0.0
    %3730 = vmatprep.subr.mxu0 0.0
    %3731 = vmatpush1.msra.mxu0 0.0
    %3732 = vmatprep.subr.mxu0 0.0
    %3733 = vmatpush1.msra.mxu0 0.0
    %3734 = vmatprep.subr.mxu0 0.0
    %3735 = vmatpush1.msra.mxu0 0.0
    %3736 = vmatprep.subr.mxu0 0.0
    %3737 = vmatpush1.msra.mxu0 0.0
    %3738 = vmatprep.subr.mxu0 0.0
    %3739 = vmatpush1.msra.mxu0 0.0
    %3740 = vmatprep.subr.mxu0 0.0
    %3741 = vmatpush1.msra.mxu0 0.0
    %3742 = vmatprep.subr.mxu0 0.0
    %3743 = vmatpush1.msra.mxu0 0.0
    %3744 = vmatprep.subr.mxu0 0.0
    %3745 = vmatpush1.msra.mxu0 0.0
    %3746 = vmatprep.mubr.f32.mxu0 0.0
    %3747 = vmatmul.mubr.f32.gmra.mrb[0].mxu0 %v3577
    %v3748 = vpop.f32.mrb[0].mxu0
    %v3749 = vadd.f32 %v3679, %v3748
    %v3750 = vpop.f32.mrb[0].mxu0
    %3751 = vdwg.mxu0
    %s3752 = scalar_lea.vmem [#allocation6], 10
    %v3753 = vld [vmem:[%s3752] ss:$4 sm:$0x3]
    %v3754 = vld [vmem:[#allocation11 + $0x100] sm:$0xff]
    %v3755 = vld [vmem:[#allocation11 + $0x108] sm:$0xff]
    %v3756 = vld [vmem:[#allocation11 + $0x110] sm:$0xff]
    %v3757 = vld [vmem:[#allocation11 + $0x118] sm:$0xff]
    %v3758 = vld [vmem:[#allocation11 + $0x120] sm:$0xff]
    %v3759 = vld [vmem:[#allocation11 + $0x128] sm:$0xff]
    %v3760 = vld [vmem:[#allocation11 + $0x130] sm:$0xff]
    %v3761 = vld [vmem:[#allocation11 + $0x138] sm:$0xff]
    %v3762 = vld [vmem:[#allocation11 + $0x140] sm:$0xff]
    %v3763 = vld [vmem:[#allocation11 + $0x148] sm:$0xff]
    %v3764 = vld [vmem:[#allocation11 + $0x150] sm:$0xff]
    %v3765 = vld [vmem:[#allocation11 + $0x158] sm:$0xff]
    %v3766 = vld [vmem:[#allocation11 + $0x160] sm:$0xff]
    %v3767 = vld [vmem:[#allocation11 + $0x168] sm:$0xff]
    %v3768 = vld [vmem:[#allocation11 + $0x170] sm:$0xff]
    %v3769 = vld [vmem:[#allocation11 + $0x178] sm:$0xff]
    %3770 = vmatprep.subr.mxu0 0.0
    %3771 = vmatpush1.msra.mxu0 %v3754
    %3772 = vmatprep.subr.mxu0 0.0
    %3773 = vmatpush1.msra.mxu0 %v3755
    %3774 = vmatprep.subr.mxu0 0.0
    %3775 = vmatpush1.msra.mxu0 %v3756
    %3776 = vmatprep.subr.mxu0 0.0
    %3777 = vmatpush1.msra.mxu0 %v3757
    %3778 = vmatprep.subr.mxu0 0.0
    %3779 = vmatpush1.msra.mxu0 %v3758
    %3780 = vmatprep.subr.mxu0 0.0
    %3781 = vmatpush1.msra.mxu0 %v3759
    %3782 = vmatprep.subr.mxu0 0.0
    %3783 = vmatpush1.msra.mxu0 %v3760
    %3784 = vmatprep.subr.mxu0 0.0
    %3785 = vmatpush1.msra.mxu0 %v3761
    %3786 = vmatprep.subr.mxu0 0.0
    %3787 = vmatpush1.msra.mxu0 %v3762
    %3788 = vmatprep.subr.mxu0 0.0
    %3789 = vmatpush1.msra.mxu0 %v3763
    %3790 = vmatprep.subr.mxu0 0.0
    %3791 = vmatpush1.msra.mxu0 %v3764
    %3792 = vmatprep.subr.mxu0 0.0
    %3793 = vmatpush1.msra.mxu0 %v3765
    %3794 = vmatprep.subr.mxu0 0.0
    %3795 = vmatpush1.msra.mxu0 %v3766
    %3796 = vmatprep.subr.mxu0 0.0
    %3797 = vmatpush1.msra.mxu0 %v3767
    %3798 = vmatprep.subr.mxu0 0.0
    %3799 = vmatpush1.msra.mxu0 %v3768
    %3800 = vmatprep.subr.mxu0 0.0
    %3801 = vmatpush1.msra.mxu0 %v3769
    %3802 = vmatprep.subr.mxu0 0.0
    %3803 = vmatpush1.msra.mxu0 0.0
    %3804 = vmatprep.subr.mxu0 0.0
    %3805 = vmatpush1.msra.mxu0 0.0
    %3806 = vmatprep.subr.mxu0 0.0
    %3807 = vmatpush1.msra.mxu0 0.0
    %3808 = vmatprep.subr.mxu0 0.0
    %3809 = vmatpush1.msra.mxu0 0.0
    %3810 = vmatprep.subr.mxu0 0.0
    %3811 = vmatpush1.msra.mxu0 0.0
    %3812 = vmatprep.subr.mxu0 0.0
    %3813 = vmatpush1.msra.mxu0 0.0
    %3814 = vmatprep.subr.mxu0 0.0
    %3815 = vmatpush1.msra.mxu0 0.0
    %3816 = vmatprep.subr.mxu0 0.0
    %3817 = vmatpush1.msra.mxu0 0.0
    %3818 = vmatprep.subr.mxu0 0.0
    %3819 = vmatpush1.msra.mxu0 0.0
    %3820 = vmatprep.subr.mxu0 0.0
    %3821 = vmatpush1.msra.mxu0 0.0
    %3822 = vmatprep.subr.mxu0 0.0
    %3823 = vmatpush1.msra.mxu0 0.0
    %3824 = vmatprep.subr.mxu0 0.0
    %3825 = vmatpush1.msra.mxu0 0.0
    %3826 = vmatprep.subr.mxu0 0.0
    %3827 = vmatpush1.msra.mxu0 0.0
    %3828 = vmatprep.subr.mxu0 0.0
    %3829 = vmatpush1.msra.mxu0 0.0
    %3830 = vmatprep.subr.mxu0 0.0
    %3831 = vmatpush1.msra.mxu0 0.0
    %3832 = vmatprep.subr.mxu0 0.0
    %3833 = vmatpush1.msra.mxu0 0.0
    %3834 = vmatprep.mubr.f32.mxu0 0.0
    %3835 = vmatmul.mubr.f32.gmra.mrb[0].mxu0 %v3753
    %v3836 = vpop.f32.mrb[0].mxu0
    %v3837 = vadd.f32 0.0, %v3836
    %v3838 = vpop.f32.mrb[0].mxu0
    %3839 = vdwg.mxu0
    %v3840 = vadd.f32 %v3749, %v3837
    %s3841 = scalar_lea.vmem [#allocation6], 11
    %v3842 = vld [vmem:[%s3841] ss:$4 sm:$0x3]
    %v3843 = vld [vmem:[#allocation11 + $0x180] sm:$0xff]
    %v3844 = vld [vmem:[#allocation11 + $0x188] sm:$0xff]
    %v3845 = vld [vmem:[#allocation11 + $0x190] sm:$0xff]
    %v3846 = vld [vmem:[#allocation11 + $0x198] sm:$0xff]
    %v3847 = vld [vmem:[#allocation11 + $0x1a0] sm:$0xff]
    %v3848 = vld [vmem:[#allocation11 + $0x1a8] sm:$0xff]
    %v3849 = vld [vmem:[#allocation11 + $0x1b0] sm:$0xff]
    %v3850 = vld [vmem:[#allocation11 + $0x1b8] sm:$0xff]
    %v3851 = vld [vmem:[#allocation11 + $0x1c0] sm:$0xff]
    %v3852 = vld [vmem:[#allocation11 + $0x1c8] sm:$0xff]
    %v3853 = vld [vmem:[#allocation11 + $0x1d0] sm:$0xff]
    %v3854 = vld [vmem:[#allocation11 + $0x1d8] sm:$0xff]
    %v3855 = vld [vmem:[#allocation11 + $0x1e0] sm:$0xff]
    %v3856 = vld [vmem:[#allocation11 + $0x1e8] sm:$0xff]
    %v3857 = vld [vmem:[#allocation11 + $0x1f0] sm:$0xff]
    %v3858 = vld [vmem:[#allocation11 + $0x1f8] sm:$0xff]
    %3859 = vmatprep.subr.mxu0 0.0
    %3860 = vmatpush1.msra.mxu0 %v3843
    %3861 = vmatprep.subr.mxu0 0.0
    %3862 = vmatpush1.msra.mxu0 %v3844
    %3863 = vmatprep.subr.mxu0 0.0
    %3864 = vmatpush1.msra.mxu0 %v3845
    %3865 = vmatprep.subr.mxu0 0.0
    %3866 = vmatpush1.msra.mxu0 %v3846
    %3867 = vmatprep.subr.mxu0 0.0
    %3868 = vmatpush1.msra.mxu0 %v3847
    %3869 = vmatprep.subr.mxu0 0.0
    %3870 = vmatpush1.msra.mxu0 %v3848
    %3871 = vmatprep.subr.mxu0 0.0
    %3872 = vmatpush1.msra.mxu0 %v3849
    %3873 = vmatprep.subr.mxu0 0.0
    %3874 = vmatpush1.msra.mxu0 %v3850
    %3875 = vmatprep.subr.mxu0 0.0
    %3876 = vmatpush1.msra.mxu0 %v3851
    %3877 = vmatprep.subr.mxu0 0.0
    %3878 = vmatpush1.msra.mxu0 %v3852
    %3879 = vmatprep.subr.mxu0 0.0
    %3880 = vmatpush1.msra.mxu0 %v3853
    %3881 = vmatprep.subr.mxu0 0.0
    %3882 = vmatpush1.msra.mxu0 %v3854
    %3883 = vmatprep.subr.mxu0 0.0
    %3884 = vmatpush1.msra.mxu0 %v3855
    %3885 = vmatprep.subr.mxu0 0.0
    %3886 = vmatpush1.msra.mxu0 %v3856
    %3887 = vmatprep.subr.mxu0 0.0
    %3888 = vmatpush1.msra.mxu0 %v3857
    %3889 = vmatprep.subr.mxu0 0.0
    %3890 = vmatpush1.msra.mxu0 %v3858
    %3891 = vmatprep.subr.mxu0 0.0
    %3892 = vmatpush1.msra.mxu0 0.0
    %3893 = vmatprep.subr.mxu0 0.0
    %3894 = vmatpush1.msra.mxu0 0.0
    %3895 = vmatprep.subr.mxu0 0.0
    %3896 = vmatpush1.msra.mxu0 0.0
    %3897 = vmatprep.subr.mxu0 0.0
    %3898 = vmatpush1.msra.mxu0 0.0
    %3899 = vmatprep.subr.mxu0 0.0
    %3900 = vmatpush1.msra.mxu0 0.0
    %3901 = vmatprep.subr.mxu0 0.0
    %3902 = vmatpush1.msra.mxu0 0.0
    %3903 = vmatprep.subr.mxu0 0.0
    %3904 = vmatpush1.msra.mxu0 0.0
    %3905 = vmatprep.subr.mxu0 0.0
    %3906 = vmatpush1.msra.mxu0 0.0
    %3907 = vmatprep.subr.mxu0 0.0
    %3908 = vmatpush1.msra.mxu0 0.0
    %3909 = vmatprep.subr.mxu0 0.0
    %3910 = vmatpush1.msra.mxu0 0.0
    %3911 = vmatprep.subr.mxu0 0.0
    %3912 = vmatpush1.msra.mxu0 0.0
    %3913 = vmatprep.subr.mxu0 0.0
    %3914 = vmatpush1.msra.mxu0 0.0
    %3915 = vmatprep.subr.mxu0 0.0
    %3916 = vmatpush1.msra.mxu0 0.0
    %3917 = vmatprep.subr.mxu0 0.0
    %3918 = vmatpush1.msra.mxu0 0.0
    %3919 = vmatprep.subr.mxu0 0.0
    %3920 = vmatpush1.msra.mxu0 0.0
    %3921 = vmatprep.subr.mxu0 0.0
    %3922 = vmatpush1.msra.mxu0 0.0
    %3923 = vmatprep.mubr.f32.mxu0 0.0
    %3924 = vmatmul.mubr.f32.gmra.mrb[0].mxu0 %v3842
    %v3925 = vpop.f32.mrb[0].mxu0
    %v3926 = vadd.f32 0.0, %v3925
    %v3927 = vpop.f32.mrb[0].mxu0
    %3928 = vdwg.mxu0
    %v3929 = vadd.f32 %v3840, %v3926
    %3930 = vst [vmem:[%s4] sm:$0x3] %v3929
    // Predicated region
    $region30: #{encoder_forward.1} parent=1 // pred_check
      _
    $region31: #{encoder_forward.1} parent=1 // pred_check_branch
      %3932 = sbr.rel (0) target = $region33
    $region32: #{encoder_forward.1} parent=1 // pred_region
      _
    $region33: #{encoder_forward.1} parent=1 // pred_fallthru
      _
    // Predicated region
    $region34: #{encoder_forward.1} parent=1 // pred_check
      _
    $region35: #{encoder_forward.1} parent=1 // pred_check_branch
      %3934 = sbr.rel (0) target = $region37
    $region36: #{encoder_forward.1} parent=1 // pred_region
      _
    $region37: #{encoder_forward.1} parent=1 // pred_fallthru
      _
    %3935 = vsyncpa [#allocation8], 1
    %3936 = vsyncpa [#allocation10], 1

</llo_original>
